<compile_context>
chip_gen: v5e
topology: v5e:2x2
jax: 0.10.0
libtpu: 0.0.40
codegen_flags: <defaults>
</compile_context>

<pallas_src>
import functools

import jax
import jax.numpy as jnp
from jax.experimental import pallas as pl
from jax.experimental.pallas import tpu as pltpu

_BN_EPS = 1e-5


# ---------------------------------------------------------------------------
# Fused kernel
# ---------------------------------------------------------------------------
def _fused_decoder_kernel(*refs, n_batch, c_skip, offsets, lv, pad_shift):
    # refs: x, [skip], up_mat, w1, b1, w2, b2, imask, out, buf(scratch)
    if c_skip > 0:
        (x_ref, skip_ref, up_ref, w1_ref, b1_ref, w2_ref, b2_ref,
         mask_ref, o_ref, buf_ref) = refs
    else:
        (x_ref, up_ref, w1_ref, b1_ref, w2_ref, b2_ref,
         mask_ref, o_ref, buf_ref) = refs
        skip_ref = None

    # Zero the conv2 padded-input scratch once: its zero "ring" is the conv2
    # padding and is never overwritten (only the interior strip is).
    buf_ref[...] = jnp.zeros(buf_ref.shape, buf_ref.dtype)

    up_mat = up_ref[...]        # (H*W, PB)   upsample -> padded-flat matrix
    w1 = w1_ref[...]            # (Cout, 9*CinT)   BN1 scale folded in
    b1 = b1_ref[...]            # (Cout, 1)        BN1 shift
    w2 = w2_ref[...]            # (Cout, 9*Cout)   BN2 scale folded in
    b2 = b2_ref[...]            # (Cout, 1)        BN2 shift
    imask = mask_ref[...]       # (1, LV)  1.0 on valid output columns

    for n in range(n_batch):    # static, unrolled; single grid step overall
        # --- bilinear 2x upsample (align_corners) fused with zero-padding:
        #     one lane-dense matmul straight into the padded-flat conv layout.
        xu = jnp.dot(x_ref[n], up_mat,
                     preferred_element_type=jnp.float32)        # (Cin, PB)
        if skip_ref is not None:
            cat = jnp.concatenate([xu, skip_ref[n]], axis=0)    # (CinT, PB)
        else:
            cat = xu

        # --- conv1 3x3 (pad=1) + folded-BN + ReLU: single im2col matmul, K=9*CinT.
        #     The 9 taps are pure lane shifts of the flat padded image.
        s1 = jnp.concatenate([cat[:, o:o + lv] for o in offsets], axis=0)
        y1 = jnp.dot(w1, s1, preferred_element_type=jnp.float32) + b1
        y1 = jnp.maximum(y1, 0.0) * imask                       # (Cout, LV)

        # --- re-pad the conv1 activation for conv2: a pure lane shift into the
        #     zero-ringed VMEM scratch (intermediate never leaves VMEM).
        buf_ref[:, pad_shift:pad_shift + lv] = y1
        f2 = buf_ref[...]                                       # (Cout, PB)

        # --- conv2 3x3 (pad=1) + folded-BN + ReLU: single im2col matmul, K=9*Cout.
        s2 = jnp.concatenate([f2[:, o:o + lv] for o in offsets], axis=0)
        y2 = jnp.dot(w2, s2, preferred_element_type=jnp.float32) + b2
        o_ref[n] = jnp.maximum(y2, 0.0)                         # lane-dense store


# ---------------------------------------------------------------------------
# Host-side helpers (tiny constant matrices, built once)
# ---------------------------------------------------------------------------
def _interp_matrix(n_in, n_out):
    """(n_out, n_in) bilinear interpolation matrix, align_corners=True."""
    if n_in == 1:
        return jnp.ones((n_out, 1), jnp.float32)
    src = jnp.arange(n_out, dtype=jnp.float32) * (n_in - 1) / (n_out - 1)
    i0 = jnp.clip(jnp.floor(src).astype(jnp.int32), 0, n_in - 1)
    i1 = jnp.clip(i0 + 1, 0, n_in - 1)
    frac = src - i0.astype(jnp.float32)
    return (jax.nn.one_hot(i0, n_in, dtype=jnp.float32) * (1.0 - frac)[:, None]
            + jax.nn.one_hot(i1, n_in, dtype=jnp.float32) * frac[:, None])


def _upsample_pad_matrix(h, w, pb):
    """(H*W, PB): maps an (H, W) plane to its 2x-upsampled, 1-pixel-zero-padded,
    row-major-flattened (row stride Wp = 2W+2) image of length PB."""
    h2, w2 = 2 * h, 2 * w
    hp, wp = h2 + 2, w2 + 2
    rmat = _interp_matrix(h, h2)       # (H2, H)
    cmat = _interp_matrix(w, w2)       # (W2, W)
    # up4[h, w, i, j] = rmat[i, h] * cmat[j, w]
    up4 = rmat.T[:, None, :, None] * cmat.T[None, :, None, :]   # (H, W, H2, W2)
    up4 = jnp.pad(up4, ((0, 0), (0, 0), (1, 1), (1, 1)))        # (H, W, Hp, Wp)
    up2 = up4.reshape(h * w, hp * wp)
    return jnp.pad(up2, ((0, 0), (0, pb - hp * wp)))            # (H*W, PB)


# ---------------------------------------------------------------------------
# DecoderBlock forward (NCHW in -> NCHW out)
# ---------------------------------------------------------------------------
def decoder_block_forward(x_nchw, skip_nchw, params):
    N, Cin, H, W = x_nchw.shape
    H2, W2 = 2 * H, 2 * W
    Hp, Wp = H2 + 2, W2 + 2
    LV = H2 * Wp                       # flat conv-output length (incl. 2 pad cols/row)
    PB = LV + 2 * Wp + 2               # padded-flat buffer length (covers max tap read)
    Cskip = 0 if skip_nchw is None else skip_nchw.shape[1]
    CinT = Cin + Cskip
    Cout = params["w1"].shape[-1]

    # NCHW maps directly onto the channel-major kernel layout (free reshape).
    x_flat = x_nchw.reshape(N, Cin, H * W).astype(jnp.float32)
    up_mat = _upsample_pad_matrix(H, W, PB)

    # Fold BN scale into the conv weights; keep the shift as a post-matmul bias.
    w1f = jnp.transpose(params["w1"] * params["scale1"][None, None, None, :],
                        (3, 0, 1, 2)).reshape(Cout, 9 * CinT).astype(jnp.float32)
    b1 = params["shift1"].reshape(Cout, 1).astype(jnp.float32)
    w2f = jnp.transpose(params["w2"] * params["scale2"][None, None, None, :],
                        (3, 0, 1, 2)).reshape(Cout, 9 * Cout).astype(jnp.float32)
    b2 = params["shift2"].reshape(Cout, 1).astype(jnp.float32)

    # Valid-column mask for the flat (row-stride Wp) conv output.
    pidx = jnp.arange(LV, dtype=jnp.int32)
    imask = ((pidx % Wp) < W2).astype(jnp.float32).reshape(1, LV)

    offsets = tuple(dy * Wp + dx for dy in range(3) for dx in range(3))
    kernel = functools.partial(
        _fused_decoder_kernel, n_batch=N, c_skip=Cskip,
        offsets=offsets, lv=LV, pad_shift=Wp + 1)

    inputs = [x_flat]
    if skip_nchw is not None:
        skip_p = jnp.pad(skip_nchw.astype(jnp.float32),
                         ((0, 0), (0, 0), (1, 1), (1, 1)))
        skip_flat = skip_p.reshape(N, Cskip, Hp * Wp)
        skip_flat = jnp.pad(skip_flat, ((0, 0), (0, 0), (0, PB - Hp * Wp)))
        inputs.append(skip_flat)
    inputs += [up_mat, w1f, b1, w2f, b2, imask]

    vmem = pl.BlockSpec(memory_space=pltpu.MemorySpace.VMEM)
    out_flat = pl.pallas_call(
        kernel,
        out_shape=jax.ShapeDtypeStruct((N, Cout, LV), jnp.float32),
        in_specs=[vmem] * len(inputs),
        out_specs=vmem,
        scratch_shapes=[pltpu.VMEM((Cout, PB), jnp.float32)],
    )(*inputs)

    # Lane-dense flat slab -> NCHW (drop the 2 padding columns per row).
    return out_flat.reshape(N, Cout, H2, Wp)[..., :W2]


# ---------------------------------------------------------------------------
# Pure-JAX reference (independent path: gather-based upsample + lax.conv)
# ---------------------------------------------------------------------------
def upsample_bilinear_2x(x_nhwc):
    N, H, W, C = x_nhwc.shape
    Ho, Wo = 2 * H, 2 * W

    def coords(n_in, n_out):
        if n_in == 1:
            z = jnp.zeros((n_out,), jnp.int32)
            return z, z, jnp.zeros((n_out,), jnp.float32)
        src = jnp.arange(n_out, dtype=jnp.float32) * (n_in - 1) / (n_out - 1)
        i0 = jnp.clip(jnp.floor(src).astype(jnp.int32), 0, n_in - 1)
        i1 = jnp.clip(i0 + 1, 0, n_in - 1)
        return i0, i1, src - i0.astype(jnp.float32)

    r0, r1, wr = coords(H, Ho)
    c0, c1, wc = coords(W, Wo)
    xr = (x_nhwc[:, r0] * (1.0 - wr)[None, :, None, None]
          + x_nhwc[:, r1] * wr[None, :, None, None])
    out = (xr[:, :, c0] * (1.0 - wc)[None, None, :, None]
           + xr[:, :, c1] * wc[None, None, :, None])
    return out


def _conv_ref(x_nhwc, w, scale, shift):
    y = jax.lax.conv_general_dilated(
        x_nhwc, w, window_strides=(1, 1), padding="SAME",
        dimension_numbers=("NHWC", "HWIO", "NHWC"))
    return jnp.maximum(y * scale[None, None, None, :]
                       + shift[None, None, None, :], 0.0)


def decoder_block_ref(x_nchw, skip_nchw, params):
    x = jnp.transpose(x_nchw, (0, 2, 3, 1))
    x = upsample_bilinear_2x(x)
    if skip_nchw is not None:
        x = jnp.concatenate([x, jnp.transpose(skip_nchw, (0, 2, 3, 1))], axis=-1)
    x = _conv_ref(x, params["w1"], params["scale1"], params["shift1"])
    x = _conv_ref(x, params["w2"], params["scale2"], params["shift2"])
    return jnp.transpose(x, (0, 3, 1, 2))


def _make_bn_affine(key, c):
    k1, k2, k3, k4 = jax.random.split(key, 4)
    gamma = 1.0 + 0.1 * jax.random.normal(k1, (c,), jnp.float32)
    beta = 0.1 * jax.random.normal(k2, (c,), jnp.float32)
    mean = 0.1 * jax.random.normal(k3, (c,), jnp.float32)
    var = jnp.abs(1.0 + 0.1 * jax.random.normal(k4, (c,), jnp.float32))
    scale = gamma / jnp.sqrt(var + _BN_EPS)
    shift = beta - mean * scale
    return scale, shift


if __name__ == "__main__":
    key = jax.random.PRNGKey(0)
    ks = jax.random.split(key, 8)

    # DecoderBlock(in_channels=4, out_channels=4, skip_channels=4)
    N, Cin, H, W = 2, 4, 16, 16
    Cskip, Cout = 4, 4

    x = jax.random.normal(ks[0], (N, Cin, H, W), jnp.float32)            # NCHW
    skip = jax.random.normal(ks[1], (N, Cskip, 2 * H, 2 * W), jnp.float32)

    # conv1: (Cin+Cskip) -> Cout, 3x3 ; conv2: Cout -> Cout, 3x3 (no bias)
    w1 = 0.1 * jax.random.normal(ks[2], (3, 3, Cin + Cskip, Cout), jnp.float32)
    w2 = 0.1 * jax.random.normal(ks[3], (3, 3, Cout, Cout), jnp.float32)
    scale1, shift1 = _make_bn_affine(ks[4], Cout)
    scale2, shift2 = _make_bn_affine(ks[5], Cout)
    params = dict(w1=w1, scale1=scale1, shift1=shift1,
                  w2=w2, scale2=scale2, shift2=shift2)

    out = jax.jit(decoder_block_forward)(x, skip, params)
    out = jax.block_until_ready(out)
    assert out.shape == (N, Cout, 2 * H, 2 * W), out.shape

    ref = jax.block_until_ready(decoder_block_ref(x, skip, params))
    assert jnp.allclose(out, ref, rtol=1e-3, atol=1e-3), \
        float(jnp.max(jnp.abs(out - ref)))

    print("KERNEL_OK")
</pallas_src>

<mosaic_0001>
module attributes {stable_mosaic.version = 11 : i64} {
  func.func @_fused_decoder_kernel(%arg0: memref<2x4x256xf32, #tpu.memory_space<vmem>>, %arg1: memref<2x4x1158xf32, #tpu.memory_space<vmem>>, %arg2: memref<256x1158xf32, #tpu.memory_space<vmem>>, %arg3: memref<4x72xf32, #tpu.memory_space<vmem>>, %arg4: memref<4x1xf32, #tpu.memory_space<vmem>>, %arg5: memref<4x36xf32, #tpu.memory_space<vmem>>, %arg6: memref<4x1xf32, #tpu.memory_space<vmem>>, %arg7: memref<1x1088xf32, #tpu.memory_space<vmem>>, %arg8: memref<2x4x1088xf32, #tpu.memory_space<vmem>>, %arg9: memref<4x1158xf32, #tpu.memory_space<vmem>>) attributes {dimension_semantics = [], scalar_prefetch = 0 : i64, scratch_operands = 1 : i64, tpu.core_type = #tpu.core_type<tc>} {
    %cst = arith.constant 0.000000e+00 : f32
    %0 = vector.broadcast %cst : f32 to vector<4x1158xf32>
    %c0 = arith.constant 0 : index
    %c0_0 = arith.constant 0 : index
    %1 = vector.load %arg9[%c0, %c0_0] : memref<4x1158xf32, #tpu.memory_space<vmem>>, vector<4x1158xf32>
    tpu.vector_store %arg9[%c0, %c0_0], %0 {strides = array<i32>} : memref<4x1158xf32, #tpu.memory_space<vmem>>, vector<4x1158xf32>,
    %c0_1 = arith.constant 0 : index
    %c0_2 = arith.constant 0 : index
    %2 = vector.load %arg2[%c0_1, %c0_2] : memref<256x1158xf32, #tpu.memory_space<vmem>>, vector<256x1158xf32>
    %c0_3 = arith.constant 0 : index
    %c0_4 = arith.constant 0 : index
    %3 = vector.load %arg3[%c0_3, %c0_4] : memref<4x72xf32, #tpu.memory_space<vmem>>, vector<4x72xf32>
    %c0_5 = arith.constant 0 : index
    %c0_6 = arith.constant 0 : index
    %4 = vector.load %arg4[%c0_5, %c0_6] : memref<4x1xf32, #tpu.memory_space<vmem>>, vector<4x1xf32>
    %c0_7 = arith.constant 0 : index
    %c0_8 = arith.constant 0 : index
    %5 = vector.load %arg5[%c0_7, %c0_8] : memref<4x36xf32, #tpu.memory_space<vmem>>, vector<4x36xf32>
    %c0_9 = arith.constant 0 : index
    %c0_10 = arith.constant 0 : index
    %6 = vector.load %arg6[%c0_9, %c0_10] : memref<4x1xf32, #tpu.memory_space<vmem>>, vector<4x1xf32>
    %c0_11 = arith.constant 0 : index
    %c0_12 = arith.constant 0 : index
    %7 = vector.load %arg7[%c0_11, %c0_12] : memref<1x1088xf32, #tpu.memory_space<vmem>>, vector<1x1088xf32>
    %c0_13 = arith.constant 0 : index
    %c0_14 = arith.constant 0 : index
    %c0_15 = arith.constant 0 : index
    %8 = vector.load %arg0[%c0_13, %c0_14, %c0_15] : memref<2x4x256xf32, #tpu.memory_space<vmem>>, vector<1x4x256xf32>
    %9 = vector.shape_cast %8 : vector<1x4x256xf32> to vector<4x256xf32>
    %cst_16 = arith.constant dense<0.000000e+00> : vector<4x1158xf32>
    %10 = tpu.matmul %9, %2, %cst_16 {dimension_numbers = #tpu.dot_dimension_numbers<[1], [0], [0], [1], [0, 0, 1, 1], [], []>} : vector<4x256xf32>, vector<256x1158xf32>, vector<4x1158xf32> -> vector<4x1158xf32>
    %c0_17 = arith.constant 0 : index
    %c0_18 = arith.constant 0 : index
    %c0_19 = arith.constant 0 : index
    %11 = vector.load %arg1[%c0_17, %c0_18, %c0_19] : memref<2x4x1158xf32, #tpu.memory_space<vmem>>, vector<1x4x1158xf32>
    %12 = vector.shape_cast %11 : vector<1x4x1158xf32> to vector<4x1158xf32>
    %13 = tpu.concatenate %10, %12 in 0 : vector<4x1158xf32>, vector<4x1158xf32> -> vector<8x1158xf32>
    %14 = vector.extract_strided_slice %13 {offsets = [0, 0], sizes = [8, 1088], strides = [1, 1]} : vector<8x1158xf32> to vector<8x1088xf32>
    %15 = vector.extract_strided_slice %13 {offsets = [0, 1], sizes = [8, 1088], strides = [1, 1]} : vector<8x1158xf32> to vector<8x1088xf32>
    %16 = vector.extract_strided_slice %13 {offsets = [0, 2], sizes = [8, 1088], strides = [1, 1]} : vector<8x1158xf32> to vector<8x1088xf32>
    %17 = vector.extract_strided_slice %13 {offsets = [0, 34], sizes = [8, 1088], strides = [1, 1]} : vector<8x1158xf32> to vector<8x1088xf32>
    %18 = vector.extract_strided_slice %13 {offsets = [0, 35], sizes = [8, 1088], strides = [1, 1]} : vector<8x1158xf32> to vector<8x1088xf32>
    %19 = vector.extract_strided_slice %13 {offsets = [0, 36], sizes = [8, 1088], strides = [1, 1]} : vector<8x1158xf32> to vector<8x1088xf32>
    %20 = vector.extract_strided_slice %13 {offsets = [0, 68], sizes = [8, 1088], strides = [1, 1]} : vector<8x1158xf32> to vector<8x1088xf32>
    %21 = vector.extract_strided_slice %13 {offsets = [0, 69], sizes = [8, 1088], strides = [1, 1]} : vector<8x1158xf32> to vector<8x1088xf32>
    %22 = vector.extract_strided_slice %13 {offsets = [0, 70], sizes = [8, 1088], strides = [1, 1]} : vector<8x1158xf32> to vector<8x1088xf32>
    %23 = tpu.concatenate %14, %15, %16, %17, %18, %19, %20, %21, %22 in 0 : vector<8x1088xf32>, vector<8x1088xf32>, vector<8x1088xf32>, vector<8x1088xf32>, vector<8x1088xf32>, vector<8x1088xf32>, vector<8x1088xf32>, vector<8x1088xf32>, vector<8x1088xf32> -> vector<72x1088xf32>
    %cst_20 = arith.constant dense<0.000000e+00> : vector<4x1088xf32>
    %24 = tpu.matmul %3, %23, %cst_20 {dimension_numbers = #tpu.dot_dimension_numbers<[1], [0], [0], [1], [0, 0, 1, 1], [], []>} : vector<4x72xf32>, vector<72x1088xf32>, vector<4x1088xf32> -> vector<4x1088xf32>
    %25 = vector.broadcast %4 : vector<4x1xf32> to vector<4x1088xf32>
    %26 = arith.addf %24, %25 : vector<4x1088xf32>
    %cst_21 = arith.constant 0.000000e+00 : f32
    %27 = vector.broadcast %cst_21 : f32 to vector<4x1088xf32>
    %28 = arith.maximumf %26, %27 : vector<4x1088xf32>
    %29 = vector.broadcast %7 : vector<1x1088xf32> to vector<4x1088xf32>
    %30 = arith.mulf %28, %29 : vector<4x1088xf32>
    %c0_22 = arith.constant 0 : index
    %c35 = arith.constant 35 : index
    %31 = vector.load %arg9[%c0_22, %c35] : memref<4x1158xf32, #tpu.memory_space<vmem>>, vector<4x1088xf32>
    tpu.vector_store %arg9[%c0_22, %c35], %30 {strides = array<i32>} : memref<4x1158xf32, #tpu.memory_space<vmem>>, vector<4x1088xf32>,
    %c0_23 = arith.constant 0 : index
    %c0_24 = arith.constant 0 : index
    %32 = vector.load %arg9[%c0_23, %c0_24] : memref<4x1158xf32, #tpu.memory_space<vmem>>, vector<4x1158xf32>
    %33 = vector.extract_strided_slice %32 {offsets = [0, 0], sizes = [4, 1088], strides = [1, 1]} : vector<4x1158xf32> to vector<4x1088xf32>
    %34 = vector.extract_strided_slice %32 {offsets = [0, 1], sizes = [4, 1088], strides = [1, 1]} : vector<4x1158xf32> to vector<4x1088xf32>
    %35 = vector.extract_strided_slice %32 {offsets = [0, 2], sizes = [4, 1088], strides = [1, 1]} : vector<4x1158xf32> to vector<4x1088xf32>
    %36 = vector.extract_strided_slice %32 {offsets = [0, 34], sizes = [4, 1088], strides = [1, 1]} : vector<4x1158xf32> to vector<4x1088xf32>
    %37 = vector.extract_strided_slice %32 {offsets = [0, 35], sizes = [4, 1088], strides = [1, 1]} : vector<4x1158xf32> to vector<4x1088xf32>
    %38 = vector.extract_strided_slice %32 {offsets = [0, 36], sizes = [4, 1088], strides = [1, 1]} : vector<4x1158xf32> to vector<4x1088xf32>
    %39 = vector.extract_strided_slice %32 {offsets = [0, 68], sizes = [4, 1088], strides = [1, 1]} : vector<4x1158xf32> to vector<4x1088xf32>
    %40 = vector.extract_strided_slice %32 {offsets = [0, 69], sizes = [4, 1088], strides = [1, 1]} : vector<4x1158xf32> to vector<4x1088xf32>
    %41 = vector.extract_strided_slice %32 {offsets = [0, 70], sizes = [4, 1088], strides = [1, 1]} : vector<4x1158xf32> to vector<4x1088xf32>
    %42 = tpu.concatenate %33, %34, %35, %36, %37, %38, %39, %40, %41 in 0 : vector<4x1088xf32>, vector<4x1088xf32>, vector<4x1088xf32>, vector<4x1088xf32>, vector<4x1088xf32>, vector<4x1088xf32>, vector<4x1088xf32>, vector<4x1088xf32>, vector<4x1088xf32> -> vector<36x1088xf32>
    %cst_25 = arith.constant dense<0.000000e+00> : vector<4x1088xf32>
    %43 = tpu.matmul %5, %42, %cst_25 {dimension_numbers = #tpu.dot_dimension_numbers<[1], [0], [0], [1], [0, 0, 1, 1], [], []>} : vector<4x36xf32>, vector<36x1088xf32>, vector<4x1088xf32> -> vector<4x1088xf32>
    %44 = vector.broadcast %6 : vector<4x1xf32> to vector<4x1088xf32>
    %45 = arith.addf %43, %44 : vector<4x1088xf32>
    %cst_26 = arith.constant 0.000000e+00 : f32
    %46 = vector.broadcast %cst_26 : f32 to vector<4x1088xf32>
    %47 = arith.maximumf %45, %46 : vector<4x1088xf32>
    %c0_27 = arith.constant 0 : index
    %c0_28 = arith.constant 0 : index
    %c0_29 = arith.constant 0 : index
    %48 = vector.load %arg8[%c0_27, %c0_28, %c0_29] : memref<2x4x1088xf32, #tpu.memory_space<vmem>>, vector<1x4x1088xf32>
    %49 = vector.shape_cast %48 : vector<1x4x1088xf32> to vector<4x1088xf32>
    %50 = vector.shape_cast %47 : vector<4x1088xf32> to vector<1x4x1088xf32>
    tpu.vector_store %arg8[%c0_27, %c0_28, %c0_29], %50 {strides = array<i32>} : memref<2x4x1088xf32, #tpu.memory_space<vmem>>, vector<1x4x1088xf32>,
    %c1 = arith.constant 1 : index
    %c0_30 = arith.constant 0 : index
    %c0_31 = arith.constant 0 : index
    %51 = vector.load %arg0[%c1, %c0_30, %c0_31] : memref<2x4x256xf32, #tpu.memory_space<vmem>>, vector<1x4x256xf32>
    %52 = vector.shape_cast %51 : vector<1x4x256xf32> to vector<4x256xf32>
    %cst_32 = arith.constant dense<0.000000e+00> : vector<4x1158xf32>
    %53 = tpu.matmul %52, %2, %cst_32 {dimension_numbers = #tpu.dot_dimension_numbers<[1], [0], [0], [1], [0, 0, 1, 1], [], []>} : vector<4x256xf32>, vector<256x1158xf32>, vector<4x1158xf32> -> vector<4x1158xf32>
    %c1_33 = arith.constant 1 : index
    %c0_34 = arith.constant 0 : index
    %c0_35 = arith.constant 0 : index
    %54 = vector.load %arg1[%c1_33, %c0_34, %c0_35] : memref<2x4x1158xf32, #tpu.memory_space<vmem>>, vector<1x4x1158xf32>
    %55 = vector.shape_cast %54 : vector<1x4x1158xf32> to vector<4x1158xf32>
    %56 = tpu.concatenate %53, %55 in 0 : vector<4x1158xf32>, vector<4x1158xf32> -> vector<8x1158xf32>
    %57 = vector.extract_strided_slice %56 {offsets = [0, 0], sizes = [8, 1088], strides = [1, 1]} : vector<8x1158xf32> to vector<8x1088xf32>
    %58 = vector.extract_strided_slice %56 {offsets = [0, 1], sizes = [8, 1088], strides = [1, 1]} : vector<8x1158xf32> to vector<8x1088xf32>
    %59 = vector.extract_strided_slice %56 {offsets = [0, 2], sizes = [8, 1088], strides = [1, 1]} : vector<8x1158xf32> to vector<8x1088xf32>
    %60 = vector.extract_strided_slice %56 {offsets = [0, 34], sizes = [8, 1088], strides = [1, 1]} : vector<8x1158xf32> to vector<8x1088xf32>
    %61 = vector.extract_strided_slice %56 {offsets = [0, 35], sizes = [8, 1088], strides = [1, 1]} : vector<8x1158xf32> to vector<8x1088xf32>
    %62 = vector.extract_strided_slice %56 {offsets = [0, 36], sizes = [8, 1088], strides = [1, 1]} : vector<8x1158xf32> to vector<8x1088xf32>
    %63 = vector.extract_strided_slice %56 {offsets = [0, 68], sizes = [8, 1088], strides = [1, 1]} : vector<8x1158xf32> to vector<8x1088xf32>
    %64 = vector.extract_strided_slice %56 {offsets = [0, 69], sizes = [8, 1088], strides = [1, 1]} : vector<8x1158xf32> to vector<8x1088xf32>
    %65 = vector.extract_strided_slice %56 {offsets = [0, 70], sizes = [8, 1088], strides = [1, 1]} : vector<8x1158xf32> to vector<8x1088xf32>
    %66 = tpu.concatenate %57, %58, %59, %60, %61, %62, %63, %64, %65 in 0 : vector<8x1088xf32>, vector<8x1088xf32>, vector<8x1088xf32>, vector<8x1088xf32>, vector<8x1088xf32>, vector<8x1088xf32>, vector<8x1088xf32>, vector<8x1088xf32>, vector<8x1088xf32> -> vector<72x1088xf32>
    %cst_36 = arith.constant dense<0.000000e+00> : vector<4x1088xf32>
    %67 = tpu.matmul %3, %66, %cst_36 {dimension_numbers = #tpu.dot_dimension_numbers<[1], [0], [0], [1], [0, 0, 1, 1], [], []>} : vector<4x72xf32>, vector<72x1088xf32>, vector<4x1088xf32> -> vector<4x1088xf32>
    %68 = vector.broadcast %4 : vector<4x1xf32> to vector<4x1088xf32>
    %69 = arith.addf %67, %68 : vector<4x1088xf32>
    %cst_37 = arith.constant 0.000000e+00 : f32
    %70 = vector.broadcast %cst_37 : f32 to vector<4x1088xf32>
    %71 = arith.maximumf %69, %70 : vector<4x1088xf32>
    %72 = vector.broadcast %7 : vector<1x1088xf32> to vector<4x1088xf32>
    %73 = arith.mulf %71, %72 : vector<4x1088xf32>
    %c0_38 = arith.constant 0 : index
    %c35_39 = arith.constant 35 : index
    %74 = vector.load %arg9[%c0_38, %c35_39] : memref<4x1158xf32, #tpu.memory_space<vmem>>, vector<4x1088xf32>
    tpu.vector_store %arg9[%c0_38, %c35_39], %73 {strides = array<i32>} : memref<4x1158xf32, #tpu.memory_space<vmem>>, vector<4x1088xf32>,
    %c0_40 = arith.constant 0 : index
    %c0_41 = arith.constant 0 : index
    %75 = vector.load %arg9[%c0_40, %c0_41] : memref<4x1158xf32, #tpu.memory_space<vmem>>, vector<4x1158xf32>
    %76 = vector.extract_strided_slice %75 {offsets = [0, 0], sizes = [4, 1088], strides = [1, 1]} : vector<4x1158xf32> to vector<4x1088xf32>
    %77 = vector.extract_strided_slice %75 {offsets = [0, 1], sizes = [4, 1088], strides = [1, 1]} : vector<4x1158xf32> to vector<4x1088xf32>
    %78 = vector.extract_strided_slice %75 {offsets = [0, 2], sizes = [4, 1088], strides = [1, 1]} : vector<4x1158xf32> to vector<4x1088xf32>
    %79 = vector.extract_strided_slice %75 {offsets = [0, 34], sizes = [4, 1088], strides = [1, 1]} : vector<4x1158xf32> to vector<4x1088xf32>
    %80 = vector.extract_strided_slice %75 {offsets = [0, 35], sizes = [4, 1088], strides = [1, 1]} : vector<4x1158xf32> to vector<4x1088xf32>
    %81 = vector.extract_strided_slice %75 {offsets = [0, 36], sizes = [4, 1088], strides = [1, 1]} : vector<4x1158xf32> to vector<4x1088xf32>
    %82 = vector.extract_strided_slice %75 {offsets = [0, 68], sizes = [4, 1088], strides = [1, 1]} : vector<4x1158xf32> to vector<4x1088xf32>
    %83 = vector.extract_strided_slice %75 {offsets = [0, 69], sizes = [4, 1088], strides = [1, 1]} : vector<4x1158xf32> to vector<4x1088xf32>
    %84 = vector.extract_strided_slice %75 {offsets = [0, 70], sizes = [4, 1088], strides = [1, 1]} : vector<4x1158xf32> to vector<4x1088xf32>
    %85 = tpu.concatenate %76, %77, %78, %79, %80, %81, %82, %83, %84 in 0 : vector<4x1088xf32>, vector<4x1088xf32>, vector<4x1088xf32>, vector<4x1088xf32>, vector<4x1088xf32>, vector<4x1088xf32>, vector<4x1088xf32>, vector<4x1088xf32>, vector<4x1088xf32> -> vector<36x1088xf32>
    %cst_42 = arith.constant dense<0.000000e+00> : vector<4x1088xf32>
    %86 = tpu.matmul %5, %85, %cst_42 {dimension_numbers = #tpu.dot_dimension_numbers<[1], [0], [0], [1], [0, 0, 1, 1], [], []>} : vector<4x36xf32>, vector<36x1088xf32>, vector<4x1088xf32> -> vector<4x1088xf32>
    %87 = vector.broadcast %6 : vector<4x1xf32> to vector<4x1088xf32>
    %88 = arith.addf %86, %87 : vector<4x1088xf32>
    %cst_43 = arith.constant 0.000000e+00 : f32
    %89 = vector.broadcast %cst_43 : f32 to vector<4x1088xf32>
    %90 = arith.maximumf %88, %89 : vector<4x1088xf32>
    %c1_44 = arith.constant 1 : index
    %c0_45 = arith.constant 0 : index
    %c0_46 = arith.constant 0 : index
    %91 = vector.load %arg8[%c1_44, %c0_45, %c0_46] : memref<2x4x1088xf32, #tpu.memory_space<vmem>>, vector<1x4x1088xf32>
    %92 = vector.shape_cast %91 : vector<1x4x1088xf32> to vector<4x1088xf32>
    %93 = vector.shape_cast %90 : vector<4x1088xf32> to vector<1x4x1088xf32>
    tpu.vector_store %arg8[%c1_44, %c0_45, %c0_46], %93 {strides = array<i32>} : memref<2x4x1088xf32, #tpu.memory_space<vmem>>, vector<1x4x1088xf32>,
    return
  }
}

</mosaic_0001>

<llo_original>
// kernel: decoder_block_forward.1
$region0: #{decoder_block_forward.1}
  #allocation0 [shape = 'u32[]', space=smem, size = 0x4, offset = 0x4, fixed_abs, tag = 'smem constant byte address 0x4 - core index']
  #allocation1 [shape = 'u32[72,128]{1,0:T(1,128)}', space=vmem, size = 0x9000, scoped, tag = 'internal scratch']
  #allocation2 [shape = 'f32[4,1158]{1,0:T(4,128)}', space=vmem, size = 0x5000, scoped, tag = 'scratch operand']
  %s0 = inlined_call_operand.vmem [shape: f32[2,4,256], index: 0, kind: input, shape index: {}]
  %s1 = inlined_call_operand.vmem [shape: f32[2,4,1158], index: 1, kind: input, shape index: {}]
  %s2 = inlined_call_operand.vmem [shape: f32[256,1158], index: 2, kind: input, shape index: {}]
  %s3 = inlined_call_operand.vmem [shape: f32[4,72], index: 3, kind: input, shape index: {}]
  %s4 = inlined_call_operand.vmem [shape: f32[4,1], index: 4, kind: input, shape index: {}]
  %s5 = inlined_call_operand.vmem [shape: f32[4,36], index: 5, kind: input, shape index: {}]
  %s6 = inlined_call_operand.vmem [shape: f32[4,1], index: 6, kind: input, shape index: {}]
  %s7 = inlined_call_operand.vmem [shape: f32[1,1088], index: 7, kind: input, shape index: {}]
  %s8 = inlined_call_operand.vmem [shape: f32[2,4,1088], index: 8, kind: output, shape index: {}]
  %s9 = sld [smem:[#allocation0]]
  $region42: #{decoder_block_forward.1} parent=0
    _
  %s11 = ssub.s32 1, %s9
  %s12 = scalar_select 0, %s11, %s9
  // Predicated region
  $region2: #{decoder_block_forward.1} parent=0 // pred_check
    _
  $region3: #{decoder_block_forward.1} parent=0 // pred_check_branch
    %14 = sbr.rel (0) target = $region5
  $region4: #{decoder_block_forward.1} parent=0 // pred_region
    _
  $region5: #{decoder_block_forward.1} parent=0 // pred_fallthru
    _
  // Predicated region
  $region6: #{decoder_block_forward.1} parent=0 // pred_check
    _
  $region7: #{decoder_block_forward.1} parent=0 // pred_check_branch
    %16 = sbr.rel (0) target = $region9
  $region8: #{decoder_block_forward.1} parent=0 // pred_region
    _
  $region9: #{decoder_block_forward.1} parent=0 // pred_fallthru
    _
  // Predicated region
  $region10: #{decoder_block_forward.1} parent=0 // pred_check
    _
  $region11: #{decoder_block_forward.1} parent=0 // pred_check_branch
    %18 = sbr.rel (0) target = $region13
  $region12: #{decoder_block_forward.1} parent=0 // pred_region
    _
  $region13: #{decoder_block_forward.1} parent=0 // pred_fallthru
    _
  // Predicated region
  $region14: #{decoder_block_forward.1} parent=0 // pred_check
    _
  $region15: #{decoder_block_forward.1} parent=0 // pred_check_branch
    %20 = sbr.rel (0) target = $region17
  $region16: #{decoder_block_forward.1} parent=0 // pred_region
    _
  $region17: #{decoder_block_forward.1} parent=0 // pred_fallthru
    _
  // Predicated region
  $region18: #{decoder_block_forward.1} parent=0 // pred_check
    _
  $region19: #{decoder_block_forward.1} parent=0 // pred_check_branch
    %22 = sbr.rel (0) target = $region21
  $region20: #{decoder_block_forward.1} parent=0 // pred_region
    _
  $region21: #{decoder_block_forward.1} parent=0 // pred_fallthru
    _
  // Predicated region
  $region22: #{decoder_block_forward.1} parent=0 // pred_check
    _
  $region23: #{decoder_block_forward.1} parent=0 // pred_check_branch
    %24 = sbr.rel (0) target = $region25
  $region24: #{decoder_block_forward.1} parent=0 // pred_region
    _
  $region25: #{decoder_block_forward.1} parent=0 // pred_fallthru
    _
  // Predicated region
  $region26: #{decoder_block_forward.1} parent=0 // pred_check
    _
  $region27: #{decoder_block_forward.1} parent=0 // pred_check_branch
    %26 = sbr.rel (0) target = $region29
  $region28: #{decoder_block_forward.1} parent=0 // pred_region
    _
  $region29: #{decoder_block_forward.1} parent=0 // pred_fallthru
    _
  // Predicated region
  $region30: #{decoder_block_forward.1} parent=0 // pred_check
    _
  $region31: #{decoder_block_forward.1} parent=0 // pred_check_branch
    %28 = sbr.rel (0) target = $region33
  $region32: #{decoder_block_forward.1} parent=0 // pred_region
    _
  $region33: #{decoder_block_forward.1} parent=0 // pred_fallthru
    _
  %29 = vst [vmem:[#allocation2] sm:$0xff] 0.0
  %30 = vst [vmem:[#allocation2 + $0x8] sm:$0xff] 0.0
  %31 = vst [vmem:[#allocation2 + $0x10] sm:$0xff] 0.0
  %32 = vst [vmem:[#allocation2 + $0x18] sm:$0xff] 0.0
  %vm33 = vcmask 1043456
  %vm34 = vcmask 48132
  %vm35 = vmor %vm34, %vm33
  %36 = vst.msk [vmem:[#allocation2 + $0x20] sm:$0xff] %vm35, 0.0
  %v37 = vld [vmem:[%s2] sm:$0xff]
  %v38 = vld [vmem:[%s2 + $0x8] sm:$0xff]
  %v39 = vld [vmem:[%s2 + $0x10] sm:$0xff]
  %v40 = vld [vmem:[%s2 + $0x18] sm:$0xff]
  %v41 = vld [vmem:[%s2 + $0x20] sm:$0xff]
  %v42 = vld [vmem:[%s2 + $0x28] sm:$0xff]
  %v43 = vld [vmem:[%s2 + $0x30] sm:$0xff]
  %v44 = vld [vmem:[%s2 + $0x38] sm:$0xff]
  %v45 = vld [vmem:[%s2 + $0x40] sm:$0xff]
  %v46 = vld [vmem:[%s2 + $0x48] sm:$0xff]
  %v47 = vld [vmem:[%s2 + $0x50] sm:$0xff]
  %v48 = vld [vmem:[%s2 + $0x58] sm:$0xff]
  %v49 = vld [vmem:[%s2 + $0x60] sm:$0xff]
  %v50 = vld [vmem:[%s2 + $0x68] sm:$0xff]
  %v51 = vld [vmem:[%s2 + $0x70] sm:$0xff]
  %v52 = vld [vmem:[%s2 + $0x78] sm:$0xff]
  %v53 = vld [vmem:[%s2 + $0x80] sm:$0xff]
  %v54 = vld [vmem:[%s2 + $0x88] sm:$0xff]
  %v55 = vld [vmem:[%s2 + $0x90] sm:$0xff]
  %v56 = vld [vmem:[%s2 + $0x98] sm:$0xff]
  %v57 = vld [vmem:[%s2 + $0xa0] sm:$0xff]
  %v58 = vld [vmem:[%s2 + $0xa8] sm:$0xff]
  %v59 = vld [vmem:[%s2 + $0xb0] sm:$0xff]
  %v60 = vld [vmem:[%s2 + $0xb8] sm:$0xff]
  %v61 = vld [vmem:[%s2 + $0xc0] sm:$0xff]
  %v62 = vld [vmem:[%s2 + $0xc8] sm:$0xff]
  %v63 = vld [vmem:[%s2 + $0xd0] sm:$0xff]
  %v64 = vld [vmem:[%s2 + $0xd8] sm:$0xff]
  %v65 = vld [vmem:[%s2 + $0xe0] sm:$0xff]
  %v66 = vld [vmem:[%s2 + $0xe8] sm:$0xff]
  %v67 = vld [vmem:[%s2 + $0xf0] sm:$0xff]
  %v68 = vld [vmem:[%s2 + $0xf8] sm:$0xff]
  %v69 = vld [vmem:[%s2 + $0x100] sm:$0xff]
  %v70 = vld [vmem:[%s2 + $0x108] sm:$0xff]
  %v71 = vld [vmem:[%s2 + $0x110] sm:$0xff]
  %v72 = vld [vmem:[%s2 + $0x118] sm:$0xff]
  %v73 = vld [vmem:[%s2 + $0x120] sm:$0xff]
  %v74 = vld [vmem:[%s2 + $0x128] sm:$0xff]
  %v75 = vld [vmem:[%s2 + $0x130] sm:$0xff]
  %v76 = vld [vmem:[%s2 + $0x138] sm:$0xff]
  %v77 = vld [vmem:[%s2 + $0x140] sm:$0xff]
  %v78 = vld [vmem:[%s2 + $0x148] sm:$0xff]
  %v79 = vld [vmem:[%s2 + $0x150] sm:$0xff]
  %v80 = vld [vmem:[%s2 + $0x158] sm:$0xff]
  %v81 = vld [vmem:[%s2 + $0x160] sm:$0xff]
  %v82 = vld [vmem:[%s2 + $0x168] sm:$0xff]
  %v83 = vld [vmem:[%s2 + $0x170] sm:$0xff]
  %v84 = vld [vmem:[%s2 + $0x178] sm:$0xff]
  %v85 = vld [vmem:[%s2 + $0x180] sm:$0xff]
  %v86 = vld [vmem:[%s2 + $0x188] sm:$0xff]
  %v87 = vld [vmem:[%s2 + $0x190] sm:$0xff]
  %v88 = vld [vmem:[%s2 + $0x198] sm:$0xff]
  %v89 = vld [vmem:[%s2 + $0x1a0] sm:$0xff]
  %v90 = vld [vmem:[%s2 + $0x1a8] sm:$0xff]
  %v91 = vld [vmem:[%s2 + $0x1b0] sm:$0xff]
  %v92 = vld [vmem:[%s2 + $0x1b8] sm:$0xff]
  %v93 = vld [vmem:[%s2 + $0x1c0] sm:$0xff]
  %v94 = vld [vmem:[%s2 + $0x1c8] sm:$0xff]
  %v95 = vld [vmem:[%s2 + $0x1d0] sm:$0xff]
  %v96 = vld [vmem:[%s2 + $0x1d8] sm:$0xff]
  %v97 = vld [vmem:[%s2 + $0x1e0] sm:$0xff]
  %v98 = vld [vmem:[%s2 + $0x1e8] sm:$0xff]
  %v99 = vld [vmem:[%s2 + $0x1f0] sm:$0xff]
  %v100 = vld [vmem:[%s2 + $0x1f8] sm:$0xff]
  %v101 = vld [vmem:[%s2 + $0x200] sm:$0xff]
  %v102 = vld [vmem:[%s2 + $0x208] sm:$0xff]
  %v103 = vld [vmem:[%s2 + $0x210] sm:$0xff]
  %v104 = vld [vmem:[%s2 + $0x218] sm:$0xff]
  %v105 = vld [vmem:[%s2 + $0x220] sm:$0xff]
  %v106 = vld [vmem:[%s2 + $0x228] sm:$0xff]
  %v107 = vld [vmem:[%s2 + $0x230] sm:$0xff]
  %v108 = vld [vmem:[%s2 + $0x238] sm:$0xff]
  %v109 = vld [vmem:[%s2 + $0x240] sm:$0xff]
  %v110 = vld [vmem:[%s2 + $0x248] sm:$0xff]
  %v111 = vld [vmem:[%s2 + $0x250] sm:$0xff]
  %v112 = vld [vmem:[%s2 + $0x258] sm:$0xff]
  %v113 = vld [vmem:[%s2 + $0x260] sm:$0xff]
  %v114 = vld [vmem:[%s2 + $0x268] sm:$0xff]
  %v115 = vld [vmem:[%s2 + $0x270] sm:$0xff]
  %v116 = vld [vmem:[%s2 + $0x278] sm:$0xff]
  %v117 = vld [vmem:[%s2 + $0x280] sm:$0xff]
  %v118 = vld [vmem:[%s2 + $0x288] sm:$0xff]
  %v119 = vld [vmem:[%s2 + $0x290] sm:$0xff]
  %v120 = vld [vmem:[%s2 + $0x298] sm:$0xff]
  %v121 = vld [vmem:[%s2 + $0x2a0] sm:$0xff]
  %v122 = vld [vmem:[%s2 + $0x2a8] sm:$0xff]
  %v123 = vld [vmem:[%s2 + $0x2b0] sm:$0xff]
  %v124 = vld [vmem:[%s2 + $0x2b8] sm:$0xff]
  %v125 = vld [vmem:[%s2 + $0x2c0] sm:$0xff]
  %v126 = vld [vmem:[%s2 + $0x2c8] sm:$0xff]
  %v127 = vld [vmem:[%s2 + $0x2d0] sm:$0xff]
  %v128 = vld [vmem:[%s2 + $0x2d8] sm:$0xff]
  %v129 = vld [vmem:[%s2 + $0x2e0] sm:$0xff]
  %v130 = vld [vmem:[%s2 + $0x2e8] sm:$0xff]
  %v131 = vld [vmem:[%s2 + $0x2f0] sm:$0xff]
  %v132 = vld [vmem:[%s2 + $0x2f8] sm:$0xff]
  %v133 = vld [vmem:[%s2 + $0x300] sm:$0xff]
  %v134 = vld [vmem:[%s2 + $0x308] sm:$0xff]
  %v135 = vld [vmem:[%s2 + $0x310] sm:$0xff]
  %v136 = vld [vmem:[%s2 + $0x318] sm:$0xff]
  %v137 = vld [vmem:[%s2 + $0x320] sm:$0xff]
  %v138 = vld [vmem:[%s2 + $0x328] sm:$0xff]
  %v139 = vld [vmem:[%s2 + $0x330] sm:$0xff]
  %v140 = vld [vmem:[%s2 + $0x338] sm:$0xff]
  %v141 = vld [vmem:[%s2 + $0x340] sm:$0xff]
  %v142 = vld [vmem:[%s2 + $0x348] sm:$0xff]
  %v143 = vld [vmem:[%s2 + $0x350] sm:$0xff]
  %v144 = vld [vmem:[%s2 + $0x358] sm:$0xff]
  %v145 = vld [vmem:[%s2 + $0x360] sm:$0xff]
  %v146 = vld [vmem:[%s2 + $0x368] sm:$0xff]
  %v147 = vld [vmem:[%s2 + $0x370] sm:$0xff]
  %v148 = vld [vmem:[%s2 + $0x378] sm:$0xff]
  %v149 = vld [vmem:[%s2 + $0x380] sm:$0xff]
  %v150 = vld [vmem:[%s2 + $0x388] sm:$0xff]
  %v151 = vld [vmem:[%s2 + $0x390] sm:$0xff]
  %v152 = vld [vmem:[%s2 + $0x398] sm:$0xff]
  %v153 = vld [vmem:[%s2 + $0x3a0] sm:$0xff]
  %v154 = vld [vmem:[%s2 + $0x3a8] sm:$0xff]
  %v155 = vld [vmem:[%s2 + $0x3b0] sm:$0xff]
  %v156 = vld [vmem:[%s2 + $0x3b8] sm:$0xff]
  %v157 = vld [vmem:[%s2 + $0x3c0] sm:$0xff]
  %v158 = vld [vmem:[%s2 + $0x3c8] sm:$0xff]
  %v159 = vld [vmem:[%s2 + $0x3d0] sm:$0xff]
  %v160 = vld [vmem:[%s2 + $0x3d8] sm:$0xff]
  %v161 = vld [vmem:[%s2 + $0x3e0] sm:$0xff]
  %v162 = vld [vmem:[%s2 + $0x3e8] sm:$0xff]
  %v163 = vld [vmem:[%s2 + $0x3f0] sm:$0xff]
  %v164 = vld [vmem:[%s2 + $0x3f8] sm:$0xff]
  %v165 = vld [vmem:[%s2 + $0x400] sm:$0xff]
  %v166 = vld [vmem:[%s2 + $0x408] sm:$0xff]
  %v167 = vld [vmem:[%s2 + $0x410] sm:$0xff]
  %v168 = vld [vmem:[%s2 + $0x418] sm:$0xff]
  %v169 = vld [vmem:[%s2 + $0x420] sm:$0xff]
  %v170 = vld [vmem:[%s2 + $0x428] sm:$0xff]
  %v171 = vld [vmem:[%s2 + $0x430] sm:$0xff]
  %v172 = vld [vmem:[%s2 + $0x438] sm:$0xff]
  %v173 = vld [vmem:[%s2 + $0x440] sm:$0xff]
  %v174 = vld [vmem:[%s2 + $0x448] sm:$0xff]
  %v175 = vld [vmem:[%s2 + $0x450] sm:$0xff]
  %v176 = vld [vmem:[%s2 + $0x458] sm:$0xff]
  %v177 = vld [vmem:[%s2 + $0x460] sm:$0xff]
  %v178 = vld [vmem:[%s2 + $0x468] sm:$0xff]
  %v179 = vld [vmem:[%s2 + $0x470] sm:$0xff]
  %v180 = vld [vmem:[%s2 + $0x478] sm:$0xff]
  %v181 = vld [vmem:[%s2 + $0x480] sm:$0xff]
  %v182 = vld [vmem:[%s2 + $0x488] sm:$0xff]
  %v183 = vld [vmem:[%s2 + $0x490] sm:$0xff]
  %v184 = vld [vmem:[%s2 + $0x498] sm:$0xff]
  %v185 = vld [vmem:[%s2 + $0x4a0] sm:$0xff]
  %v186 = vld [vmem:[%s2 + $0x4a8] sm:$0xff]
  %v187 = vld [vmem:[%s2 + $0x4b0] sm:$0xff]
  %v188 = vld [vmem:[%s2 + $0x4b8] sm:$0xff]
  %v189 = vld [vmem:[%s2 + $0x4c0] sm:$0xff]
  %v190 = vld [vmem:[%s2 + $0x4c8] sm:$0xff]
  %v191 = vld [vmem:[%s2 + $0x4d0] sm:$0xff]
  %v192 = vld [vmem:[%s2 + $0x4d8] sm:$0xff]
  %v193 = vld [vmem:[%s2 + $0x4e0] sm:$0xff]
  %v194 = vld [vmem:[%s2 + $0x4e8] sm:$0xff]
  %v195 = vld [vmem:[%s2 + $0x4f0] sm:$0xff]
  %v196 = vld [vmem:[%s2 + $0x4f8] sm:$0xff]
  %v197 = vld [vmem:[%s2 + $0x500] sm:$0xff]
  %v198 = vld [vmem:[%s2 + $0x508] sm:$0xff]
  %v199 = vld [vmem:[%s2 + $0x510] sm:$0xff]
  %v200 = vld [vmem:[%s2 + $0x518] sm:$0xff]
  %v201 = vld [vmem:[%s2 + $0x520] sm:$0xff]
  %v202 = vld [vmem:[%s2 + $0x528] sm:$0xff]
  %v203 = vld [vmem:[%s2 + $0x530] sm:$0xff]
  %v204 = vld [vmem:[%s2 + $0x538] sm:$0xff]
  %v205 = vld [vmem:[%s2 + $0x540] sm:$0xff]
  %v206 = vld [vmem:[%s2 + $0x548] sm:$0xff]
  %v207 = vld [vmem:[%s2 + $0x550] sm:$0xff]
  %v208 = vld [vmem:[%s2 + $0x558] sm:$0xff]
  %v209 = vld [vmem:[%s2 + $0x560] sm:$0xff]
  %v210 = vld [vmem:[%s2 + $0x568] sm:$0xff]
  %v211 = vld [vmem:[%s2 + $0x570] sm:$0xff]
  %v212 = vld [vmem:[%s2 + $0x578] sm:$0xff]
  %v213 = vld [vmem:[%s2 + $0x580] sm:$0xff]
  %v214 = vld [vmem:[%s2 + $0x588] sm:$0xff]
  %v215 = vld [vmem:[%s2 + $0x590] sm:$0xff]
  %v216 = vld [vmem:[%s2 + $0x598] sm:$0xff]
  %v217 = vld [vmem:[%s2 + $0x5a0] sm:$0xff]
  %v218 = vld [vmem:[%s2 + $0x5a8] sm:$0xff]
  %v219 = vld [vmem:[%s2 + $0x5b0] sm:$0xff]
  %v220 = vld [vmem:[%s2 + $0x5b8] sm:$0xff]
  %v221 = vld [vmem:[%s2 + $0x5c0] sm:$0xff]
  %v222 = vld [vmem:[%s2 + $0x5c8] sm:$0xff]
  %v223 = vld [vmem:[%s2 + $0x5d0] sm:$0xff]
  %v224 = vld [vmem:[%s2 + $0x5d8] sm:$0xff]
  %v225 = vld [vmem:[%s2 + $0x5e0] sm:$0xff]
  %v226 = vld [vmem:[%s2 + $0x5e8] sm:$0xff]
  %v227 = vld [vmem:[%s2 + $0x5f0] sm:$0xff]
  %v228 = vld [vmem:[%s2 + $0x5f8] sm:$0xff]
  %v229 = vld [vmem:[%s2 + $0x600] sm:$0xff]
  %v230 = vld [vmem:[%s2 + $0x608] sm:$0xff]
  %v231 = vld [vmem:[%s2 + $0x610] sm:$0xff]
  %v232 = vld [vmem:[%s2 + $0x618] sm:$0xff]
  %v233 = vld [vmem:[%s2 + $0x620] sm:$0xff]
  %v234 = vld [vmem:[%s2 + $0x628] sm:$0xff]
  %v235 = vld [vmem:[%s2 + $0x630] sm:$0xff]
  %v236 = vld [vmem:[%s2 + $0x638] sm:$0xff]
  %v237 = vld [vmem:[%s2 + $0x640] sm:$0xff]
  %v238 = vld [vmem:[%s2 + $0x648] sm:$0xff]
  %v239 = vld [vmem:[%s2 + $0x650] sm:$0xff]
  %v240 = vld [vmem:[%s2 + $0x658] sm:$0xff]
  %v241 = vld [vmem:[%s2 + $0x660] sm:$0xff]
  %v242 = vld [vmem:[%s2 + $0x668] sm:$0xff]
  %v243 = vld [vmem:[%s2 + $0x670] sm:$0xff]
  %v244 = vld [vmem:[%s2 + $0x678] sm:$0xff]
  %v245 = vld [vmem:[%s2 + $0x680] sm:$0xff]
  %v246 = vld [vmem:[%s2 + $0x688] sm:$0xff]
  %v247 = vld [vmem:[%s2 + $0x690] sm:$0xff]
  %v248 = vld [vmem:[%s2 + $0x698] sm:$0xff]
  %v249 = vld [vmem:[%s2 + $0x6a0] sm:$0xff]
  %v250 = vld [vmem:[%s2 + $0x6a8] sm:$0xff]
  %v251 = vld [vmem:[%s2 + $0x6b0] sm:$0xff]
  %v252 = vld [vmem:[%s2 + $0x6b8] sm:$0xff]
  %v253 = vld [vmem:[%s2 + $0x6c0] sm:$0xff]
  %v254 = vld [vmem:[%s2 + $0x6c8] sm:$0xff]
  %v255 = vld [vmem:[%s2 + $0x6d0] sm:$0xff]
  %v256 = vld [vmem:[%s2 + $0x6d8] sm:$0xff]
  %v257 = vld [vmem:[%s2 + $0x6e0] sm:$0xff]
  %v258 = vld [vmem:[%s2 + $0x6e8] sm:$0xff]
  %v259 = vld [vmem:[%s2 + $0x6f0] sm:$0xff]
  %v260 = vld [vmem:[%s2 + $0x6f8] sm:$0xff]
  %v261 = vld [vmem:[%s2 + $0x700] sm:$0xff]
  %v262 = vld [vmem:[%s2 + $0x708] sm:$0xff]
  %v263 = vld [vmem:[%s2 + $0x710] sm:$0xff]
  %v264 = vld [vmem:[%s2 + $0x718] sm:$0xff]
  %v265 = vld [vmem:[%s2 + $0x720] sm:$0xff]
  %v266 = vld [vmem:[%s2 + $0x728] sm:$0xff]
  %v267 = vld [vmem:[%s2 + $0x730] sm:$0xff]
  %v268 = vld [vmem:[%s2 + $0x738] sm:$0xff]
  %v269 = vld [vmem:[%s2 + $0x740] sm:$0xff]
  %v270 = vld [vmem:[%s2 + $0x748] sm:$0xff]
  %v271 = vld [vmem:[%s2 + $0x750] sm:$0xff]
  %v272 = vld [vmem:[%s2 + $0x758] sm:$0xff]
  %v273 = vld [vmem:[%s2 + $0x760] sm:$0xff]
  %v274 = vld [vmem:[%s2 + $0x768] sm:$0xff]
  %v275 = vld [vmem:[%s2 + $0x770] sm:$0xff]
  %v276 = vld [vmem:[%s2 + $0x778] sm:$0xff]
  %v277 = vld [vmem:[%s2 + $0x780] sm:$0xff]
  %v278 = vld [vmem:[%s2 + $0x788] sm:$0xff]
  %v279 = vld [vmem:[%s2 + $0x790] sm:$0xff]
  %v280 = vld [vmem:[%s2 + $0x798] sm:$0xff]
  %v281 = vld [vmem:[%s2 + $0x7a0] sm:$0xff]
  %v282 = vld [vmem:[%s2 + $0x7a8] sm:$0xff]
  %v283 = vld [vmem:[%s2 + $0x7b0] sm:$0xff]
  %v284 = vld [vmem:[%s2 + $0x7b8] sm:$0xff]
  %v285 = vld [vmem:[%s2 + $0x7c0] sm:$0xff]
  %v286 = vld [vmem:[%s2 + $0x7c8] sm:$0xff]
  %v287 = vld [vmem:[%s2 + $0x7d0] sm:$0xff]
  %v288 = vld [vmem:[%s2 + $0x7d8] sm:$0xff]
  %v289 = vld [vmem:[%s2 + $0x7e0] sm:$0xff]
  %v290 = vld [vmem:[%s2 + $0x7e8] sm:$0xff]
  %v291 = vld [vmem:[%s2 + $0x7f0] sm:$0xff]
  %v292 = vld [vmem:[%s2 + $0x7f8] sm:$0xff]
  %v293 = vld [vmem:[%s2 + $0x800] sm:$0xff]
  %v294 = vld [vmem:[%s2 + $0x808] sm:$0xff]
  %v295 = vld [vmem:[%s2 + $0x810] sm:$0xff]
  %v296 = vld [vmem:[%s2 + $0x818] sm:$0xff]
  %v297 = vld [vmem:[%s2 + $0x820] sm:$0xff]
  %v298 = vld [vmem:[%s2 + $0x828] sm:$0xff]
  %v299 = vld [vmem:[%s2 + $0x830] sm:$0xff]
  %v300 = vld [vmem:[%s2 + $0x838] sm:$0xff]
  %v301 = vld [vmem:[%s2 + $0x840] sm:$0xff]
  %v302 = vld [vmem:[%s2 + $0x848] sm:$0xff]
  %v303 = vld [vmem:[%s2 + $0x850] sm:$0xff]
  %v304 = vld [vmem:[%s2 + $0x858] sm:$0xff]
  %v305 = vld [vmem:[%s2 + $0x860] sm:$0xff]
  %v306 = vld [vmem:[%s2 + $0x868] sm:$0xff]
  %v307 = vld [vmem:[%s2 + $0x870] sm:$0xff]
  %v308 = vld [vmem:[%s2 + $0x878] sm:$0xff]
  %v309 = vld [vmem:[%s2 + $0x880] sm:$0xff]
  %v310 = vld [vmem:[%s2 + $0x888] sm:$0xff]
  %v311 = vld [vmem:[%s2 + $0x890] sm:$0xff]
  %v312 = vld [vmem:[%s2 + $0x898] sm:$0xff]
  %v313 = vld [vmem:[%s2 + $0x8a0] sm:$0xff]
  %v314 = vld [vmem:[%s2 + $0x8a8] sm:$0xff]
  %v315 = vld [vmem:[%s2 + $0x8b0] sm:$0xff]
  %v316 = vld [vmem:[%s2 + $0x8b8] sm:$0xff]
  %v317 = vld [vmem:[%s2 + $0x8c0] sm:$0xff]
  %v318 = vld [vmem:[%s2 + $0x8c8] sm:$0xff]
  %v319 = vld [vmem:[%s2 + $0x8d0] sm:$0xff]
  %v320 = vld [vmem:[%s2 + $0x8d8] sm:$0xff]
  %v321 = vld [vmem:[%s2 + $0x8e0] sm:$0xff]
  %v322 = vld [vmem:[%s2 + $0x8e8] sm:$0xff]
  %v323 = vld [vmem:[%s2 + $0x8f0] sm:$0xff]
  %v324 = vld [vmem:[%s2 + $0x8f8] sm:$0xff]
  %v325 = vld [vmem:[%s2 + $0x900] sm:$0xff]
  %v326 = vld [vmem:[%s2 + $0x908] sm:$0xff]
  %v327 = vld [vmem:[%s2 + $0x910] sm:$0xff]
  %v328 = vld [vmem:[%s2 + $0x918] sm:$0xff]
  %v329 = vld [vmem:[%s2 + $0x920] sm:$0xff]
  %v330 = vld [vmem:[%s2 + $0x928] sm:$0xff]
  %v331 = vld [vmem:[%s2 + $0x930] sm:$0xff]
  %v332 = vld [vmem:[%s2 + $0x938] sm:$0xff]
  %v333 = vld [vmem:[%s2 + $0x940] sm:$0xff]
  %v334 = vld [vmem:[%s2 + $0x948] sm:$0xff]
  %v335 = vld [vmem:[%s2 + $0x950] sm:$0xff]
  %v336 = vld [vmem:[%s2 + $0x958] sm:$0xff]
  %v337 = vld [vmem:[%s2 + $0x960] sm:$0xff]
  %v338 = vld [vmem:[%s2 + $0x968] sm:$0xff]
  %v339 = vld [vmem:[%s2 + $0x970] sm:$0xff]
  %v340 = vld [vmem:[%s2 + $0x978] sm:$0xff]
  %v341 = vld [vmem:[%s2 + $0x980] sm:$0xff]
  %v342 = vld [vmem:[%s2 + $0x988] sm:$0xff]
  %v343 = vld [vmem:[%s2 + $0x990] sm:$0xff]
  %v344 = vld [vmem:[%s2 + $0x998] sm:$0xff]
  %v345 = vld [vmem:[%s2 + $0x9a0] sm:$0xff]
  %v346 = vld [vmem:[%s2 + $0x9a8] sm:$0xff]
  %v347 = vld [vmem:[%s2 + $0x9b0] sm:$0xff]
  %v348 = vld [vmem:[%s2 + $0x9b8] sm:$0xff]
  %v349 = vld [vmem:[%s2 + $0x9c0] sm:$0xff]
  %v350 = vld [vmem:[%s2 + $0x9c8] sm:$0xff]
  %v351 = vld [vmem:[%s2 + $0x9d0] sm:$0xff]
  %v352 = vld [vmem:[%s2 + $0x9d8] sm:$0xff]
  %v353 = vld [vmem:[%s2 + $0x9e0] sm:$0xff]
  %v354 = vld [vmem:[%s2 + $0x9e8] sm:$0xff]
  %v355 = vld [vmem:[%s2 + $0x9f0] sm:$0xff]
  %v356 = vld [vmem:[%s2 + $0x9f8] sm:$0xff]
  %v357 = vld [vmem:[%s3] sm:$0xf]
  %v358 = vld [vmem:[%s4] sm:$0xf]
  %v359 = vld [vmem:[%s5] sm:$0xf]
  %v360 = vld [vmem:[%s6] sm:$0xf]
  %v361 = vld [vmem:[%s7] sm:$0xff]
  %v362 = vld [vmem:[%s7 + $0x8] sm:$0x1]
  %v363 = vld [vmem:[%s0] sm:$0xff]
  %365 = vst [vmem:[#allocation1] ss:$2 sm:$0xff] %v363
  %v366 = vld.sshfl [vmem:[#allocation1] sm:$0xff pattern:$0x75316420]
  %v367 = vld.sshfl [vmem:[#allocation1 + $0x8] sm:$0xff pattern:$0x75316420]
  %370 = vmatpush.msra.mxu0 %v187
  %371 = vmatpush.msra.mxu0 %v177
  %372 = vmatpush.msra.mxu0 %v167
  %373 = vmatpush.msra.mxu0 %v157
  %374 = vmatpush.msra.mxu0 %v147
  %375 = vmatpush.msra.mxu0 %v137
  %376 = vmatpush.msra.mxu0 %v127
  %377 = vmatpush.msra.mxu0 %v117
  %378 = vmatpush.msra.mxu0 %v107
  %379 = vmatpush.msra.mxu0 %v97
  %380 = vmatpush.msra.mxu0 %v87
  %381 = vmatpush.msra.mxu0 %v77
  %382 = vmatpush.msra.mxu0 %v67
  %383 = vmatpush.msra.mxu0 %v57
  %384 = vmatpush.msra.mxu0 %v47
  %385 = vmatpush.msra.mxu0 %v37
  %386 = vmatmul.f32.gmra.mxu0 %v366
  %v387 = vpop.f32.mrf.mxu0
  %v388 = vadd.f32 0.0, %v387
  %389 = vdwg.mxu0
  %390 = vmatpush.msra.mxu0 %v347
  %391 = vmatpush.msra.mxu0 %v337
  %392 = vmatpush.msra.mxu0 %v327
  %393 = vmatpush.msra.mxu0 %v317
  %394 = vmatpush.msra.mxu0 %v307
  %395 = vmatpush.msra.mxu0 %v297
  %396 = vmatpush.msra.mxu0 %v287
  %397 = vmatpush.msra.mxu0 %v277
  %398 = vmatpush.msra.mxu0 %v267
  %399 = vmatpush.msra.mxu0 %v257
  %400 = vmatpush.msra.mxu0 %v247
  %401 = vmatpush.msra.mxu0 %v237
  %402 = vmatpush.msra.mxu0 %v227
  %403 = vmatpush.msra.mxu0 %v217
  %404 = vmatpush.msra.mxu0 %v207
  %405 = vmatpush.msra.mxu0 %v197
  %406 = vmatmul.f32.gmra.mxu0 %v367
  %v407 = vpop.f32.mrf.mxu0
  %v408 = vadd.f32 %v388, %v407
  %409 = vdwg.mxu0
  %410 = vmatpush.msra.mxu0 %v188
  %411 = vmatpush.msra.mxu0 %v178
  %412 = vmatpush.msra.mxu0 %v168
  %413 = vmatpush.msra.mxu0 %v158
  %414 = vmatpush.msra.mxu0 %v148
  %415 = vmatpush.msra.mxu0 %v138
  %416 = vmatpush.msra.mxu0 %v128
  %417 = vmatpush.msra.mxu0 %v118
  %418 = vmatpush.msra.mxu0 %v108
  %419 = vmatpush.msra.mxu0 %v98
  %420 = vmatpush.msra.mxu0 %v88
  %421 = vmatpush.msra.mxu0 %v78
  %422 = vmatpush.msra.mxu0 %v68
  %423 = vmatpush.msra.mxu0 %v58
  %424 = vmatpush.msra.mxu0 %v48
  %425 = vmatpush.msra.mxu0 %v38
  %426 = vmatmul.f32.gmra.mxu0 %v366
  %v427 = vpop.f32.mrf.mxu0
  %v428 = vadd.f32 0.0, %v427
  %429 = vdwg.mxu0
  %430 = vmatpush.msra.mxu0 %v348
  %431 = vmatpush.msra.mxu0 %v338
  %432 = vmatpush.msra.mxu0 %v328
  %433 = vmatpush.msra.mxu0 %v318
  %434 = vmatpush.msra.mxu0 %v308
  %435 = vmatpush.msra.mxu0 %v298
  %436 = vmatpush.msra.mxu0 %v288
  %437 = vmatpush.msra.mxu0 %v278
  %438 = vmatpush.msra.mxu0 %v268
  %439 = vmatpush.msra.mxu0 %v258
  %440 = vmatpush.msra.mxu0 %v248
  %441 = vmatpush.msra.mxu0 %v238
  %442 = vmatpush.msra.mxu0 %v228
  %443 = vmatpush.msra.mxu0 %v218
  %444 = vmatpush.msra.mxu0 %v208
  %445 = vmatpush.msra.mxu0 %v198
  %446 = vmatmul.f32.gmra.mxu0 %v367
  %v447 = vpop.f32.mrf.mxu0
  %v448 = vadd.f32 %v428, %v447
  %449 = vdwg.mxu0
  %450 = vmatpush.msra.mxu0 %v189
  %451 = vmatpush.msra.mxu0 %v179
  %452 = vmatpush.msra.mxu0 %v169
  %453 = vmatpush.msra.mxu0 %v159
  %454 = vmatpush.msra.mxu0 %v149
  %455 = vmatpush.msra.mxu0 %v139
  %456 = vmatpush.msra.mxu0 %v129
  %457 = vmatpush.msra.mxu0 %v119
  %458 = vmatpush.msra.mxu0 %v109
  %459 = vmatpush.msra.mxu0 %v99
  %460 = vmatpush.msra.mxu0 %v89
  %461 = vmatpush.msra.mxu0 %v79
  %462 = vmatpush.msra.mxu0 %v69
  %463 = vmatpush.msra.mxu0 %v59
  %464 = vmatpush.msra.mxu0 %v49
  %465 = vmatpush.msra.mxu0 %v39
  %466 = vmatmul.f32.gmra.mxu0 %v366
  %v467 = vpop.f32.mrf.mxu0
  %v468 = vadd.f32 0.0, %v467
  %469 = vdwg.mxu0
  %470 = vmatpush.msra.mxu0 %v349
  %471 = vmatpush.msra.mxu0 %v339
  %472 = vmatpush.msra.mxu0 %v329
  %473 = vmatpush.msra.mxu0 %v319
  %474 = vmatpush.msra.mxu0 %v309
  %475 = vmatpush.msra.mxu0 %v299
  %476 = vmatpush.msra.mxu0 %v289
  %477 = vmatpush.msra.mxu0 %v279
  %478 = vmatpush.msra.mxu0 %v269
  %479 = vmatpush.msra.mxu0 %v259
  %480 = vmatpush.msra.mxu0 %v249
  %481 = vmatpush.msra.mxu0 %v239
  %482 = vmatpush.msra.mxu0 %v229
  %483 = vmatpush.msra.mxu0 %v219
  %484 = vmatpush.msra.mxu0 %v209
  %485 = vmatpush.msra.mxu0 %v199
  %486 = vmatmul.f32.gmra.mxu0 %v367
  %v487 = vpop.f32.mrf.mxu0
  %v488 = vadd.f32 %v468, %v487
  %489 = vdwg.mxu0
  %490 = vmatpush.msra.mxu0 %v190
  %491 = vmatpush.msra.mxu0 %v180
  %492 = vmatpush.msra.mxu0 %v170
  %493 = vmatpush.msra.mxu0 %v160
  %494 = vmatpush.msra.mxu0 %v150
  %495 = vmatpush.msra.mxu0 %v140
  %496 = vmatpush.msra.mxu0 %v130
  %497 = vmatpush.msra.mxu0 %v120
  %498 = vmatpush.msra.mxu0 %v110
  %499 = vmatpush.msra.mxu0 %v100
  %500 = vmatpush.msra.mxu0 %v90
  %501 = vmatpush.msra.mxu0 %v80
  %502 = vmatpush.msra.mxu0 %v70
  %503 = vmatpush.msra.mxu0 %v60
  %504 = vmatpush.msra.mxu0 %v50
  %505 = vmatpush.msra.mxu0 %v40
  %506 = vmatmul.f32.gmra.mxu0 %v366
  %v507 = vpop.f32.mrf.mxu0
  %v508 = vadd.f32 0.0, %v507
  %509 = vdwg.mxu0
  %510 = vmatpush.msra.mxu0 %v350
  %511 = vmatpush.msra.mxu0 %v340
  %512 = vmatpush.msra.mxu0 %v330
  %513 = vmatpush.msra.mxu0 %v320
  %514 = vmatpush.msra.mxu0 %v310
  %515 = vmatpush.msra.mxu0 %v300
  %516 = vmatpush.msra.mxu0 %v290
  %517 = vmatpush.msra.mxu0 %v280
  %518 = vmatpush.msra.mxu0 %v270
  %519 = vmatpush.msra.mxu0 %v260
  %520 = vmatpush.msra.mxu0 %v250
  %521 = vmatpush.msra.mxu0 %v240
  %522 = vmatpush.msra.mxu0 %v230
  %523 = vmatpush.msra.mxu0 %v220
  %524 = vmatpush.msra.mxu0 %v210
  %525 = vmatpush.msra.mxu0 %v200
  %526 = vmatmul.f32.gmra.mxu0 %v367
  %v527 = vpop.f32.mrf.mxu0
  %v528 = vadd.f32 %v508, %v527
  %529 = vdwg.mxu0
  %530 = vmatpush.msra.mxu0 %v191
  %531 = vmatpush.msra.mxu0 %v181
  %532 = vmatpush.msra.mxu0 %v171
  %533 = vmatpush.msra.mxu0 %v161
  %534 = vmatpush.msra.mxu0 %v151
  %535 = vmatpush.msra.mxu0 %v141
  %536 = vmatpush.msra.mxu0 %v131
  %537 = vmatpush.msra.mxu0 %v121
  %538 = vmatpush.msra.mxu0 %v111
  %539 = vmatpush.msra.mxu0 %v101
  %540 = vmatpush.msra.mxu0 %v91
  %541 = vmatpush.msra.mxu0 %v81
  %542 = vmatpush.msra.mxu0 %v71
  %543 = vmatpush.msra.mxu0 %v61
  %544 = vmatpush.msra.mxu0 %v51
  %545 = vmatpush.msra.mxu0 %v41
  %546 = vmatmul.f32.gmra.mxu0 %v366
  %v547 = vpop.f32.mrf.mxu0
  %v548 = vadd.f32 0.0, %v547
  %549 = vdwg.mxu0
  %550 = vmatpush.msra.mxu0 %v351
  %551 = vmatpush.msra.mxu0 %v341
  %552 = vmatpush.msra.mxu0 %v331
  %553 = vmatpush.msra.mxu0 %v321
  %554 = vmatpush.msra.mxu0 %v311
  %555 = vmatpush.msra.mxu0 %v301
  %556 = vmatpush.msra.mxu0 %v291
  %557 = vmatpush.msra.mxu0 %v281
  %558 = vmatpush.msra.mxu0 %v271
  %559 = vmatpush.msra.mxu0 %v261
  %560 = vmatpush.msra.mxu0 %v251
  %561 = vmatpush.msra.mxu0 %v241
  %562 = vmatpush.msra.mxu0 %v231
  %563 = vmatpush.msra.mxu0 %v221
  %564 = vmatpush.msra.mxu0 %v211
  %565 = vmatpush.msra.mxu0 %v201
  %566 = vmatmul.f32.gmra.mxu0 %v367
  %v567 = vpop.f32.mrf.mxu0
  %v568 = vadd.f32 %v548, %v567
  %569 = vdwg.mxu0
  %570 = vmatpush.msra.mxu0 %v192
  %571 = vmatpush.msra.mxu0 %v182
  %572 = vmatpush.msra.mxu0 %v172
  %573 = vmatpush.msra.mxu0 %v162
  %574 = vmatpush.msra.mxu0 %v152
  %575 = vmatpush.msra.mxu0 %v142
  %576 = vmatpush.msra.mxu0 %v132
  %577 = vmatpush.msra.mxu0 %v122
  %578 = vmatpush.msra.mxu0 %v112
  %579 = vmatpush.msra.mxu0 %v102
  %580 = vmatpush.msra.mxu0 %v92
  %581 = vmatpush.msra.mxu0 %v82
  %582 = vmatpush.msra.mxu0 %v72
  %583 = vmatpush.msra.mxu0 %v62
  %584 = vmatpush.msra.mxu0 %v52
  %585 = vmatpush.msra.mxu0 %v42
  %586 = vmatmul.f32.gmra.mxu0 %v366
  %v587 = vpop.f32.mrf.mxu0
  %v588 = vadd.f32 0.0, %v587
  %589 = vdwg.mxu0
  %590 = vmatpush.msra.mxu0 %v352
  %591 = vmatpush.msra.mxu0 %v342
  %592 = vmatpush.msra.mxu0 %v332
  %593 = vmatpush.msra.mxu0 %v322
  %594 = vmatpush.msra.mxu0 %v312
  %595 = vmatpush.msra.mxu0 %v302
  %596 = vmatpush.msra.mxu0 %v292
  %597 = vmatpush.msra.mxu0 %v282
  %598 = vmatpush.msra.mxu0 %v272
  %599 = vmatpush.msra.mxu0 %v262
  %600 = vmatpush.msra.mxu0 %v252
  %601 = vmatpush.msra.mxu0 %v242
  %602 = vmatpush.msra.mxu0 %v232
  %603 = vmatpush.msra.mxu0 %v222
  %604 = vmatpush.msra.mxu0 %v212
  %605 = vmatpush.msra.mxu0 %v202
  %606 = vmatmul.f32.gmra.mxu0 %v367
  %v607 = vpop.f32.mrf.mxu0
  %v608 = vadd.f32 %v588, %v607
  %609 = vdwg.mxu0
  %610 = vmatpush.msra.mxu0 %v193
  %611 = vmatpush.msra.mxu0 %v183
  %612 = vmatpush.msra.mxu0 %v173
  %613 = vmatpush.msra.mxu0 %v163
  %614 = vmatpush.msra.mxu0 %v153
  %615 = vmatpush.msra.mxu0 %v143
  %616 = vmatpush.msra.mxu0 %v133
  %617 = vmatpush.msra.mxu0 %v123
  %618 = vmatpush.msra.mxu0 %v113
  %619 = vmatpush.msra.mxu0 %v103
  %620 = vmatpush.msra.mxu0 %v93
  %621 = vmatpush.msra.mxu0 %v83
  %622 = vmatpush.msra.mxu0 %v73
  %623 = vmatpush.msra.mxu0 %v63
  %624 = vmatpush.msra.mxu0 %v53
  %625 = vmatpush.msra.mxu0 %v43
  %626 = vmatmul.f32.gmra.mxu0 %v366
  %v627 = vpop.f32.mrf.mxu0
  %v628 = vadd.f32 0.0, %v627
  %629 = vdwg.mxu0
  %630 = vmatpush.msra.mxu0 %v353
  %631 = vmatpush.msra.mxu0 %v343
  %632 = vmatpush.msra.mxu0 %v333
  %633 = vmatpush.msra.mxu0 %v323
  %634 = vmatpush.msra.mxu0 %v313
  %635 = vmatpush.msra.mxu0 %v303
  %636 = vmatpush.msra.mxu0 %v293
  %637 = vmatpush.msra.mxu0 %v283
  %638 = vmatpush.msra.mxu0 %v273
  %639 = vmatpush.msra.mxu0 %v263
  %640 = vmatpush.msra.mxu0 %v253
  %641 = vmatpush.msra.mxu0 %v243
  %642 = vmatpush.msra.mxu0 %v233
  %643 = vmatpush.msra.mxu0 %v223
  %644 = vmatpush.msra.mxu0 %v213
  %645 = vmatpush.msra.mxu0 %v203
  %646 = vmatmul.f32.gmra.mxu0 %v367
  %v647 = vpop.f32.mrf.mxu0
  %v648 = vadd.f32 %v628, %v647
  %649 = vdwg.mxu0
  %650 = vmatpush.msra.mxu0 %v194
  %651 = vmatpush.msra.mxu0 %v184
  %652 = vmatpush.msra.mxu0 %v174
  %653 = vmatpush.msra.mxu0 %v164
  %654 = vmatpush.msra.mxu0 %v154
  %655 = vmatpush.msra.mxu0 %v144
  %656 = vmatpush.msra.mxu0 %v134
  %657 = vmatpush.msra.mxu0 %v124
  %658 = vmatpush.msra.mxu0 %v114
  %659 = vmatpush.msra.mxu0 %v104
  %660 = vmatpush.msra.mxu0 %v94
  %661 = vmatpush.msra.mxu0 %v84
  %662 = vmatpush.msra.mxu0 %v74
  %663 = vmatpush.msra.mxu0 %v64
  %664 = vmatpush.msra.mxu0 %v54
  %665 = vmatpush.msra.mxu0 %v44
  %666 = vmatmul.f32.gmra.mxu0 %v366
  %v667 = vpop.f32.mrf.mxu0
  %v668 = vadd.f32 0.0, %v667
  %669 = vdwg.mxu0
  %670 = vmatpush.msra.mxu0 %v354
  %671 = vmatpush.msra.mxu0 %v344
  %672 = vmatpush.msra.mxu0 %v334
  %673 = vmatpush.msra.mxu0 %v324
  %674 = vmatpush.msra.mxu0 %v314
  %675 = vmatpush.msra.mxu0 %v304
  %676 = vmatpush.msra.mxu0 %v294
  %677 = vmatpush.msra.mxu0 %v284
  %678 = vmatpush.msra.mxu0 %v274
  %679 = vmatpush.msra.mxu0 %v264
  %680 = vmatpush.msra.mxu0 %v254
  %681 = vmatpush.msra.mxu0 %v244
  %682 = vmatpush.msra.mxu0 %v234
  %683 = vmatpush.msra.mxu0 %v224
  %684 = vmatpush.msra.mxu0 %v214
  %685 = vmatpush.msra.mxu0 %v204
  %686 = vmatmul.f32.gmra.mxu0 %v367
  %v687 = vpop.f32.mrf.mxu0
  %v688 = vadd.f32 %v668, %v687
  %689 = vdwg.mxu0
  %690 = vmatpush.msra.mxu0 %v195
  %691 = vmatpush.msra.mxu0 %v185
  %692 = vmatpush.msra.mxu0 %v175
  %693 = vmatpush.msra.mxu0 %v165
  %694 = vmatpush.msra.mxu0 %v155
  %695 = vmatpush.msra.mxu0 %v145
  %696 = vmatpush.msra.mxu0 %v135
  %697 = vmatpush.msra.mxu0 %v125
  %698 = vmatpush.msra.mxu0 %v115
  %699 = vmatpush.msra.mxu0 %v105
  %700 = vmatpush.msra.mxu0 %v95
  %701 = vmatpush.msra.mxu0 %v85
  %702 = vmatpush.msra.mxu0 %v75
  %703 = vmatpush.msra.mxu0 %v65
  %704 = vmatpush.msra.mxu0 %v55
  %705 = vmatpush.msra.mxu0 %v45
  %706 = vmatmul.f32.gmra.mxu0 %v366
  %v707 = vpop.f32.mrf.mxu0
  %v708 = vadd.f32 0.0, %v707
  %709 = vdwg.mxu0
  %710 = vmatpush.msra.mxu0 %v355
  %711 = vmatpush.msra.mxu0 %v345
  %712 = vmatpush.msra.mxu0 %v335
  %713 = vmatpush.msra.mxu0 %v325
  %714 = vmatpush.msra.mxu0 %v315
  %715 = vmatpush.msra.mxu0 %v305
  %716 = vmatpush.msra.mxu0 %v295
  %717 = vmatpush.msra.mxu0 %v285
  %718 = vmatpush.msra.mxu0 %v275
  %719 = vmatpush.msra.mxu0 %v265
  %720 = vmatpush.msra.mxu0 %v255
  %721 = vmatpush.msra.mxu0 %v245
  %722 = vmatpush.msra.mxu0 %v235
  %723 = vmatpush.msra.mxu0 %v225
  %724 = vmatpush.msra.mxu0 %v215
  %725 = vmatpush.msra.mxu0 %v205
  %726 = vmatmul.f32.gmra.mxu0 %v367
  %v727 = vpop.f32.mrf.mxu0
  %v728 = vadd.f32 %v708, %v727
  %729 = vdwg.mxu0
  %730 = vmatpush.msra.mxu0 %v196
  %731 = vmatpush.msra.mxu0 %v186
  %732 = vmatpush.msra.mxu0 %v176
  %733 = vmatpush.msra.mxu0 %v166
  %734 = vmatpush.msra.mxu0 %v156
  %735 = vmatpush.msra.mxu0 %v146
  %736 = vmatpush.msra.mxu0 %v136
  %737 = vmatpush.msra.mxu0 %v126
  %738 = vmatpush.msra.mxu0 %v116
  %739 = vmatpush.msra.mxu0 %v106
  %740 = vmatpush.msra.mxu0 %v96
  %741 = vmatpush.msra.mxu0 %v86
  %742 = vmatpush.msra.mxu0 %v76
  %743 = vmatpush.msra.mxu0 %v66
  %744 = vmatpush.msra.mxu0 %v56
  %745 = vmatpush.msra.mxu0 %v46
  %746 = vmatmul.f32.gmra.mxu0 %v366
  %v747 = vpop.f32.mrf.mxu0
  %v748 = vadd.f32 0.0, %v747
  %749 = vdwg.mxu0
  %750 = vmatpush.msra.mxu0 %v356
  %751 = vmatpush.msra.mxu0 %v346
  %752 = vmatpush.msra.mxu0 %v336
  %753 = vmatpush.msra.mxu0 %v326
  %754 = vmatpush.msra.mxu0 %v316
  %755 = vmatpush.msra.mxu0 %v306
  %756 = vmatpush.msra.mxu0 %v296
  %757 = vmatpush.msra.mxu0 %v286
  %758 = vmatpush.msra.mxu0 %v276
  %759 = vmatpush.msra.mxu0 %v266
  %760 = vmatpush.msra.mxu0 %v256
  %761 = vmatpush.msra.mxu0 %v246
  %762 = vmatpush.msra.mxu0 %v236
  %763 = vmatpush.msra.mxu0 %v226
  %764 = vmatpush.msra.mxu0 %v216
  %765 = vmatpush.msra.mxu0 %v206
  %766 = vmatmul.f32.gmra.mxu0 %v367
  %v767 = vpop.f32.mrf.mxu0
  %v768 = vadd.f32 %v748, %v767
  %769 = vdwg.mxu0
  %v770 = vld [vmem:[%s1] sm:$0xff]
  %v771 = vld [vmem:[%s1 + $0x8] sm:$0xff]
  %v772 = vld [vmem:[%s1 + $0x10] sm:$0xff]
  %v773 = vld [vmem:[%s1 + $0x18] sm:$0xff]
  %v774 = vld [vmem:[%s1 + $0x20] sm:$0xff]
  %s780 = scalar_lea.vmem [#allocation1], 1
  %781 = vst [vmem:[%s780] ss:$2 sm:$0xff] %v770
  %s782 = scalar_lea.vmem [#allocation1], 17
  %783 = vst [vmem:[%s782] ss:$2 sm:$0xff] %v771
  %s784 = scalar_lea.vmem [#allocation1], 33
  %785 = vst [vmem:[%s784] ss:$2 sm:$0xff] %v772
  %s786 = scalar_lea.vmem [#allocation1], 49
  %787 = vst [vmem:[%s786] ss:$2 sm:$0xff] %v773
  %v788 = vld.sshfl [vmem:[#allocation1] sm:$0xff pattern:$0x75316420]
  %v789 = vld.sshfl [vmem:[#allocation1 + $0x8] sm:$0xff pattern:$0x75316420]
  %v790 = vld.sshfl [vmem:[#allocation1 + $0x10] sm:$0xff pattern:$0x75316420]
  %v791 = vld.sshfl [vmem:[#allocation1 + $0x18] sm:$0xff pattern:$0x75316420]
  %v792 = vld.sshfl [vmem:[#allocation1 + $0x20] sm:$0xff pattern:$0x75316420]
  %v793 = vld.sshfl [vmem:[#allocation1 + $0x28] sm:$0xff pattern:$0x75316420]
  %v794 = vld.sshfl [vmem:[#allocation1 + $0x30] sm:$0xff pattern:$0x75316420]
  %v795 = vld.sshfl [vmem:[#allocation1 + $0x38] sm:$0xff pattern:$0x75316420]
  %796 = vst [vmem:[%s780] ss:$2 sm:$0xff] %v774
  %v797 = vld.sshfl [vmem:[#allocation1] sm:$0xff pattern:$0x75316420]
  %v798 = vld.sshfl [vmem:[#allocation1 + $0x8] sm:$0xff pattern:$0x75316420]
  %v809 = vsel %vm33, %v408, %v788
  %v810 = vsel %vm33, %v448, %v789
  %v811 = vsel %vm33, %v488, %v790
  %v812 = vsel %vm33, %v528, %v791
  %v813 = vsel %vm33, %v568, %v792
  %v814 = vsel %vm33, %v608, %v793
  %v815 = vsel %vm33, %v648, %v794
  %v816 = vsel %vm33, %v688, %v795
  %v817 = vsel %vm33, %v728, %v797
  %v818 = vsel %vm33, %v768, %v798
  %828 = vrot.lane.b32.xlu0 %v809, 127
  %v829 = vpop.permute.xlu0 %828
  %830 = vrot.lane.b32.xlu0 %v810, 127
  %v831 = vpop.permute.xlu0 %830
  %832 = vrot.lane.b32.xlu0 %v811, 127
  %v833 = vpop.permute.xlu0 %832
  %834 = vrot.lane.b32.xlu0 %v812, 127
  %v835 = vpop.permute.xlu0 %834
  %836 = vrot.lane.b32.xlu0 %v813, 127
  %v837 = vpop.permute.xlu0 %836
  %838 = vrot.lane.b32.xlu0 %v814, 127
  %v839 = vpop.permute.xlu0 %838
  %840 = vrot.lane.b32.xlu0 %v815, 127
  %v841 = vpop.permute.xlu0 %840
  %842 = vrot.lane.b32.xlu0 %v816, 127
  %v843 = vpop.permute.xlu0 %842
  %844 = vrot.lane.b32.xlu0 %v817, 127
  %v845 = vpop.permute.xlu0 %844
  %vm846 = vcmask 1039360
  %v847 = vsel %vm846, %v829, %v831
  %v848 = vsel %vm846, %v831, %v833
  %v849 = vsel %vm846, %v833, %v835
  %v850 = vsel %vm846, %v835, %v837
  %v851 = vsel %vm846, %v837, %v839
  %v852 = vsel %vm846, %v839, %v841
  %v853 = vsel %vm846, %v841, %v843
  %v854 = vsel %vm846, %v843, %v845
  %864 = vrot.lane.b32.xlu0 %v809, 126
  %v865 = vpop.permute.xlu0 %864
  %866 = vrot.lane.b32.xlu0 %v810, 126
  %v867 = vpop.permute.xlu0 %866
  %868 = vrot.lane.b32.xlu0 %v811, 126
  %v869 = vpop.permute.xlu0 %868
  %870 = vrot.lane.b32.xlu0 %v812, 126
  %v871 = vpop.permute.xlu0 %870
  %872 = vrot.lane.b32.xlu0 %v813, 126
  %v873 = vpop.permute.xlu0 %872
  %874 = vrot.lane.b32.xlu0 %v814, 126
  %v875 = vpop.permute.xlu0 %874
  %876 = vrot.lane.b32.xlu0 %v815, 126
  %v877 = vpop.permute.xlu0 %876
  %878 = vrot.lane.b32.xlu0 %v816, 126
  %v879 = vpop.permute.xlu0 %878
  %880 = vrot.lane.b32.xlu0 %v817, 126
  %v881 = vpop.permute.xlu0 %880
  %vm882 = vcmask 1031168
  %v883 = vsel %vm882, %v865, %v867
  %v884 = vsel %vm882, %v867, %v869
  %v885 = vsel %vm882, %v869, %v871
  %v886 = vsel %vm882, %v871, %v873
  %v887 = vsel %vm882, %v873, %v875
  %v888 = vsel %vm882, %v875, %v877
  %v889 = vsel %vm882, %v877, %v879
  %v890 = vsel %vm882, %v879, %v881
  %900 = vrot.lane.b32.xlu0 %v809, 94
  %v901 = vpop.permute.xlu0 %900
  %902 = vrot.lane.b32.xlu0 %v810, 94
  %v903 = vpop.permute.xlu0 %902
  %904 = vrot.lane.b32.xlu0 %v811, 94
  %v905 = vpop.permute.xlu0 %904
  %906 = vrot.lane.b32.xlu0 %v812, 94
  %v907 = vpop.permute.xlu0 %906
  %908 = vrot.lane.b32.xlu0 %v813, 94
  %v909 = vpop.permute.xlu0 %908
  %910 = vrot.lane.b32.xlu0 %v814, 94
  %v911 = vpop.permute.xlu0 %910
  %912 = vrot.lane.b32.xlu0 %v815, 94
  %v913 = vpop.permute.xlu0 %912
  %914 = vrot.lane.b32.xlu0 %v816, 94
  %v915 = vpop.permute.xlu0 %914
  %916 = vrot.lane.b32.xlu0 %v817, 94
  %v917 = vpop.permute.xlu0 %916
  %vm918 = vcmask 769024
  %v919 = vsel %vm918, %v901, %v903
  %v920 = vsel %vm918, %v903, %v905
  %v921 = vsel %vm918, %v905, %v907
  %v922 = vsel %vm918, %v907, %v909
  %v923 = vsel %vm918, %v909, %v911
  %v924 = vsel %vm918, %v911, %v913
  %v925 = vsel %vm918, %v913, %v915
  %v926 = vsel %vm918, %v915, %v917
  %936 = vrot.lane.b32.xlu0 %v809, 93
  %v937 = vpop.permute.xlu0 %936
  %938 = vrot.lane.b32.xlu0 %v810, 93
  %v939 = vpop.permute.xlu0 %938
  %940 = vrot.lane.b32.xlu0 %v811, 93
  %v941 = vpop.permute.xlu0 %940
  %942 = vrot.lane.b32.xlu0 %v812, 93
  %v943 = vpop.permute.xlu0 %942
  %944 = vrot.lane.b32.xlu0 %v813, 93
  %v945 = vpop.permute.xlu0 %944
  %946 = vrot.lane.b32.xlu0 %v814, 93
  %v947 = vpop.permute.xlu0 %946
  %948 = vrot.lane.b32.xlu0 %v815, 93
  %v949 = vpop.permute.xlu0 %948
  %950 = vrot.lane.b32.xlu0 %v816, 93
  %v951 = vpop.permute.xlu0 %950
  %952 = vrot.lane.b32.xlu0 %v817, 93
  %v953 = vpop.permute.xlu0 %952
  %vm954 = vcmask 760832
  %v955 = vsel %vm954, %v937, %v939
  %v956 = vsel %vm954, %v939, %v941
  %v957 = vsel %vm954, %v941, %v943
  %v958 = vsel %vm954, %v943, %v945
  %v959 = vsel %vm954, %v945, %v947
  %v960 = vsel %vm954, %v947, %v949
  %v961 = vsel %vm954, %v949, %v951
  %v962 = vsel %vm954, %v951, %v953
  %972 = vrot.lane.b32.xlu0 %v809, 92
  %v973 = vpop.permute.xlu0 %972
  %974 = vrot.lane.b32.xlu0 %v810, 92
  %v975 = vpop.permute.xlu0 %974
  %976 = vrot.lane.b32.xlu0 %v811, 92
  %v977 = vpop.permute.xlu0 %976
  %978 = vrot.lane.b32.xlu0 %v812, 92
  %v979 = vpop.permute.xlu0 %978
  %980 = vrot.lane.b32.xlu0 %v813, 92
  %v981 = vpop.permute.xlu0 %980
  %982 = vrot.lane.b32.xlu0 %v814, 92
  %v983 = vpop.permute.xlu0 %982
  %984 = vrot.lane.b32.xlu0 %v815, 92
  %v985 = vpop.permute.xlu0 %984
  %986 = vrot.lane.b32.xlu0 %v816, 92
  %v987 = vpop.permute.xlu0 %986
  %988 = vrot.lane.b32.xlu0 %v817, 92
  %v989 = vpop.permute.xlu0 %988
  %vm990 = vcmask 752640
  %v991 = vsel %vm990, %v973, %v975
  %v992 = vsel %vm990, %v975, %v977
  %v993 = vsel %vm990, %v977, %v979
  %v994 = vsel %vm990, %v979, %v981
  %v995 = vsel %vm990, %v981, %v983
  %v996 = vsel %vm990, %v983, %v985
  %v997 = vsel %vm990, %v985, %v987
  %v998 = vsel %vm990, %v987, %v989
  %1009 = vrot.lane.b32.xlu0 %v809, 60
  %v1010 = vpop.permute.xlu0 %1009
  %1011 = vrot.lane.b32.xlu0 %v810, 60
  %v1012 = vpop.permute.xlu0 %1011
  %1013 = vrot.lane.b32.xlu0 %v811, 60
  %v1014 = vpop.permute.xlu0 %1013
  %1015 = vrot.lane.b32.xlu0 %v812, 60
  %v1016 = vpop.permute.xlu0 %1015
  %1017 = vrot.lane.b32.xlu0 %v813, 60
  %v1018 = vpop.permute.xlu0 %1017
  %1019 = vrot.lane.b32.xlu0 %v814, 60
  %v1020 = vpop.permute.xlu0 %1019
  %1021 = vrot.lane.b32.xlu0 %v815, 60
  %v1022 = vpop.permute.xlu0 %1021
  %1023 = vrot.lane.b32.xlu0 %v816, 60
  %v1024 = vpop.permute.xlu0 %1023
  %1025 = vrot.lane.b32.xlu0 %v817, 60
  %v1026 = vpop.permute.xlu0 %1025
  %1027 = vrot.lane.b32.xlu0 %v818, 60
  %v1028 = vpop.permute.xlu0 %1027
  %vm1029 = vcmask 490496
  %v1030 = vsel %vm1029, %v1010, %v1012
  %v1031 = vsel %vm1029, %v1012, %v1014
  %v1032 = vsel %vm1029, %v1014, %v1016
  %v1033 = vsel %vm1029, %v1016, %v1018
  %v1034 = vsel %vm1029, %v1018, %v1020
  %v1035 = vsel %vm1029, %v1020, %v1022
  %v1036 = vsel %vm1029, %v1022, %v1024
  %v1037 = vsel %vm1029, %v1024, %v1026
  %v1038 = vsel %vm1029, %v1026, %v1028
  %1048 = vrot.lane.b32.xlu0 %v809, 59
  %v1049 = vpop.permute.xlu0 %1048
  %1050 = vrot.lane.b32.xlu0 %v810, 59
  %v1051 = vpop.permute.xlu0 %1050
  %1052 = vrot.lane.b32.xlu0 %v811, 59
  %v1053 = vpop.permute.xlu0 %1052
  %1054 = vrot.lane.b32.xlu0 %v812, 59
  %v1055 = vpop.permute.xlu0 %1054
  %1056 = vrot.lane.b32.xlu0 %v813, 59
  %v1057 = vpop.permute.xlu0 %1056
  %1058 = vrot.lane.b32.xlu0 %v814, 59
  %v1059 = vpop.permute.xlu0 %1058
  %1060 = vrot.lane.b32.xlu0 %v815, 59
  %v1061 = vpop.permute.xlu0 %1060
  %1062 = vrot.lane.b32.xlu0 %v816, 59
  %v1063 = vpop.permute.xlu0 %1062
  %1064 = vrot.lane.b32.xlu0 %v817, 59
  %v1065 = vpop.permute.xlu0 %1064
  %1066 = vrot.lane.b32.xlu0 %v818, 59
  %v1067 = vpop.permute.xlu0 %1066
  %vm1068 = vcmask 482304
  %v1069 = vsel %vm1068, %v1049, %v1051
  %v1070 = vsel %vm1068, %v1051, %v1053
  %v1071 = vsel %vm1068, %v1053, %v1055
  %v1072 = vsel %vm1068, %v1055, %v1057
  %v1073 = vsel %vm1068, %v1057, %v1059
  %v1074 = vsel %vm1068, %v1059, %v1061
  %v1075 = vsel %vm1068, %v1061, %v1063
  %v1076 = vsel %vm1068, %v1063, %v1065
  %v1077 = vsel %vm1068, %v1065, %v1067
  %1087 = vrot.lane.b32.xlu0 %v809, 58
  %v1088 = vpop.permute.xlu0 %1087
  %1089 = vrot.lane.b32.xlu0 %v810, 58
  %v1090 = vpop.permute.xlu0 %1089
  %1091 = vrot.lane.b32.xlu0 %v811, 58
  %v1092 = vpop.permute.xlu0 %1091
  %1093 = vrot.lane.b32.xlu0 %v812, 58
  %v1094 = vpop.permute.xlu0 %1093
  %1095 = vrot.lane.b32.xlu0 %v813, 58
  %v1096 = vpop.permute.xlu0 %1095
  %1097 = vrot.lane.b32.xlu0 %v814, 58
  %v1098 = vpop.permute.xlu0 %1097
  %1099 = vrot.lane.b32.xlu0 %v815, 58
  %v1100 = vpop.permute.xlu0 %1099
  %1101 = vrot.lane.b32.xlu0 %v816, 58
  %v1102 = vpop.permute.xlu0 %1101
  %1103 = vrot.lane.b32.xlu0 %v817, 58
  %v1104 = vpop.permute.xlu0 %1103
  %1105 = vrot.lane.b32.xlu0 %v818, 58
  %v1106 = vpop.permute.xlu0 %1105
  %vm1107 = vcmask 474112
  %v1108 = vsel %vm1107, %v1088, %v1090
  %v1109 = vsel %vm1107, %v1090, %v1092
  %v1110 = vsel %vm1107, %v1092, %v1094
  %v1111 = vsel %vm1107, %v1094, %v1096
  %v1112 = vsel %vm1107, %v1096, %v1098
  %v1113 = vsel %vm1107, %v1098, %v1100
  %v1114 = vsel %vm1107, %v1100, %v1102
  %v1115 = vsel %vm1107, %v1102, %v1104
  %v1116 = vsel %vm1107, %v1104, %v1106
  %1127 = vset.pattern.permute.xlu0 0
  %1128 = vperm.xlu0 %1127, %v358
  %v1129 = vpop.permute.xlu0 %1128
  %vm1131 = vcmask 588800
  %v1133 = vsel %vm1131, %v357, 0
  %1135 = vmatpush.msra.mxu0 0.0
  %1136 = vmatpush.msra.mxu0 0.0
  %1137 = vmatpush.msra.mxu0 0.0
  %1138 = vmatpush.msra.mxu0 0.0
  %1139 = vmatpush.msra.mxu0 0.0
  %1140 = vmatpush.msra.mxu0 0.0
  %1141 = vmatpush.msra.mxu0 0.0
  %1142 = vmatpush.msra.mxu0 %v1108
  %1143 = vmatpush.msra.mxu0 %v1069
  %1144 = vmatpush.msra.mxu0 %v1030
  %1145 = vmatpush.msra.mxu0 %v991
  %1146 = vmatpush.msra.mxu0 %v955
  %1147 = vmatpush.msra.mxu0 %v919
  %1148 = vmatpush.msra.mxu0 %v883
  %1149 = vmatpush.msra.mxu0 %v847
  %1150 = vmatpush.msra.mxu0 %v809
  %1151 = vmatmul.f32.gmra.mxu0 %v1133
  %v1152 = vpop.f32.mrf.mxu0
  %v1153 = vadd.f32 %v1129, %v1152
  %1154 = vdwg.mxu0
  %1155 = vmatpush.msra.mxu0 0.0
  %1156 = vmatpush.msra.mxu0 0.0
  %1157 = vmatpush.msra.mxu0 0.0
  %1158 = vmatpush.msra.mxu0 0.0
  %1159 = vmatpush.msra.mxu0 0.0
  %1160 = vmatpush.msra.mxu0 0.0
  %1161 = vmatpush.msra.mxu0 0.0
  %1162 = vmatpush.msra.mxu0 %v1109
  %1163 = vmatpush.msra.mxu0 %v1070
  %1164 = vmatpush.msra.mxu0 %v1031
  %1165 = vmatpush.msra.mxu0 %v992
  %1166 = vmatpush.msra.mxu0 %v956
  %1167 = vmatpush.msra.mxu0 %v920
  %1168 = vmatpush.msra.mxu0 %v884
  %1169 = vmatpush.msra.mxu0 %v848
  %1170 = vmatpush.msra.mxu0 %v810
  %1171 = vmatmul.f32.gmra.mxu0 %v1133
  %v1172 = vpop.f32.mrf.mxu0
  %v1173 = vadd.f32 %v1129, %v1172
  %1174 = vdwg.mxu0
  %1175 = vmatpush.msra.mxu0 0.0
  %1176 = vmatpush.msra.mxu0 0.0
  %1177 = vmatpush.msra.mxu0 0.0
  %1178 = vmatpush.msra.mxu0 0.0
  %1179 = vmatpush.msra.mxu0 0.0
  %1180 = vmatpush.msra.mxu0 0.0
  %1181 = vmatpush.msra.mxu0 0.0
  %1182 = vmatpush.msra.mxu0 %v1110
  %1183 = vmatpush.msra.mxu0 %v1071
  %1184 = vmatpush.msra.mxu0 %v1032
  %1185 = vmatpush.msra.mxu0 %v993
  %1186 = vmatpush.msra.mxu0 %v957
  %1187 = vmatpush.msra.mxu0 %v921
  %1188 = vmatpush.msra.mxu0 %v885
  %1189 = vmatpush.msra.mxu0 %v849
  %1190 = vmatpush.msra.mxu0 %v811
  %1191 = vmatmul.f32.gmra.mxu0 %v1133
  %v1192 = vpop.f32.mrf.mxu0
  %v1193 = vadd.f32 %v1129, %v1192
  %1194 = vdwg.mxu0
  %1195 = vmatpush.msra.mxu0 0.0
  %1196 = vmatpush.msra.mxu0 0.0
  %1197 = vmatpush.msra.mxu0 0.0
  %1198 = vmatpush.msra.mxu0 0.0
  %1199 = vmatpush.msra.mxu0 0.0
  %1200 = vmatpush.msra.mxu0 0.0
  %1201 = vmatpush.msra.mxu0 0.0
  %1202 = vmatpush.msra.mxu0 %v1111
  %1203 = vmatpush.msra.mxu0 %v1072
  %1204 = vmatpush.msra.mxu0 %v1033
  %1205 = vmatpush.msra.mxu0 %v994
  %1206 = vmatpush.msra.mxu0 %v958
  %1207 = vmatpush.msra.mxu0 %v922
  %1208 = vmatpush.msra.mxu0 %v886
  %1209 = vmatpush.msra.mxu0 %v850
  %1210 = vmatpush.msra.mxu0 %v812
  %1211 = vmatmul.f32.gmra.mxu0 %v1133
  %v1212 = vpop.f32.mrf.mxu0
  %v1213 = vadd.f32 %v1129, %v1212
  %1214 = vdwg.mxu0
  %1215 = vmatpush.msra.mxu0 0.0
  %1216 = vmatpush.msra.mxu0 0.0
  %1217 = vmatpush.msra.mxu0 0.0
  %1218 = vmatpush.msra.mxu0 0.0
  %1219 = vmatpush.msra.mxu0 0.0
  %1220 = vmatpush.msra.mxu0 0.0
  %1221 = vmatpush.msra.mxu0 0.0
  %1222 = vmatpush.msra.mxu0 %v1112
  %1223 = vmatpush.msra.mxu0 %v1073
  %1224 = vmatpush.msra.mxu0 %v1034
  %1225 = vmatpush.msra.mxu0 %v995
  %1226 = vmatpush.msra.mxu0 %v959
  %1227 = vmatpush.msra.mxu0 %v923
  %1228 = vmatpush.msra.mxu0 %v887
  %1229 = vmatpush.msra.mxu0 %v851
  %1230 = vmatpush.msra.mxu0 %v813
  %1231 = vmatmul.f32.gmra.mxu0 %v1133
  %v1232 = vpop.f32.mrf.mxu0
  %v1233 = vadd.f32 %v1129, %v1232
  %1234 = vdwg.mxu0
  %1235 = vmatpush.msra.mxu0 0.0
  %1236 = vmatpush.msra.mxu0 0.0
  %1237 = vmatpush.msra.mxu0 0.0
  %1238 = vmatpush.msra.mxu0 0.0
  %1239 = vmatpush.msra.mxu0 0.0
  %1240 = vmatpush.msra.mxu0 0.0
  %1241 = vmatpush.msra.mxu0 0.0
  %1242 = vmatpush.msra.mxu0 %v1113
  %1243 = vmatpush.msra.mxu0 %v1074
  %1244 = vmatpush.msra.mxu0 %v1035
  %1245 = vmatpush.msra.mxu0 %v996
  %1246 = vmatpush.msra.mxu0 %v960
  %1247 = vmatpush.msra.mxu0 %v924
  %1248 = vmatpush.msra.mxu0 %v888
  %1249 = vmatpush.msra.mxu0 %v852
  %1250 = vmatpush.msra.mxu0 %v814
  %1251 = vmatmul.f32.gmra.mxu0 %v1133
  %v1252 = vpop.f32.mrf.mxu0
  %v1253 = vadd.f32 %v1129, %v1252
  %1254 = vdwg.mxu0
  %1255 = vmatpush.msra.mxu0 0.0
  %1256 = vmatpush.msra.mxu0 0.0
  %1257 = vmatpush.msra.mxu0 0.0
  %1258 = vmatpush.msra.mxu0 0.0
  %1259 = vmatpush.msra.mxu0 0.0
  %1260 = vmatpush.msra.mxu0 0.0
  %1261 = vmatpush.msra.mxu0 0.0
  %1262 = vmatpush.msra.mxu0 %v1114
  %1263 = vmatpush.msra.mxu0 %v1075
  %1264 = vmatpush.msra.mxu0 %v1036
  %1265 = vmatpush.msra.mxu0 %v997
  %1266 = vmatpush.msra.mxu0 %v961
  %1267 = vmatpush.msra.mxu0 %v925
  %1268 = vmatpush.msra.mxu0 %v889
  %1269 = vmatpush.msra.mxu0 %v853
  %1270 = vmatpush.msra.mxu0 %v815
  %1271 = vmatmul.f32.gmra.mxu0 %v1133
  %v1272 = vpop.f32.mrf.mxu0
  %v1273 = vadd.f32 %v1129, %v1272
  %1274 = vdwg.mxu0
  %1275 = vmatpush.msra.mxu0 0.0
  %1276 = vmatpush.msra.mxu0 0.0
  %1277 = vmatpush.msra.mxu0 0.0
  %1278 = vmatpush.msra.mxu0 0.0
  %1279 = vmatpush.msra.mxu0 0.0
  %1280 = vmatpush.msra.mxu0 0.0
  %1281 = vmatpush.msra.mxu0 0.0
  %1282 = vmatpush.msra.mxu0 %v1115
  %1283 = vmatpush.msra.mxu0 %v1076
  %1284 = vmatpush.msra.mxu0 %v1037
  %1285 = vmatpush.msra.mxu0 %v998
  %1286 = vmatpush.msra.mxu0 %v962
  %1287 = vmatpush.msra.mxu0 %v926
  %1288 = vmatpush.msra.mxu0 %v890
  %1289 = vmatpush.msra.mxu0 %v854
  %1290 = vmatpush.msra.mxu0 %v816
  %1291 = vmatmul.f32.gmra.mxu0 %v1133
  %v1292 = vpop.f32.mrf.mxu0
  %v1293 = vadd.f32 %v1129, %v1292
  %1294 = vdwg.mxu0
  %1295 = vmatpush.msra.mxu0 0.0
  %1296 = vmatpush.msra.mxu0 0.0
  %1297 = vmatpush.msra.mxu0 0.0
  %1298 = vmatpush.msra.mxu0 0.0
  %1299 = vmatpush.msra.mxu0 0.0
  %1300 = vmatpush.msra.mxu0 0.0
  %1301 = vmatpush.msra.mxu0 0.0
  %1302 = vmatpush.msra.mxu0 %v1116
  %1303 = vmatpush.msra.mxu0 %v1077
  %1304 = vmatpush.msra.mxu0 %v1038
  %1305 = vmatpush.msra.mxu0 %v989
  %1306 = vmatpush.msra.mxu0 %v953
  %1307 = vmatpush.msra.mxu0 %v917
  %1308 = vmatpush.msra.mxu0 %v881
  %1309 = vmatpush.msra.mxu0 %v845
  %1310 = vmatpush.msra.mxu0 %v817
  %1311 = vmatmul.f32.gmra.mxu0 %v1133
  %v1312 = vpop.f32.mrf.mxu0
  %v1313 = vadd.f32 %v1129, %v1312
  %1314 = vdwg.mxu0
  %v1315 = vmax.f32 %v1153, 0.0
  %v1316 = vmax.f32 %v1173, 0.0
  %v1317 = vmax.f32 %v1193, 0.0
  %v1318 = vmax.f32 %v1213, 0.0
  %v1319 = vmax.f32 %v1233, 0.0
  %v1320 = vmax.f32 %v1253, 0.0
  %v1321 = vmax.f32 %v1273, 0.0
  %v1322 = vmax.f32 %v1293, 0.0
  %v1323 = vmax.f32 %v1313, 0.0
  %v1326 = vperm.slane %v361, 0
  %v1327 = vperm.slane %v361, 1
  %v1328 = vperm.slane %v361, 2
  %v1329 = vperm.slane %v361, 3
  %v1330 = vperm.slane %v361, 4
  %v1331 = vperm.slane %v361, 5
  %v1332 = vperm.slane %v361, 6
  %v1333 = vperm.slane %v361, 7
  %v1334 = vperm.slane %v362, 0
  %v1344 = vmul.f32 %v1315, %v1326
  %v1345 = vmul.f32 %v1316, %v1327
  %v1346 = vmul.f32 %v1317, %v1328
  %v1347 = vmul.f32 %v1318, %v1329
  %v1348 = vmul.f32 %v1319, %v1330
  %v1349 = vmul.f32 %v1320, %v1331
  %v1350 = vmul.f32 %v1321, %v1332
  %v1351 = vmul.f32 %v1322, %v1333
  %v1352 = vmul.f32 %v1323, %v1334
  %v1362 = vrot.slane %v1345, 4
  %v1363 = vrot.slane %v1347, 4
  %v1364 = vrot.slane %v1349, 4
  %v1365 = vrot.slane %v1351, 4
  %v1366 = vsel %vm33, %v1344, %v1362
  %v1367 = vsel %vm33, %v1346, %v1363
  %v1368 = vsel %vm33, %v1348, %v1364
  %v1369 = vsel %vm33, %v1350, %v1365
  %1370 = vrot.lane.b32.xlu0 %v1366, 35
  %v1371 = vpop.permute.xlu0 %1370
  %1372 = vrot.lane.b32.xlu0 %v1367, 35
  %v1373 = vpop.permute.xlu0 %1372
  %1374 = vrot.lane.b32.xlu0 %v1368, 35
  %v1375 = vpop.permute.xlu0 %1374
  %1376 = vrot.lane.b32.xlu0 %v1369, 35
  %v1377 = vpop.permute.xlu0 %1376
  %1378 = vrot.lane.b32.xlu0 %v1352, 35
  %v1379 = vpop.permute.xlu0 %1378
  %v1380 = vrot.slane %v1371, 4
  %v1381 = vrot.slane %v1373, 4
  %v1382 = vrot.slane %v1375, 4
  %v1383 = vrot.slane %v1377, 4
  %vm1384 = vcmask 285696
  %v1385 = vsel %vm1384, %v1380, %v1371
  %v1386 = vsel %vm33, %v1380, %v1381
  %v1387 = vsel %vm1384, %v1386, %v1373
  %v1388 = vsel %vm33, %v1381, %v1382
  %v1389 = vsel %vm1384, %v1388, %v1375
  %v1390 = vsel %vm33, %v1382, %v1383
  %v1391 = vsel %vm1384, %v1390, %v1377
  %v1392 = vsel %vm1384, %v1383, %v1379
  %vm1398 = vcmask 1043736
  %vm1399 = vcmask 1047556
  %vm1400 = vmor %vm1399, %vm1398
  %1401 = vst.msk [vmem:[#allocation2] sm:$0xff] %vm1400, %v1385
  %1402 = vst [vmem:[#allocation2 + $0x8] sm:$0xff] %v1387
  %1403 = vst [vmem:[#allocation2 + $0x10] sm:$0xff] %v1389
  %1404 = vst [vmem:[#allocation2 + $0x18] sm:$0xff] %v1391
  %vm1405 = vcmask 805888
  %1406 = vst.msk [vmem:[#allocation2 + $0x20] sm:$0xf] %vm1405, %v1392
  %v1407 = vld [vmem:[#allocation2] sm:$0xff]
  %v1408 = vld [vmem:[#allocation2 + $0x8] sm:$0xff]
  %v1409 = vld [vmem:[#allocation2 + $0x10] sm:$0xff]
  %v1410 = vld [vmem:[#allocation2 + $0x18] sm:$0xff]
  %v1411 = vld [vmem:[#allocation2 + $0x20] sm:$0xff]
  %1417 = vst [vmem:[#allocation1] ss:$2 sm:$0xff] %v1407
  %s1418 = scalar_lea.vmem [#allocation1], 16
  %1419 = vst [vmem:[%s1418] ss:$2 sm:$0xff] %v1408
  %s1420 = scalar_lea.vmem [#allocation1], 32
  %1421 = vst [vmem:[%s1420] ss:$2 sm:$0xff] %v1409
  %s1422 = scalar_lea.vmem [#allocation1], 48
  %1423 = vst [vmem:[%s1422] ss:$2 sm:$0xff] %v1410
  %v1424 = vld.sshfl [vmem:[#allocation1] sm:$0xff pattern:$0x75316420]
  %v1425 = vld.sshfl [vmem:[#allocation1 + $0x8] sm:$0xff pattern:$0x75316420]
  %v1426 = vld.sshfl [vmem:[#allocation1 + $0x10] sm:$0xff pattern:$0x75316420]
  %v1427 = vld.sshfl [vmem:[#allocation1 + $0x18] sm:$0xff pattern:$0x75316420]
  %v1428 = vld.sshfl [vmem:[#allocation1 + $0x20] sm:$0xff pattern:$0x75316420]
  %v1429 = vld.sshfl [vmem:[#allocation1 + $0x28] sm:$0xff pattern:$0x75316420]
  %v1430 = vld.sshfl [vmem:[#allocation1 + $0x30] sm:$0xff pattern:$0x75316420]
  %v1431 = vld.sshfl [vmem:[#allocation1 + $0x38] sm:$0xff pattern:$0x75316420]
  %1432 = vst [vmem:[#allocation1] ss:$2 sm:$0xff] %v1411
  %v1433 = vld.sshfl [vmem:[#allocation1] sm:$0xff pattern:$0x75316420]
  %s1443 = scalar_lea.vmem [#allocation1], 1
  %1444 = vst [vmem:[%s1443] ss:$2 sm:$0xff] %v1407
  %s1445 = scalar_lea.vmem [#allocation1], 17
  %1446 = vst [vmem:[%s1445] ss:$2 sm:$0xff] %v1408
  %s1447 = scalar_lea.vmem [#allocation1], 33
  %1448 = vst [vmem:[%s1447] ss:$2 sm:$0xff] %v1409
  %s1449 = scalar_lea.vmem [#allocation1], 49
  %1450 = vst [vmem:[%s1449] ss:$2 sm:$0xff] %v1410
  %v1451 = vld.sshfl [vmem:[#allocation1] sm:$0xff pattern:$0x75316420]
  %v1452 = vld.sshfl [vmem:[#allocation1 + $0x8] sm:$0xff pattern:$0x75316420]
  %v1453 = vld.sshfl [vmem:[#allocation1 + $0x10] sm:$0xff pattern:$0x75316420]
  %v1454 = vld.sshfl [vmem:[#allocation1 + $0x18] sm:$0xff pattern:$0x75316420]
  %v1455 = vld.sshfl [vmem:[#allocation1 + $0x20] sm:$0xff pattern:$0x75316420]
  %v1456 = vld.sshfl [vmem:[#allocation1 + $0x28] sm:$0xff pattern:$0x75316420]
  %v1457 = vld.sshfl [vmem:[#allocation1 + $0x30] sm:$0xff pattern:$0x75316420]
  %v1458 = vld.sshfl [vmem:[#allocation1 + $0x38] sm:$0xff pattern:$0x75316420]
  %1459 = vst [vmem:[%s1443] ss:$2 sm:$0xff] %v1411
  %v1460 = vld.sshfl [vmem:[#allocation1] sm:$0xff pattern:$0x75316420]
  %1461 = vrot.lane.b32.xlu0 %v1451, 127
  %v1462 = vpop.permute.xlu0 %1461
  %1463 = vrot.lane.b32.xlu0 %v1452, 127
  %v1464 = vpop.permute.xlu0 %1463
  %1465 = vrot.lane.b32.xlu0 %v1453, 127
  %v1466 = vpop.permute.xlu0 %1465
  %1467 = vrot.lane.b32.xlu0 %v1454, 127
  %v1468 = vpop.permute.xlu0 %1467
  %1469 = vrot.lane.b32.xlu0 %v1455, 127
  %v1470 = vpop.permute.xlu0 %1469
  %1471 = vrot.lane.b32.xlu0 %v1456, 127
  %v1472 = vpop.permute.xlu0 %1471
  %1473 = vrot.lane.b32.xlu0 %v1457, 127
  %v1474 = vpop.permute.xlu0 %1473
  %1475 = vrot.lane.b32.xlu0 %v1458, 127
  %v1476 = vpop.permute.xlu0 %1475
  %1477 = vrot.lane.b32.xlu0 %v1460, 127
  %v1478 = vpop.permute.xlu0 %1477
  %v1479 = vsel %vm846, %v1462, %v1464
  %v1480 = vsel %vm846, %v1464, %v1466
  %v1481 = vsel %vm846, %v1466, %v1468
  %v1482 = vsel %vm846, %v1468, %v1470
  %v1483 = vsel %vm846, %v1470, %v1472
  %v1484 = vsel %vm846, %v1472, %v1474
  %v1485 = vsel %vm846, %v1474, %v1476
  %v1486 = vsel %vm846, %v1476, %v1478
  %1496 = vst [vmem:[#allocation1] ss:$2 sm:$0xff] %v1407
  %s1497 = scalar_lea.vmem [#allocation1], 16
  %1498 = vst [vmem:[%s1497] ss:$2 sm:$0xff] %v1408
  %s1499 = scalar_lea.vmem [#allocation1], 32
  %1500 = vst [vmem:[%s1499] ss:$2 sm:$0xff] %v1409
  %s1501 = scalar_lea.vmem [#allocation1], 48
  %1502 = vst [vmem:[%s1501] ss:$2 sm:$0xff] %v1410
  %v1503 = vld.sshfl [vmem:[#allocation1] sm:$0xff pattern:$0x75316420]
  %v1504 = vld.sshfl [vmem:[#allocation1 + $0x8] sm:$0xff pattern:$0x75316420]
  %v1505 = vld.sshfl [vmem:[#allocation1 + $0x10] sm:$0xff pattern:$0x75316420]
  %v1506 = vld.sshfl [vmem:[#allocation1 + $0x18] sm:$0xff pattern:$0x75316420]
  %v1507 = vld.sshfl [vmem:[#allocation1 + $0x20] sm:$0xff pattern:$0x75316420]
  %v1508 = vld.sshfl [vmem:[#allocation1 + $0x28] sm:$0xff pattern:$0x75316420]
  %v1509 = vld.sshfl [vmem:[#allocation1 + $0x30] sm:$0xff pattern:$0x75316420]
  %v1510 = vld.sshfl [vmem:[#allocation1 + $0x38] sm:$0xff pattern:$0x75316420]
  %1511 = vst [vmem:[#allocation1] ss:$2 sm:$0xff] %v1411
  %v1512 = vld.sshfl [vmem:[#allocation1] sm:$0xff pattern:$0x75316420]
  %1513 = vrot.lane.b32.xlu0 %v1503, 126
  %v1514 = vpop.permute.xlu0 %1513
  %1515 = vrot.lane.b32.xlu0 %v1504, 126
  %v1516 = vpop.permute.xlu0 %1515
  %1517 = vrot.lane.b32.xlu0 %v1505, 126
  %v1518 = vpop.permute.xlu0 %1517
  %1519 = vrot.lane.b32.xlu0 %v1506, 126
  %v1520 = vpop.permute.xlu0 %1519
  %1521 = vrot.lane.b32.xlu0 %v1507, 126
  %v1522 = vpop.permute.xlu0 %1521
  %1523 = vrot.lane.b32.xlu0 %v1508, 126
  %v1524 = vpop.permute.xlu0 %1523
  %1525 = vrot.lane.b32.xlu0 %v1509, 126
  %v1526 = vpop.permute.xlu0 %1525
  %1527 = vrot.lane.b32.xlu0 %v1510, 126
  %v1528 = vpop.permute.xlu0 %1527
  %1529 = vrot.lane.b32.xlu0 %v1512, 126
  %v1530 = vpop.permute.xlu0 %1529
  %v1531 = vsel %vm882, %v1514, %v1516
  %v1532 = vsel %vm882, %v1516, %v1518
  %v1533 = vsel %vm882, %v1518, %v1520
  %v1534 = vsel %vm882, %v1520, %v1522
  %v1535 = vsel %vm882, %v1522, %v1524
  %v1536 = vsel %vm882, %v1524, %v1526
  %v1537 = vsel %vm882, %v1526, %v1528
  %v1538 = vsel %vm882, %v1528, %v1530
  %s1548 = scalar_lea.vmem [#allocation1], 1
  %1549 = vst [vmem:[%s1548] ss:$2 sm:$0xff] %v1407
  %s1550 = scalar_lea.vmem [#allocation1], 17
  %1551 = vst [vmem:[%s1550] ss:$2 sm:$0xff] %v1408
  %s1552 = scalar_lea.vmem [#allocation1], 33
  %1553 = vst [vmem:[%s1552] ss:$2 sm:$0xff] %v1409
  %s1554 = scalar_lea.vmem [#allocation1], 49
  %1555 = vst [vmem:[%s1554] ss:$2 sm:$0xff] %v1410
  %v1556 = vld.sshfl [vmem:[#allocation1] sm:$0xff pattern:$0x75316420]
  %v1557 = vld.sshfl [vmem:[#allocation1 + $0x8] sm:$0xff pattern:$0x75316420]
  %v1558 = vld.sshfl [vmem:[#allocation1 + $0x10] sm:$0xff pattern:$0x75316420]
  %v1559 = vld.sshfl [vmem:[#allocation1 + $0x18] sm:$0xff pattern:$0x75316420]
  %v1560 = vld.sshfl [vmem:[#allocation1 + $0x20] sm:$0xff pattern:$0x75316420]
  %v1561 = vld.sshfl [vmem:[#allocation1 + $0x28] sm:$0xff pattern:$0x75316420]
  %v1562 = vld.sshfl [vmem:[#allocation1 + $0x30] sm:$0xff pattern:$0x75316420]
  %v1563 = vld.sshfl [vmem:[#allocation1 + $0x38] sm:$0xff pattern:$0x75316420]
  %1564 = vst [vmem:[%s1548] ss:$2 sm:$0xff] %v1411
  %v1565 = vld.sshfl [vmem:[#allocation1] sm:$0xff pattern:$0x75316420]
  %1566 = vrot.lane.b32.xlu0 %v1556, 94
  %v1567 = vpop.permute.xlu0 %1566
  %1568 = vrot.lane.b32.xlu0 %v1557, 94
  %v1569 = vpop.permute.xlu0 %1568
  %1570 = vrot.lane.b32.xlu0 %v1558, 94
  %v1571 = vpop.permute.xlu0 %1570
  %1572 = vrot.lane.b32.xlu0 %v1559, 94
  %v1573 = vpop.permute.xlu0 %1572
  %1574 = vrot.lane.b32.xlu0 %v1560, 94
  %v1575 = vpop.permute.xlu0 %1574
  %1576 = vrot.lane.b32.xlu0 %v1561, 94
  %v1577 = vpop.permute.xlu0 %1576
  %1578 = vrot.lane.b32.xlu0 %v1562, 94
  %v1579 = vpop.permute.xlu0 %1578
  %1580 = vrot.lane.b32.xlu0 %v1563, 94
  %v1581 = vpop.permute.xlu0 %1580
  %1582 = vrot.lane.b32.xlu0 %v1565, 94
  %v1583 = vpop.permute.xlu0 %1582
  %v1584 = vsel %vm918, %v1567, %v1569
  %v1585 = vsel %vm918, %v1569, %v1571
  %v1586 = vsel %vm918, %v1571, %v1573
  %v1587 = vsel %vm918, %v1573, %v1575
  %v1588 = vsel %vm918, %v1575, %v1577
  %v1589 = vsel %vm918, %v1577, %v1579
  %v1590 = vsel %vm918, %v1579, %v1581
  %v1591 = vsel %vm918, %v1581, %v1583
  %1601 = vst [vmem:[#allocation1] ss:$2 sm:$0xff] %v1407
  %s1602 = scalar_lea.vmem [#allocation1], 16
  %1603 = vst [vmem:[%s1602] ss:$2 sm:$0xff] %v1408
  %s1604 = scalar_lea.vmem [#allocation1], 32
  %1605 = vst [vmem:[%s1604] ss:$2 sm:$0xff] %v1409
  %s1606 = scalar_lea.vmem [#allocation1], 48
  %1607 = vst [vmem:[%s1606] ss:$2 sm:$0xff] %v1410
  %v1608 = vld.sshfl [vmem:[#allocation1] sm:$0xff pattern:$0x75316420]
  %v1609 = vld.sshfl [vmem:[#allocation1 + $0x8] sm:$0xff pattern:$0x75316420]
  %v1610 = vld.sshfl [vmem:[#allocation1 + $0x10] sm:$0xff pattern:$0x75316420]
  %v1611 = vld.sshfl [vmem:[#allocation1 + $0x18] sm:$0xff pattern:$0x75316420]
  %v1612 = vld.sshfl [vmem:[#allocation1 + $0x20] sm:$0xff pattern:$0x75316420]
  %v1613 = vld.sshfl [vmem:[#allocation1 + $0x28] sm:$0xff pattern:$0x75316420]
  %v1614 = vld.sshfl [vmem:[#allocation1 + $0x30] sm:$0xff pattern:$0x75316420]
  %v1615 = vld.sshfl [vmem:[#allocation1 + $0x38] sm:$0xff pattern:$0x75316420]
  %1616 = vst [vmem:[#allocation1] ss:$2 sm:$0xff] %v1411
  %v1617 = vld.sshfl [vmem:[#allocation1] sm:$0xff pattern:$0x75316420]
  %1618 = vrot.lane.b32.xlu0 %v1608, 93
  %v1619 = vpop.permute.xlu0 %1618
  %1620 = vrot.lane.b32.xlu0 %v1609, 93
  %v1621 = vpop.permute.xlu0 %1620
  %1622 = vrot.lane.b32.xlu0 %v1610, 93
  %v1623 = vpop.permute.xlu0 %1622
  %1624 = vrot.lane.b32.xlu0 %v1611, 93
  %v1625 = vpop.permute.xlu0 %1624
  %1626 = vrot.lane.b32.xlu0 %v1612, 93
  %v1627 = vpop.permute.xlu0 %1626
  %1628 = vrot.lane.b32.xlu0 %v1613, 93
  %v1629 = vpop.permute.xlu0 %1628
  %1630 = vrot.lane.b32.xlu0 %v1614, 93
  %v1631 = vpop.permute.xlu0 %1630
  %1632 = vrot.lane.b32.xlu0 %v1615, 93
  %v1633 = vpop.permute.xlu0 %1632
  %1634 = vrot.lane.b32.xlu0 %v1617, 93
  %v1635 = vpop.permute.xlu0 %1634
  %v1636 = vsel %vm954, %v1619, %v1621
  %v1637 = vsel %vm954, %v1621, %v1623
  %v1638 = vsel %vm954, %v1623, %v1625
  %v1639 = vsel %vm954, %v1625, %v1627
  %v1640 = vsel %vm954, %v1627, %v1629
  %v1641 = vsel %vm954, %v1629, %v1631
  %v1642 = vsel %vm954, %v1631, %v1633
  %v1643 = vsel %vm954, %v1633, %v1635
  %s1653 = scalar_lea.vmem [#allocation1], 1
  %1654 = vst [vmem:[%s1653] ss:$2 sm:$0xff] %v1407
  %s1655 = scalar_lea.vmem [#allocation1], 17
  %1656 = vst [vmem:[%s1655] ss:$2 sm:$0xff] %v1408
  %s1657 = scalar_lea.vmem [#allocation1], 33
  %1658 = vst [vmem:[%s1657] ss:$2 sm:$0xff] %v1409
  %s1659 = scalar_lea.vmem [#allocation1], 49
  %1660 = vst [vmem:[%s1659] ss:$2 sm:$0xff] %v1410
  %v1661 = vld.sshfl [vmem:[#allocation1] sm:$0xff pattern:$0x75316420]
  %v1662 = vld.sshfl [vmem:[#allocation1 + $0x8] sm:$0xff pattern:$0x75316420]
  %v1663 = vld.sshfl [vmem:[#allocation1 + $0x10] sm:$0xff pattern:$0x75316420]
  %v1664 = vld.sshfl [vmem:[#allocation1 + $0x18] sm:$0xff pattern:$0x75316420]
  %v1665 = vld.sshfl [vmem:[#allocation1 + $0x20] sm:$0xff pattern:$0x75316420]
  %v1666 = vld.sshfl [vmem:[#allocation1 + $0x28] sm:$0xff pattern:$0x75316420]
  %v1667 = vld.sshfl [vmem:[#allocation1 + $0x30] sm:$0xff pattern:$0x75316420]
  %v1668 = vld.sshfl [vmem:[#allocation1 + $0x38] sm:$0xff pattern:$0x75316420]
  %1669 = vst [vmem:[%s1653] ss:$2 sm:$0xff] %v1411
  %v1670 = vld.sshfl [vmem:[#allocation1] sm:$0xff pattern:$0x75316420]
  %1671 = vrot.lane.b32.xlu0 %v1661, 92
  %v1672 = vpop.permute.xlu0 %1671
  %1673 = vrot.lane.b32.xlu0 %v1662, 92
  %v1674 = vpop.permute.xlu0 %1673
  %1675 = vrot.lane.b32.xlu0 %v1663, 92
  %v1676 = vpop.permute.xlu0 %1675
  %1677 = vrot.lane.b32.xlu0 %v1664, 92
  %v1678 = vpop.permute.xlu0 %1677
  %1679 = vrot.lane.b32.xlu0 %v1665, 92
  %v1680 = vpop.permute.xlu0 %1679
  %1681 = vrot.lane.b32.xlu0 %v1666, 92
  %v1682 = vpop.permute.xlu0 %1681
  %1683 = vrot.lane.b32.xlu0 %v1667, 92
  %v1684 = vpop.permute.xlu0 %1683
  %1685 = vrot.lane.b32.xlu0 %v1668, 92
  %v1686 = vpop.permute.xlu0 %1685
  %1687 = vrot.lane.b32.xlu0 %v1670, 92
  %v1688 = vpop.permute.xlu0 %1687
  %v1689 = vsel %vm990, %v1672, %v1674
  %v1690 = vsel %vm990, %v1674, %v1676
  %v1691 = vsel %vm990, %v1676, %v1678
  %v1692 = vsel %vm990, %v1678, %v1680
  %v1693 = vsel %vm990, %v1680, %v1682
  %v1694 = vsel %vm990, %v1682, %v1684
  %v1695 = vsel %vm990, %v1684, %v1686
  %v1696 = vsel %vm990, %v1686, %v1688
  %1706 = vst [vmem:[#allocation1] ss:$2 sm:$0xff] %v1407
  %s1707 = scalar_lea.vmem [#allocation1], 16
  %1708 = vst [vmem:[%s1707] ss:$2 sm:$0xff] %v1408
  %s1709 = scalar_lea.vmem [#allocation1], 32
  %1710 = vst [vmem:[%s1709] ss:$2 sm:$0xff] %v1409
  %s1711 = scalar_lea.vmem [#allocation1], 48
  %1712 = vst [vmem:[%s1711] ss:$2 sm:$0xff] %v1410
  %v1713 = vld.sshfl [vmem:[#allocation1] sm:$0xff pattern:$0x75316420]
  %v1714 = vld.sshfl [vmem:[#allocation1 + $0x8] sm:$0xff pattern:$0x75316420]
  %v1715 = vld.sshfl [vmem:[#allocation1 + $0x10] sm:$0xff pattern:$0x75316420]
  %v1716 = vld.sshfl [vmem:[#allocation1 + $0x18] sm:$0xff pattern:$0x75316420]
  %v1717 = vld.sshfl [vmem:[#allocation1 + $0x20] sm:$0xff pattern:$0x75316420]
  %v1718 = vld.sshfl [vmem:[#allocation1 + $0x28] sm:$0xff pattern:$0x75316420]
  %v1719 = vld.sshfl [vmem:[#allocation1 + $0x30] sm:$0xff pattern:$0x75316420]
  %v1720 = vld.sshfl [vmem:[#allocation1 + $0x38] sm:$0xff pattern:$0x75316420]
  %1721 = vst [vmem:[#allocation1] ss:$2 sm:$0xff] %v1411
  %v1722 = vld.sshfl [vmem:[#allocation1] sm:$0xff pattern:$0x75316420]
  %v1723 = vld.sshfl [vmem:[#allocation1 + $0x8] sm:$0xff pattern:$0x75316420]
  %1724 = vrot.lane.b32.xlu0 %v1713, 60
  %v1725 = vpop.permute.xlu0 %1724
  %1726 = vrot.lane.b32.xlu0 %v1714, 60
  %v1727 = vpop.permute.xlu0 %1726
  %1728 = vrot.lane.b32.xlu0 %v1715, 60
  %v1729 = vpop.permute.xlu0 %1728
  %1730 = vrot.lane.b32.xlu0 %v1716, 60
  %v1731 = vpop.permute.xlu0 %1730
  %1732 = vrot.lane.b32.xlu0 %v1717, 60
  %v1733 = vpop.permute.xlu0 %1732
  %1734 = vrot.lane.b32.xlu0 %v1718, 60
  %v1735 = vpop.permute.xlu0 %1734
  %1736 = vrot.lane.b32.xlu0 %v1719, 60
  %v1737 = vpop.permute.xlu0 %1736
  %1738 = vrot.lane.b32.xlu0 %v1720, 60
  %v1739 = vpop.permute.xlu0 %1738
  %1740 = vrot.lane.b32.xlu0 %v1722, 60
  %v1741 = vpop.permute.xlu0 %1740
  %1742 = vrot.lane.b32.xlu0 %v1723, 60
  %v1743 = vpop.permute.xlu0 %1742
  %v1744 = vsel %vm1029, %v1725, %v1727
  %v1745 = vsel %vm1029, %v1727, %v1729
  %v1746 = vsel %vm1029, %v1729, %v1731
  %v1747 = vsel %vm1029, %v1731, %v1733
  %v1748 = vsel %vm1029, %v1733, %v1735
  %v1749 = vsel %vm1029, %v1735, %v1737
  %v1750 = vsel %vm1029, %v1737, %v1739
  %v1751 = vsel %vm1029, %v1739, %v1741
  %v1752 = vsel %vm1029, %v1741, %v1743
  %s1762 = scalar_lea.vmem [#allocation1], 1
  %1763 = vst [vmem:[%s1762] ss:$2 sm:$0xff] %v1407
  %s1764 = scalar_lea.vmem [#allocation1], 17
  %1765 = vst [vmem:[%s1764] ss:$2 sm:$0xff] %v1408
  %s1766 = scalar_lea.vmem [#allocation1], 33
  %1767 = vst [vmem:[%s1766] ss:$2 sm:$0xff] %v1409
  %s1768 = scalar_lea.vmem [#allocation1], 49
  %1769 = vst [vmem:[%s1768] ss:$2 sm:$0xff] %v1410
  %v1770 = vld.sshfl [vmem:[#allocation1] sm:$0xff pattern:$0x75316420]
  %v1771 = vld.sshfl [vmem:[#allocation1 + $0x8] sm:$0xff pattern:$0x75316420]
  %v1772 = vld.sshfl [vmem:[#allocation1 + $0x10] sm:$0xff pattern:$0x75316420]
  %v1773 = vld.sshfl [vmem:[#allocation1 + $0x18] sm:$0xff pattern:$0x75316420]
  %v1774 = vld.sshfl [vmem:[#allocation1 + $0x20] sm:$0xff pattern:$0x75316420]
  %v1775 = vld.sshfl [vmem:[#allocation1 + $0x28] sm:$0xff pattern:$0x75316420]
  %v1776 = vld.sshfl [vmem:[#allocation1 + $0x30] sm:$0xff pattern:$0x75316420]
  %v1777 = vld.sshfl [vmem:[#allocation1 + $0x38] sm:$0xff pattern:$0x75316420]
  %1778 = vst [vmem:[%s1762] ss:$2 sm:$0xff] %v1411
  %v1779 = vld.sshfl [vmem:[#allocation1] sm:$0xff pattern:$0x75316420]
  %v1780 = vld.sshfl [vmem:[#allocation1 + $0x8] sm:$0xff pattern:$0x75316420]
  %1781 = vrot.lane.b32.xlu0 %v1770, 59
  %v1782 = vpop.permute.xlu0 %1781
  %1783 = vrot.lane.b32.xlu0 %v1771, 59
  %v1784 = vpop.permute.xlu0 %1783
  %1785 = vrot.lane.b32.xlu0 %v1772, 59
  %v1786 = vpop.permute.xlu0 %1785
  %1787 = vrot.lane.b32.xlu0 %v1773, 59
  %v1788 = vpop.permute.xlu0 %1787
  %1789 = vrot.lane.b32.xlu0 %v1774, 59
  %v1790 = vpop.permute.xlu0 %1789
  %1791 = vrot.lane.b32.xlu0 %v1775, 59
  %v1792 = vpop.permute.xlu0 %1791
  %1793 = vrot.lane.b32.xlu0 %v1776, 59
  %v1794 = vpop.permute.xlu0 %1793
  %1795 = vrot.lane.b32.xlu0 %v1777, 59
  %v1796 = vpop.permute.xlu0 %1795
  %1797 = vrot.lane.b32.xlu0 %v1779, 59
  %v1798 = vpop.permute.xlu0 %1797
  %1799 = vrot.lane.b32.xlu0 %v1780, 59
  %v1800 = vpop.permute.xlu0 %1799
  %v1801 = vsel %vm1068, %v1782, %v1784
  %v1802 = vsel %vm1068, %v1784, %v1786
  %v1803 = vsel %vm1068, %v1786, %v1788
  %v1804 = vsel %vm1068, %v1788, %v1790
  %v1805 = vsel %vm1068, %v1790, %v1792
  %v1806 = vsel %vm1068, %v1792, %v1794
  %v1807 = vsel %vm1068, %v1794, %v1796
  %v1808 = vsel %vm1068, %v1796, %v1798
  %v1809 = vsel %vm1068, %v1798, %v1800
  %1819 = vst [vmem:[#allocation1] ss:$2 sm:$0xff] %v1407
  %s1820 = scalar_lea.vmem [#allocation1], 16
  %1821 = vst [vmem:[%s1820] ss:$2 sm:$0xff] %v1408
  %s1822 = scalar_lea.vmem [#allocation1], 32
  %1823 = vst [vmem:[%s1822] ss:$2 sm:$0xff] %v1409
  %s1824 = scalar_lea.vmem [#allocation1], 48
  %1825 = vst [vmem:[%s1824] ss:$2 sm:$0xff] %v1410
  %v1826 = vld.sshfl [vmem:[#allocation1] sm:$0xff pattern:$0x75316420]
  %v1827 = vld.sshfl [vmem:[#allocation1 + $0x8] sm:$0xff pattern:$0x75316420]
  %v1828 = vld.sshfl [vmem:[#allocation1 + $0x10] sm:$0xff pattern:$0x75316420]
  %v1829 = vld.sshfl [vmem:[#allocation1 + $0x18] sm:$0xff pattern:$0x75316420]
  %v1830 = vld.sshfl [vmem:[#allocation1 + $0x20] sm:$0xff pattern:$0x75316420]
  %v1831 = vld.sshfl [vmem:[#allocation1 + $0x28] sm:$0xff pattern:$0x75316420]
  %v1832 = vld.sshfl [vmem:[#allocation1 + $0x30] sm:$0xff pattern:$0x75316420]
  %v1833 = vld.sshfl [vmem:[#allocation1 + $0x38] sm:$0xff pattern:$0x75316420]
  %1834 = vst [vmem:[#allocation1] ss:$2 sm:$0xff] %v1411
  %v1835 = vld.sshfl [vmem:[#allocation1] sm:$0xff pattern:$0x75316420]
  %v1836 = vld.sshfl [vmem:[#allocation1 + $0x8] sm:$0xff pattern:$0x75316420]
  %1837 = vrot.lane.b32.xlu0 %v1826, 58
  %v1838 = vpop.permute.xlu0 %1837
  %1839 = vrot.lane.b32.xlu0 %v1827, 58
  %v1840 = vpop.permute.xlu0 %1839
  %1841 = vrot.lane.b32.xlu0 %v1828, 58
  %v1842 = vpop.permute.xlu0 %1841
  %1843 = vrot.lane.b32.xlu0 %v1829, 58
  %v1844 = vpop.permute.xlu0 %1843
  %1845 = vrot.lane.b32.xlu0 %v1830, 58
  %v1846 = vpop.permute.xlu0 %1845
  %1847 = vrot.lane.b32.xlu0 %v1831, 58
  %v1848 = vpop.permute.xlu0 %1847
  %1849 = vrot.lane.b32.xlu0 %v1832, 58
  %v1850 = vpop.permute.xlu0 %1849
  %1851 = vrot.lane.b32.xlu0 %v1833, 58
  %v1852 = vpop.permute.xlu0 %1851
  %1853 = vrot.lane.b32.xlu0 %v1835, 58
  %v1854 = vpop.permute.xlu0 %1853
  %1855 = vrot.lane.b32.xlu0 %v1836, 58
  %v1856 = vpop.permute.xlu0 %1855
  %v1857 = vsel %vm1107, %v1838, %v1840
  %v1858 = vsel %vm1107, %v1840, %v1842
  %v1859 = vsel %vm1107, %v1842, %v1844
  %v1860 = vsel %vm1107, %v1844, %v1846
  %v1861 = vsel %vm1107, %v1846, %v1848
  %v1862 = vsel %vm1107, %v1848, %v1850
  %v1863 = vsel %vm1107, %v1850, %v1852
  %v1864 = vsel %vm1107, %v1852, %v1854
  %v1865 = vsel %vm1107, %v1854, %v1856
  %v1866 = vsel %vm33, %v1424, %v1479
  %v1867 = vsel %vm33, %v1425, %v1480
  %v1868 = vsel %vm33, %v1426, %v1481
  %v1869 = vsel %vm33, %v1427, %v1482
  %v1870 = vsel %vm33, %v1428, %v1483
  %v1871 = vsel %vm33, %v1429, %v1484
  %v1872 = vsel %vm33, %v1430, %v1485
  %v1873 = vsel %vm33, %v1431, %v1486
  %v1874 = vsel %vm33, %v1433, %v1478
  %v1875 = vsel %vm33, %v1531, %v1584
  %v1876 = vsel %vm33, %v1532, %v1585
  %v1877 = vsel %vm33, %v1533, %v1586
  %v1878 = vsel %vm33, %v1534, %v1587
  %v1879 = vsel %vm33, %v1535, %v1588
  %v1880 = vsel %vm33, %v1536, %v1589
  %v1881 = vsel %vm33, %v1537, %v1590
  %v1882 = vsel %vm33, %v1538, %v1591
  %v1883 = vsel %vm33, %v1530, %v1583
  %v1884 = vsel %vm33, %v1636, %v1689
  %v1885 = vsel %vm33, %v1637, %v1690
  %v1886 = vsel %vm33, %v1638, %v1691
  %v1887 = vsel %vm33, %v1639, %v1692
  %v1888 = vsel %vm33, %v1640, %v1693
  %v1889 = vsel %vm33, %v1641, %v1694
  %v1890 = vsel %vm33, %v1642, %v1695
  %v1891 = vsel %vm33, %v1643, %v1696
  %v1892 = vsel %vm33, %v1635, %v1688
  %v1893 = vsel %vm33, %v1744, %v1801
  %v1894 = vsel %vm33, %v1745, %v1802
  %v1895 = vsel %vm33, %v1746, %v1803
  %v1896 = vsel %vm33, %v1747, %v1804
  %v1897 = vsel %vm33, %v1748, %v1805
  %v1898 = vsel %vm33, %v1749, %v1806
  %v1899 = vsel %vm33, %v1750, %v1807
  %v1900 = vsel %vm33, %v1751, %v1808
  %v1901 = vsel %vm33, %v1752, %v1809
  %1903 = vset.pattern.permute.xlu0 0
  %1904 = vperm.xlu0 %1903, %v360
  %v1905 = vpop.permute.xlu0 %1904
  %vm1907 = vcmask 293888
  %v1909 = vsel %vm1907, %v359, 0
  %v1911 = vsel %vm33, %v1857, 0
  %v1913 = vsel %vm33, %v1858, 0
  %v1915 = vsel %vm33, %v1859, 0
  %v1917 = vsel %vm33, %v1860, 0
  %v1919 = vsel %vm33, %v1861, 0
  %v1921 = vsel %vm33, %v1862, 0
  %v1923 = vsel %vm33, %v1863, 0
  %v1925 = vsel %vm33, %v1864, 0
  %v1927 = vsel %vm33, %v1865, 0
  %1929 = vmatpush.msra.mxu0 0.0
  %1930 = vmatpush.msra.mxu0 0.0
  %1931 = vmatpush.msra.mxu0 0.0
  %1932 = vmatpush.msra.mxu0 0.0
  %1933 = vmatpush.msra.mxu0 0.0
  %1934 = vmatpush.msra.mxu0 0.0
  %1935 = vmatpush.msra.mxu0 0.0
  %1936 = vmatpush.msra.mxu0 0.0
  %1937 = vmatpush.msra.mxu0 0.0
  %1938 = vmatpush.msra.mxu0 0.0
  %1939 = vmatpush.msra.mxu0 0.0
  %1940 = vmatpush.msra.mxu0 %v1911
  %1941 = vmatpush.msra.mxu0 %v1893
  %1942 = vmatpush.msra.mxu0 %v1884
  %1943 = vmatpush.msra.mxu0 %v1875
  %1944 = vmatpush.msra.mxu0 %v1866
  %1945 = vmatmul.f32.gmra.mxu0 %v1909
  %v1946 = vpop.f32.mrf.mxu0
  %v1947 = vadd.f32 %v1905, %v1946
  %1948 = vdwg.mxu0
  %1949 = vmatpush.msra.mxu0 0.0
  %1950 = vmatpush.msra.mxu0 0.0
  %1951 = vmatpush.msra.mxu0 0.0
  %1952 = vmatpush.msra.mxu0 0.0
  %1953 = vmatpush.msra.mxu0 0.0
  %1954 = vmatpush.msra.mxu0 0.0
  %1955 = vmatpush.msra.mxu0 0.0
  %1956 = vmatpush.msra.mxu0 0.0
  %1957 = vmatpush.msra.mxu0 0.0
  %1958 = vmatpush.msra.mxu0 0.0
  %1959 = vmatpush.msra.mxu0 0.0
  %1960 = vmatpush.msra.mxu0 %v1913
  %1961 = vmatpush.msra.mxu0 %v1894
  %1962 = vmatpush.msra.mxu0 %v1885
  %1963 = vmatpush.msra.mxu0 %v1876
  %1964 = vmatpush.msra.mxu0 %v1867
  %1965 = vmatmul.f32.gmra.mxu0 %v1909
  %v1966 = vpop.f32.mrf.mxu0
  %v1967 = vadd.f32 %v1905, %v1966
  %1968 = vdwg.mxu0
  %1969 = vmatpush.msra.mxu0 0.0
  %1970 = vmatpush.msra.mxu0 0.0
  %1971 = vmatpush.msra.mxu0 0.0
  %1972 = vmatpush.msra.mxu0 0.0
  %1973 = vmatpush.msra.mxu0 0.0
  %1974 = vmatpush.msra.mxu0 0.0
  %1975 = vmatpush.msra.mxu0 0.0
  %1976 = vmatpush.msra.mxu0 0.0
  %1977 = vmatpush.msra.mxu0 0.0
  %1978 = vmatpush.msra.mxu0 0.0
  %1979 = vmatpush.msra.mxu0 0.0
  %1980 = vmatpush.msra.mxu0 %v1915
  %1981 = vmatpush.msra.mxu0 %v1895
  %1982 = vmatpush.msra.mxu0 %v1886
  %1983 = vmatpush.msra.mxu0 %v1877
  %1984 = vmatpush.msra.mxu0 %v1868
  %1985 = vmatmul.f32.gmra.mxu0 %v1909
  %v1986 = vpop.f32.mrf.mxu0
  %v1987 = vadd.f32 %v1905, %v1986
  %1988 = vdwg.mxu0
  %1989 = vmatpush.msra.mxu0 0.0
  %1990 = vmatpush.msra.mxu0 0.0
  %1991 = vmatpush.msra.mxu0 0.0
  %1992 = vmatpush.msra.mxu0 0.0
  %1993 = vmatpush.msra.mxu0 0.0
  %1994 = vmatpush.msra.mxu0 0.0
  %1995 = vmatpush.msra.mxu0 0.0
  %1996 = vmatpush.msra.mxu0 0.0
  %1997 = vmatpush.msra.mxu0 0.0
  %1998 = vmatpush.msra.mxu0 0.0
  %1999 = vmatpush.msra.mxu0 0.0
  %2000 = vmatpush.msra.mxu0 %v1917
  %2001 = vmatpush.msra.mxu0 %v1896
  %2002 = vmatpush.msra.mxu0 %v1887
  %2003 = vmatpush.msra.mxu0 %v1878
  %2004 = vmatpush.msra.mxu0 %v1869
  %2005 = vmatmul.f32.gmra.mxu0 %v1909
  %v2006 = vpop.f32.mrf.mxu0
  %v2007 = vadd.f32 %v1905, %v2006
  %2008 = vdwg.mxu0
  %2009 = vmatpush.msra.mxu0 0.0
  %2010 = vmatpush.msra.mxu0 0.0
  %2011 = vmatpush.msra.mxu0 0.0
  %2012 = vmatpush.msra.mxu0 0.0
  %2013 = vmatpush.msra.mxu0 0.0
  %2014 = vmatpush.msra.mxu0 0.0
  %2015 = vmatpush.msra.mxu0 0.0
  %2016 = vmatpush.msra.mxu0 0.0
  %2017 = vmatpush.msra.mxu0 0.0
  %2018 = vmatpush.msra.mxu0 0.0
  %2019 = vmatpush.msra.mxu0 0.0
  %2020 = vmatpush.msra.mxu0 %v1919
  %2021 = vmatpush.msra.mxu0 %v1897
  %2022 = vmatpush.msra.mxu0 %v1888
  %2023 = vmatpush.msra.mxu0 %v1879
  %2024 = vmatpush.msra.mxu0 %v1870
  %2025 = vmatmul.f32.gmra.mxu0 %v1909
  %v2026 = vpop.f32.mrf.mxu0
  %v2027 = vadd.f32 %v1905, %v2026
  %2028 = vdwg.mxu0
  %2029 = vmatpush.msra.mxu0 0.0
  %2030 = vmatpush.msra.mxu0 0.0
  %2031 = vmatpush.msra.mxu0 0.0
  %2032 = vmatpush.msra.mxu0 0.0
  %2033 = vmatpush.msra.mxu0 0.0
  %2034 = vmatpush.msra.mxu0 0.0
  %2035 = vmatpush.msra.mxu0 0.0
  %2036 = vmatpush.msra.mxu0 0.0
  %2037 = vmatpush.msra.mxu0 0.0
  %2038 = vmatpush.msra.mxu0 0.0
  %2039 = vmatpush.msra.mxu0 0.0
  %2040 = vmatpush.msra.mxu0 %v1921
  %2041 = vmatpush.msra.mxu0 %v1898
  %2042 = vmatpush.msra.mxu0 %v1889
  %2043 = vmatpush.msra.mxu0 %v1880
  %2044 = vmatpush.msra.mxu0 %v1871
  %2045 = vmatmul.f32.gmra.mxu0 %v1909
  %v2046 = vpop.f32.mrf.mxu0
  %v2047 = vadd.f32 %v1905, %v2046
  %2048 = vdwg.mxu0
  %2049 = vmatpush.msra.mxu0 0.0
  %2050 = vmatpush.msra.mxu0 0.0
  %2051 = vmatpush.msra.mxu0 0.0
  %2052 = vmatpush.msra.mxu0 0.0
  %2053 = vmatpush.msra.mxu0 0.0
  %2054 = vmatpush.msra.mxu0 0.0
  %2055 = vmatpush.msra.mxu0 0.0
  %2056 = vmatpush.msra.mxu0 0.0
  %2057 = vmatpush.msra.mxu0 0.0
  %2058 = vmatpush.msra.mxu0 0.0
  %2059 = vmatpush.msra.mxu0 0.0
  %2060 = vmatpush.msra.mxu0 %v1923
  %2061 = vmatpush.msra.mxu0 %v1899
  %2062 = vmatpush.msra.mxu0 %v1890
  %2063 = vmatpush.msra.mxu0 %v1881
  %2064 = vmatpush.msra.mxu0 %v1872
  %2065 = vmatmul.f32.gmra.mxu0 %v1909
  %v2066 = vpop.f32.mrf.mxu0
  %v2067 = vadd.f32 %v1905, %v2066
  %2068 = vdwg.mxu0
  %2069 = vmatpush.msra.mxu0 0.0
  %2070 = vmatpush.msra.mxu0 0.0
  %2071 = vmatpush.msra.mxu0 0.0
  %2072 = vmatpush.msra.mxu0 0.0
  %2073 = vmatpush.msra.mxu0 0.0
  %2074 = vmatpush.msra.mxu0 0.0
  %2075 = vmatpush.msra.mxu0 0.0
  %2076 = vmatpush.msra.mxu0 0.0
  %2077 = vmatpush.msra.mxu0 0.0
  %2078 = vmatpush.msra.mxu0 0.0
  %2079 = vmatpush.msra.mxu0 0.0
  %2080 = vmatpush.msra.mxu0 %v1925
  %2081 = vmatpush.msra.mxu0 %v1900
  %2082 = vmatpush.msra.mxu0 %v1891
  %2083 = vmatpush.msra.mxu0 %v1882
  %2084 = vmatpush.msra.mxu0 %v1873
  %2085 = vmatmul.f32.gmra.mxu0 %v1909
  %v2086 = vpop.f32.mrf.mxu0
  %v2087 = vadd.f32 %v1905, %v2086
  %2088 = vdwg.mxu0
  %2089 = vmatpush.msra.mxu0 0.0
  %2090 = vmatpush.msra.mxu0 0.0
  %2091 = vmatpush.msra.mxu0 0.0
  %2092 = vmatpush.msra.mxu0 0.0
  %2093 = vmatpush.msra.mxu0 0.0
  %2094 = vmatpush.msra.mxu0 0.0
  %2095 = vmatpush.msra.mxu0 0.0
  %2096 = vmatpush.msra.mxu0 0.0
  %2097 = vmatpush.msra.mxu0 0.0
  %2098 = vmatpush.msra.mxu0 0.0
  %2099 = vmatpush.msra.mxu0 0.0
  %2100 = vmatpush.msra.mxu0 %v1927
  %2101 = vmatpush.msra.mxu0 %v1901
  %2102 = vmatpush.msra.mxu0 %v1892
  %2103 = vmatpush.msra.mxu0 %v1883
  %2104 = vmatpush.msra.mxu0 %v1874
  %2105 = vmatmul.f32.gmra.mxu0 %v1909
  %v2106 = vpop.f32.mrf.mxu0
  %v2107 = vadd.f32 %v1905, %v2106
  %2108 = vdwg.mxu0
  %v2109 = vmax.f32 %v1947, 0.0
  %v2110 = vmax.f32 %v1967, 0.0
  %v2111 = vmax.f32 %v1987, 0.0
  %v2112 = vmax.f32 %v2007, 0.0
  %v2113 = vmax.f32 %v2027, 0.0
  %v2114 = vmax.f32 %v2047, 0.0
  %v2115 = vmax.f32 %v2067, 0.0
  %v2116 = vmax.f32 %v2087, 0.0
  %v2117 = vmax.f32 %v2107, 0.0
  %v2126 = vrot.slane %v2110, 4
  %v2127 = vrot.slane %v2112, 4
  %v2128 = vrot.slane %v2114, 4
  %v2129 = vrot.slane %v2116, 4
  %v2130 = vsel %vm33, %v2109, %v2126
  %v2131 = vsel %vm33, %v2111, %v2127
  %v2132 = vsel %vm33, %v2113, %v2128
  %v2133 = vsel %vm33, %v2115, %v2129
  %2138 = vst [vmem:[%s8] sm:$0xff] %v2130
  %2139 = vst [vmem:[%s8 + $0x8] sm:$0xff] %v2131
  %2140 = vst [vmem:[%s8 + $0x10] sm:$0xff] %v2132
  %2141 = vst [vmem:[%s8 + $0x18] sm:$0xff] %v2133
  %vm2142 = vcmask 519168
  %2143 = vst.msk [vmem:[%s8 + $0x20] sm:$0xf] %vm2142, %v2117
  %s2144 = scalar_lea.vmem %s0, 8
  %v2145 = vld [vmem:[%s2144] sm:$0xff]
  %2147 = vst [vmem:[#allocation1] ss:$2 sm:$0xff] %v2145
  %v2148 = vld.sshfl [vmem:[#allocation1] sm:$0xff pattern:$0x75316420]
  %v2149 = vld.sshfl [vmem:[#allocation1 + $0x8] sm:$0xff pattern:$0x75316420]
  %2152 = vmatpush.msra.mxu0 %v187
  %2153 = vmatpush.msra.mxu0 %v177
  %2154 = vmatpush.msra.mxu0 %v167
  %2155 = vmatpush.msra.mxu0 %v157
  %2156 = vmatpush.msra.mxu0 %v147
  %2157 = vmatpush.msra.mxu0 %v137
  %2158 = vmatpush.msra.mxu0 %v127
  %2159 = vmatpush.msra.mxu0 %v117
  %2160 = vmatpush.msra.mxu0 %v107
  %2161 = vmatpush.msra.mxu0 %v97
  %2162 = vmatpush.msra.mxu0 %v87
  %2163 = vmatpush.msra.mxu0 %v77
  %2164 = vmatpush.msra.mxu0 %v67
  %2165 = vmatpush.msra.mxu0 %v57
  %2166 = vmatpush.msra.mxu0 %v47
  %2167 = vmatpush.msra.mxu0 %v37
  %2168 = vmatmul.f32.gmra.mxu0 %v2148
  %v2169 = vpop.f32.mrf.mxu0
  %v2170 = vadd.f32 0.0, %v2169
  %2171 = vdwg.mxu0
  %2172 = vmatpush.msra.mxu0 %v347
  %2173 = vmatpush.msra.mxu0 %v337
  %2174 = vmatpush.msra.mxu0 %v327
  %2175 = vmatpush.msra.mxu0 %v317
  %2176 = vmatpush.msra.mxu0 %v307
  %2177 = vmatpush.msra.mxu0 %v297
  %2178 = vmatpush.msra.mxu0 %v287
  %2179 = vmatpush.msra.mxu0 %v277
  %2180 = vmatpush.msra.mxu0 %v267
  %2181 = vmatpush.msra.mxu0 %v257
  %2182 = vmatpush.msra.mxu0 %v247
  %2183 = vmatpush.msra.mxu0 %v237
  %2184 = vmatpush.msra.mxu0 %v227
  %2185 = vmatpush.msra.mxu0 %v217
  %2186 = vmatpush.msra.mxu0 %v207
  %2187 = vmatpush.msra.mxu0 %v197
  %2188 = vmatmul.f32.gmra.mxu0 %v2149
  %v2189 = vpop.f32.mrf.mxu0
  %v2190 = vadd.f32 %v2170, %v2189
  %2191 = vdwg.mxu0
  %2192 = vmatpush.msra.mxu0 %v188
  %2193 = vmatpush.msra.mxu0 %v178
  %2194 = vmatpush.msra.mxu0 %v168
  %2195 = vmatpush.msra.mxu0 %v158
  %2196 = vmatpush.msra.mxu0 %v148
  %2197 = vmatpush.msra.mxu0 %v138
  %2198 = vmatpush.msra.mxu0 %v128
  %2199 = vmatpush.msra.mxu0 %v118
  %2200 = vmatpush.msra.mxu0 %v108
  %2201 = vmatpush.msra.mxu0 %v98
  %2202 = vmatpush.msra.mxu0 %v88
  %2203 = vmatpush.msra.mxu0 %v78
  %2204 = vmatpush.msra.mxu0 %v68
  %2205 = vmatpush.msra.mxu0 %v58
  %2206 = vmatpush.msra.mxu0 %v48
  %2207 = vmatpush.msra.mxu0 %v38
  %2208 = vmatmul.f32.gmra.mxu0 %v2148
  %v2209 = vpop.f32.mrf.mxu0
  %v2210 = vadd.f32 0.0, %v2209
  %2211 = vdwg.mxu0
  %2212 = vmatpush.msra.mxu0 %v348
  %2213 = vmatpush.msra.mxu0 %v338
  %2214 = vmatpush.msra.mxu0 %v328
  %2215 = vmatpush.msra.mxu0 %v318
  %2216 = vmatpush.msra.mxu0 %v308
  %2217 = vmatpush.msra.mxu0 %v298
  %2218 = vmatpush.msra.mxu0 %v288
  %2219 = vmatpush.msra.mxu0 %v278
  %2220 = vmatpush.msra.mxu0 %v268
  %2221 = vmatpush.msra.mxu0 %v258
  %2222 = vmatpush.msra.mxu0 %v248
  %2223 = vmatpush.msra.mxu0 %v238
  %2224 = vmatpush.msra.mxu0 %v228
  %2225 = vmatpush.msra.mxu0 %v218
  %2226 = vmatpush.msra.mxu0 %v208
  %2227 = vmatpush.msra.mxu0 %v198
  %2228 = vmatmul.f32.gmra.mxu0 %v2149
  %v2229 = vpop.f32.mrf.mxu0
  %v2230 = vadd.f32 %v2210, %v2229
  %2231 = vdwg.mxu0
  %2232 = vmatpush.msra.mxu0 %v189
  %2233 = vmatpush.msra.mxu0 %v179
  %2234 = vmatpush.msra.mxu0 %v169
  %2235 = vmatpush.msra.mxu0 %v159
  %2236 = vmatpush.msra.mxu0 %v149
  %2237 = vmatpush.msra.mxu0 %v139
  %2238 = vmatpush.msra.mxu0 %v129
  %2239 = vmatpush.msra.mxu0 %v119
  %2240 = vmatpush.msra.mxu0 %v109
  %2241 = vmatpush.msra.mxu0 %v99
  %2242 = vmatpush.msra.mxu0 %v89
  %2243 = vmatpush.msra.mxu0 %v79
  %2244 = vmatpush.msra.mxu0 %v69
  %2245 = vmatpush.msra.mxu0 %v59
  %2246 = vmatpush.msra.mxu0 %v49
  %2247 = vmatpush.msra.mxu0 %v39
  %2248 = vmatmul.f32.gmra.mxu0 %v2148
  %v2249 = vpop.f32.mrf.mxu0
  %v2250 = vadd.f32 0.0, %v2249
  %2251 = vdwg.mxu0
  %2252 = vmatpush.msra.mxu0 %v349
  %2253 = vmatpush.msra.mxu0 %v339
  %2254 = vmatpush.msra.mxu0 %v329
  %2255 = vmatpush.msra.mxu0 %v319
  %2256 = vmatpush.msra.mxu0 %v309
  %2257 = vmatpush.msra.mxu0 %v299
  %2258 = vmatpush.msra.mxu0 %v289
  %2259 = vmatpush.msra.mxu0 %v279
  %2260 = vmatpush.msra.mxu0 %v269
  %2261 = vmatpush.msra.mxu0 %v259
  %2262 = vmatpush.msra.mxu0 %v249
  %2263 = vmatpush.msra.mxu0 %v239
  %2264 = vmatpush.msra.mxu0 %v229
  %2265 = vmatpush.msra.mxu0 %v219
  %2266 = vmatpush.msra.mxu0 %v209
  %2267 = vmatpush.msra.mxu0 %v199
  %2268 = vmatmul.f32.gmra.mxu0 %v2149
  %v2269 = vpop.f32.mrf.mxu0
  %v2270 = vadd.f32 %v2250, %v2269
  %2271 = vdwg.mxu0
  %2272 = vmatpush.msra.mxu0 %v190
  %2273 = vmatpush.msra.mxu0 %v180
  %2274 = vmatpush.msra.mxu0 %v170
  %2275 = vmatpush.msra.mxu0 %v160
  %2276 = vmatpush.msra.mxu0 %v150
  %2277 = vmatpush.msra.mxu0 %v140
  %2278 = vmatpush.msra.mxu0 %v130
  %2279 = vmatpush.msra.mxu0 %v120
  %2280 = vmatpush.msra.mxu0 %v110
  %2281 = vmatpush.msra.mxu0 %v100
  %2282 = vmatpush.msra.mxu0 %v90
  %2283 = vmatpush.msra.mxu0 %v80
  %2284 = vmatpush.msra.mxu0 %v70
  %2285 = vmatpush.msra.mxu0 %v60
  %2286 = vmatpush.msra.mxu0 %v50
  %2287 = vmatpush.msra.mxu0 %v40
  %2288 = vmatmul.f32.gmra.mxu0 %v2148
  %v2289 = vpop.f32.mrf.mxu0
  %v2290 = vadd.f32 0.0, %v2289
  %2291 = vdwg.mxu0
  %2292 = vmatpush.msra.mxu0 %v350
  %2293 = vmatpush.msra.mxu0 %v340
  %2294 = vmatpush.msra.mxu0 %v330
  %2295 = vmatpush.msra.mxu0 %v320
  %2296 = vmatpush.msra.mxu0 %v310
  %2297 = vmatpush.msra.mxu0 %v300
  %2298 = vmatpush.msra.mxu0 %v290
  %2299 = vmatpush.msra.mxu0 %v280
  %2300 = vmatpush.msra.mxu0 %v270
  %2301 = vmatpush.msra.mxu0 %v260
  %2302 = vmatpush.msra.mxu0 %v250
  %2303 = vmatpush.msra.mxu0 %v240
  %2304 = vmatpush.msra.mxu0 %v230
  %2305 = vmatpush.msra.mxu0 %v220
  %2306 = vmatpush.msra.mxu0 %v210
  %2307 = vmatpush.msra.mxu0 %v200
  %2308 = vmatmul.f32.gmra.mxu0 %v2149
  %v2309 = vpop.f32.mrf.mxu0
  %v2310 = vadd.f32 %v2290, %v2309
  %2311 = vdwg.mxu0
  %2312 = vmatpush.msra.mxu0 %v191
  %2313 = vmatpush.msra.mxu0 %v181
  %2314 = vmatpush.msra.mxu0 %v171
  %2315 = vmatpush.msra.mxu0 %v161
  %2316 = vmatpush.msra.mxu0 %v151
  %2317 = vmatpush.msra.mxu0 %v141
  %2318 = vmatpush.msra.mxu0 %v131
  %2319 = vmatpush.msra.mxu0 %v121
  %2320 = vmatpush.msra.mxu0 %v111
  %2321 = vmatpush.msra.mxu0 %v101
  %2322 = vmatpush.msra.mxu0 %v91
  %2323 = vmatpush.msra.mxu0 %v81
  %2324 = vmatpush.msra.mxu0 %v71
  %2325 = vmatpush.msra.mxu0 %v61
  %2326 = vmatpush.msra.mxu0 %v51
  %2327 = vmatpush.msra.mxu0 %v41
  %2328 = vmatmul.f32.gmra.mxu0 %v2148
  %v2329 = vpop.f32.mrf.mxu0
  %v2330 = vadd.f32 0.0, %v2329
  %2331 = vdwg.mxu0
  %2332 = vmatpush.msra.mxu0 %v351
  %2333 = vmatpush.msra.mxu0 %v341
  %2334 = vmatpush.msra.mxu0 %v331
  %2335 = vmatpush.msra.mxu0 %v321
  %2336 = vmatpush.msra.mxu0 %v311
  %2337 = vmatpush.msra.mxu0 %v301
  %2338 = vmatpush.msra.mxu0 %v291
  %2339 = vmatpush.msra.mxu0 %v281
  %2340 = vmatpush.msra.mxu0 %v271
  %2341 = vmatpush.msra.mxu0 %v261
  %2342 = vmatpush.msra.mxu0 %v251
  %2343 = vmatpush.msra.mxu0 %v241
  %2344 = vmatpush.msra.mxu0 %v231
  %2345 = vmatpush.msra.mxu0 %v221
  %2346 = vmatpush.msra.mxu0 %v211
  %2347 = vmatpush.msra.mxu0 %v201
  %2348 = vmatmul.f32.gmra.mxu0 %v2149
  %v2349 = vpop.f32.mrf.mxu0
  %v2350 = vadd.f32 %v2330, %v2349
  %2351 = vdwg.mxu0
  %2352 = vmatpush.msra.mxu0 %v192
  %2353 = vmatpush.msra.mxu0 %v182
  %2354 = vmatpush.msra.mxu0 %v172
  %2355 = vmatpush.msra.mxu0 %v162
  %2356 = vmatpush.msra.mxu0 %v152
  %2357 = vmatpush.msra.mxu0 %v142
  %2358 = vmatpush.msra.mxu0 %v132
  %2359 = vmatpush.msra.mxu0 %v122
  %2360 = vmatpush.msra.mxu0 %v112
  %2361 = vmatpush.msra.mxu0 %v102
  %2362 = vmatpush.msra.mxu0 %v92
  %2363 = vmatpush.msra.mxu0 %v82
  %2364 = vmatpush.msra.mxu0 %v72
  %2365 = vmatpush.msra.mxu0 %v62
  %2366 = vmatpush.msra.mxu0 %v52
  %2367 = vmatpush.msra.mxu0 %v42
  %2368 = vmatmul.f32.gmra.mxu0 %v2148
  %v2369 = vpop.f32.mrf.mxu0
  %v2370 = vadd.f32 0.0, %v2369
  %2371 = vdwg.mxu0
  %2372 = vmatpush.msra.mxu0 %v352
  %2373 = vmatpush.msra.mxu0 %v342
  %2374 = vmatpush.msra.mxu0 %v332
  %2375 = vmatpush.msra.mxu0 %v322
  %2376 = vmatpush.msra.mxu0 %v312
  %2377 = vmatpush.msra.mxu0 %v302
  %2378 = vmatpush.msra.mxu0 %v292
  %2379 = vmatpush.msra.mxu0 %v282
  %2380 = vmatpush.msra.mxu0 %v272
  %2381 = vmatpush.msra.mxu0 %v262
  %2382 = vmatpush.msra.mxu0 %v252
  %2383 = vmatpush.msra.mxu0 %v242
  %2384 = vmatpush.msra.mxu0 %v232
  %2385 = vmatpush.msra.mxu0 %v222
  %2386 = vmatpush.msra.mxu0 %v212
  %2387 = vmatpush.msra.mxu0 %v202
  %2388 = vmatmul.f32.gmra.mxu0 %v2149
  %v2389 = vpop.f32.mrf.mxu0
  %v2390 = vadd.f32 %v2370, %v2389
  %2391 = vdwg.mxu0
  %2392 = vmatpush.msra.mxu0 %v193
  %2393 = vmatpush.msra.mxu0 %v183
  %2394 = vmatpush.msra.mxu0 %v173
  %2395 = vmatpush.msra.mxu0 %v163
  %2396 = vmatpush.msra.mxu0 %v153
  %2397 = vmatpush.msra.mxu0 %v143
  %2398 = vmatpush.msra.mxu0 %v133
  %2399 = vmatpush.msra.mxu0 %v123
  %2400 = vmatpush.msra.mxu0 %v113
  %2401 = vmatpush.msra.mxu0 %v103
  %2402 = vmatpush.msra.mxu0 %v93
  %2403 = vmatpush.msra.mxu0 %v83
  %2404 = vmatpush.msra.mxu0 %v73
  %2405 = vmatpush.msra.mxu0 %v63
  %2406 = vmatpush.msra.mxu0 %v53
  %2407 = vmatpush.msra.mxu0 %v43
  %2408 = vmatmul.f32.gmra.mxu0 %v2148
  %v2409 = vpop.f32.mrf.mxu0
  %v2410 = vadd.f32 0.0, %v2409
  %2411 = vdwg.mxu0
  %2412 = vmatpush.msra.mxu0 %v353
  %2413 = vmatpush.msra.mxu0 %v343
  %2414 = vmatpush.msra.mxu0 %v333
  %2415 = vmatpush.msra.mxu0 %v323
  %2416 = vmatpush.msra.mxu0 %v313
  %2417 = vmatpush.msra.mxu0 %v303
  %2418 = vmatpush.msra.mxu0 %v293
  %2419 = vmatpush.msra.mxu0 %v283
  %2420 = vmatpush.msra.mxu0 %v273
  %2421 = vmatpush.msra.mxu0 %v263
  %2422 = vmatpush.msra.mxu0 %v253
  %2423 = vmatpush.msra.mxu0 %v243
  %2424 = vmatpush.msra.mxu0 %v233
  %2425 = vmatpush.msra.mxu0 %v223
  %2426 = vmatpush.msra.mxu0 %v213
  %2427 = vmatpush.msra.mxu0 %v203
  %2428 = vmatmul.f32.gmra.mxu0 %v2149
  %v2429 = vpop.f32.mrf.mxu0
  %v2430 = vadd.f32 %v2410, %v2429
  %2431 = vdwg.mxu0
  %2432 = vmatpush.msra.mxu0 %v194
  %2433 = vmatpush.msra.mxu0 %v184
  %2434 = vmatpush.msra.mxu0 %v174
  %2435 = vmatpush.msra.mxu0 %v164
  %2436 = vmatpush.msra.mxu0 %v154
  %2437 = vmatpush.msra.mxu0 %v144
  %2438 = vmatpush.msra.mxu0 %v134
  %2439 = vmatpush.msra.mxu0 %v124
  %2440 = vmatpush.msra.mxu0 %v114
  %2441 = vmatpush.msra.mxu0 %v104
  %2442 = vmatpush.msra.mxu0 %v94
  %2443 = vmatpush.msra.mxu0 %v84
  %2444 = vmatpush.msra.mxu0 %v74
  %2445 = vmatpush.msra.mxu0 %v64
  %2446 = vmatpush.msra.mxu0 %v54
  %2447 = vmatpush.msra.mxu0 %v44
  %2448 = vmatmul.f32.gmra.mxu0 %v2148
  %v2449 = vpop.f32.mrf.mxu0
  %v2450 = vadd.f32 0.0, %v2449
  %2451 = vdwg.mxu0
  %2452 = vmatpush.msra.mxu0 %v354
  %2453 = vmatpush.msra.mxu0 %v344
  %2454 = vmatpush.msra.mxu0 %v334
  %2455 = vmatpush.msra.mxu0 %v324
  %2456 = vmatpush.msra.mxu0 %v314
  %2457 = vmatpush.msra.mxu0 %v304
  %2458 = vmatpush.msra.mxu0 %v294
  %2459 = vmatpush.msra.mxu0 %v284
  %2460 = vmatpush.msra.mxu0 %v274
  %2461 = vmatpush.msra.mxu0 %v264
  %2462 = vmatpush.msra.mxu0 %v254
  %2463 = vmatpush.msra.mxu0 %v244
  %2464 = vmatpush.msra.mxu0 %v234
  %2465 = vmatpush.msra.mxu0 %v224
  %2466 = vmatpush.msra.mxu0 %v214
  %2467 = vmatpush.msra.mxu0 %v204
  %2468 = vmatmul.f32.gmra.mxu0 %v2149
  %v2469 = vpop.f32.mrf.mxu0
  %v2470 = vadd.f32 %v2450, %v2469
  %2471 = vdwg.mxu0
  %2472 = vmatpush.msra.mxu0 %v195
  %2473 = vmatpush.msra.mxu0 %v185
  %2474 = vmatpush.msra.mxu0 %v175
  %2475 = vmatpush.msra.mxu0 %v165
  %2476 = vmatpush.msra.mxu0 %v155
  %2477 = vmatpush.msra.mxu0 %v145
  %2478 = vmatpush.msra.mxu0 %v135
  %2479 = vmatpush.msra.mxu0 %v125
  %2480 = vmatpush.msra.mxu0 %v115
  %2481 = vmatpush.msra.mxu0 %v105
  %2482 = vmatpush.msra.mxu0 %v95
  %2483 = vmatpush.msra.mxu0 %v85
  %2484 = vmatpush.msra.mxu0 %v75
  %2485 = vmatpush.msra.mxu0 %v65
  %2486 = vmatpush.msra.mxu0 %v55
  %2487 = vmatpush.msra.mxu0 %v45
  %2488 = vmatmul.f32.gmra.mxu0 %v2148
  %v2489 = vpop.f32.mrf.mxu0
  %v2490 = vadd.f32 0.0, %v2489
  %2491 = vdwg.mxu0
  %2492 = vmatpush.msra.mxu0 %v355
  %2493 = vmatpush.msra.mxu0 %v345
  %2494 = vmatpush.msra.mxu0 %v335
  %2495 = vmatpush.msra.mxu0 %v325
  %2496 = vmatpush.msra.mxu0 %v315
  %2497 = vmatpush.msra.mxu0 %v305
  %2498 = vmatpush.msra.mxu0 %v295
  %2499 = vmatpush.msra.mxu0 %v285
  %2500 = vmatpush.msra.mxu0 %v275
  %2501 = vmatpush.msra.mxu0 %v265
  %2502 = vmatpush.msra.mxu0 %v255
  %2503 = vmatpush.msra.mxu0 %v245
  %2504 = vmatpush.msra.mxu0 %v235
  %2505 = vmatpush.msra.mxu0 %v225
  %2506 = vmatpush.msra.mxu0 %v215
  %2507 = vmatpush.msra.mxu0 %v205
  %2508 = vmatmul.f32.gmra.mxu0 %v2149
  %v2509 = vpop.f32.mrf.mxu0
  %v2510 = vadd.f32 %v2490, %v2509
  %2511 = vdwg.mxu0
  %2512 = vmatpush.msra.mxu0 %v196
  %2513 = vmatpush.msra.mxu0 %v186
  %2514 = vmatpush.msra.mxu0 %v176
  %2515 = vmatpush.msra.mxu0 %v166
  %2516 = vmatpush.msra.mxu0 %v156
  %2517 = vmatpush.msra.mxu0 %v146
  %2518 = vmatpush.msra.mxu0 %v136
  %2519 = vmatpush.msra.mxu0 %v126
  %2520 = vmatpush.msra.mxu0 %v116
  %2521 = vmatpush.msra.mxu0 %v106
  %2522 = vmatpush.msra.mxu0 %v96
  %2523 = vmatpush.msra.mxu0 %v86
  %2524 = vmatpush.msra.mxu0 %v76
  %2525 = vmatpush.msra.mxu0 %v66
  %2526 = vmatpush.msra.mxu0 %v56
  %2527 = vmatpush.msra.mxu0 %v46
  %2528 = vmatmul.f32.gmra.mxu0 %v2148
  %v2529 = vpop.f32.mrf.mxu0
  %v2530 = vadd.f32 0.0, %v2529
  %2531 = vdwg.mxu0
  %2532 = vmatpush.msra.mxu0 %v356
  %2533 = vmatpush.msra.mxu0 %v346
  %2534 = vmatpush.msra.mxu0 %v336
  %2535 = vmatpush.msra.mxu0 %v326
  %2536 = vmatpush.msra.mxu0 %v316
  %2537 = vmatpush.msra.mxu0 %v306
  %2538 = vmatpush.msra.mxu0 %v296
  %2539 = vmatpush.msra.mxu0 %v286
  %2540 = vmatpush.msra.mxu0 %v276
  %2541 = vmatpush.msra.mxu0 %v266
  %2542 = vmatpush.msra.mxu0 %v256
  %2543 = vmatpush.msra.mxu0 %v246
  %2544 = vmatpush.msra.mxu0 %v236
  %2545 = vmatpush.msra.mxu0 %v226
  %2546 = vmatpush.msra.mxu0 %v216
  %2547 = vmatpush.msra.mxu0 %v206
  %2548 = vmatmul.f32.gmra.mxu0 %v2149
  %v2549 = vpop.f32.mrf.mxu0
  %v2550 = vadd.f32 %v2530, %v2549
  %2551 = vdwg.mxu0
  %s2552 = scalar_lea.vmem %s1, 40
  %v2553 = vld [vmem:[%s2552] sm:$0xff]
  %v2554 = vld [vmem:[%s2552 + $0x8] sm:$0xff]
  %v2555 = vld [vmem:[%s2552 + $0x10] sm:$0xff]
  %v2556 = vld [vmem:[%s2552 + $0x18] sm:$0xff]
  %v2557 = vld [vmem:[%s2552 + $0x20] sm:$0xff]
  %s2563 = scalar_lea.vmem [#allocation1], 1
  %2564 = vst [vmem:[%s2563] ss:$2 sm:$0xff] %v2553
  %s2565 = scalar_lea.vmem [#allocation1], 17
  %2566 = vst [vmem:[%s2565] ss:$2 sm:$0xff] %v2554
  %s2567 = scalar_lea.vmem [#allocation1], 33
  %2568 = vst [vmem:[%s2567] ss:$2 sm:$0xff] %v2555
  %s2569 = scalar_lea.vmem [#allocation1], 49
  %2570 = vst [vmem:[%s2569] ss:$2 sm:$0xff] %v2556
  %v2571 = vld.sshfl [vmem:[#allocation1] sm:$0xff pattern:$0x75316420]
  %v2572 = vld.sshfl [vmem:[#allocation1 + $0x8] sm:$0xff pattern:$0x75316420]
  %v2573 = vld.sshfl [vmem:[#allocation1 + $0x10] sm:$0xff pattern:$0x75316420]
  %v2574 = vld.sshfl [vmem:[#allocation1 + $0x18] sm:$0xff pattern:$0x75316420]
  %v2575 = vld.sshfl [vmem:[#allocation1 + $0x20] sm:$0xff pattern:$0x75316420]
  %v2576 = vld.sshfl [vmem:[#allocation1 + $0x28] sm:$0xff pattern:$0x75316420]
  %v2577 = vld.sshfl [vmem:[#allocation1 + $0x30] sm:$0xff pattern:$0x75316420]
  %v2578 = vld.sshfl [vmem:[#allocation1 + $0x38] sm:$0xff pattern:$0x75316420]
  %2579 = vst [vmem:[%s2563] ss:$2 sm:$0xff] %v2557
  %v2580 = vld.sshfl [vmem:[#allocation1] sm:$0xff pattern:$0x75316420]
  %v2581 = vld.sshfl [vmem:[#allocation1 + $0x8] sm:$0xff pattern:$0x75316420]
  %v2592 = vsel %vm33, %v2190, %v2571
  %v2593 = vsel %vm33, %v2230, %v2572
  %v2594 = vsel %vm33, %v2270, %v2573
  %v2595 = vsel %vm33, %v2310, %v2574
  %v2596 = vsel %vm33, %v2350, %v2575
  %v2597 = vsel %vm33, %v2390, %v2576
  %v2598 = vsel %vm33, %v2430, %v2577
  %v2599 = vsel %vm33, %v2470, %v2578
  %v2600 = vsel %vm33, %v2510, %v2580
  %v2601 = vsel %vm33, %v2550, %v2581
  %2611 = vrot.lane.b32.xlu0 %v2592, 127
  %v2612 = vpop.permute.xlu0 %2611
  %2613 = vrot.lane.b32.xlu0 %v2593, 127
  %v2614 = vpop.permute.xlu0 %2613
  %2615 = vrot.lane.b32.xlu0 %v2594, 127
  %v2616 = vpop.permute.xlu0 %2615
  %2617 = vrot.lane.b32.xlu0 %v2595, 127
  %v2618 = vpop.permute.xlu0 %2617
  %2619 = vrot.lane.b32.xlu0 %v2596, 127
  %v2620 = vpop.permute.xlu0 %2619
  %2621 = vrot.lane.b32.xlu0 %v2597, 127
  %v2622 = vpop.permute.xlu0 %2621
  %2623 = vrot.lane.b32.xlu0 %v2598, 127
  %v2624 = vpop.permute.xlu0 %2623
  %2625 = vrot.lane.b32.xlu0 %v2599, 127
  %v2626 = vpop.permute.xlu0 %2625
  %2627 = vrot.lane.b32.xlu0 %v2600, 127
  %v2628 = vpop.permute.xlu0 %2627
  %v2629 = vsel %vm846, %v2612, %v2614
  %v2630 = vsel %vm846, %v2614, %v2616
  %v2631 = vsel %vm846, %v2616, %v2618
  %v2632 = vsel %vm846, %v2618, %v2620
  %v2633 = vsel %vm846, %v2620, %v2622
  %v2634 = vsel %vm846, %v2622, %v2624
  %v2635 = vsel %vm846, %v2624, %v2626
  %v2636 = vsel %vm846, %v2626, %v2628
  %2646 = vrot.lane.b32.xlu0 %v2592, 126
  %v2647 = vpop.permute.xlu0 %2646
  %2648 = vrot.lane.b32.xlu0 %v2593, 126
  %v2649 = vpop.permute.xlu0 %2648
  %2650 = vrot.lane.b32.xlu0 %v2594, 126
  %v2651 = vpop.permute.xlu0 %2650
  %2652 = vrot.lane.b32.xlu0 %v2595, 126
  %v2653 = vpop.permute.xlu0 %2652
  %2654 = vrot.lane.b32.xlu0 %v2596, 126
  %v2655 = vpop.permute.xlu0 %2654
  %2656 = vrot.lane.b32.xlu0 %v2597, 126
  %v2657 = vpop.permute.xlu0 %2656
  %2658 = vrot.lane.b32.xlu0 %v2598, 126
  %v2659 = vpop.permute.xlu0 %2658
  %2660 = vrot.lane.b32.xlu0 %v2599, 126
  %v2661 = vpop.permute.xlu0 %2660
  %2662 = vrot.lane.b32.xlu0 %v2600, 126
  %v2663 = vpop.permute.xlu0 %2662
  %v2664 = vsel %vm882, %v2647, %v2649
  %v2665 = vsel %vm882, %v2649, %v2651
  %v2666 = vsel %vm882, %v2651, %v2653
  %v2667 = vsel %vm882, %v2653, %v2655
  %v2668 = vsel %vm882, %v2655, %v2657
  %v2669 = vsel %vm882, %v2657, %v2659
  %v2670 = vsel %vm882, %v2659, %v2661
  %v2671 = vsel %vm882, %v2661, %v2663
  %2681 = vrot.lane.b32.xlu0 %v2592, 94
  %v2682 = vpop.permute.xlu0 %2681
  %2683 = vrot.lane.b32.xlu0 %v2593, 94
  %v2684 = vpop.permute.xlu0 %2683
  %2685 = vrot.lane.b32.xlu0 %v2594, 94
  %v2686 = vpop.permute.xlu0 %2685
  %2687 = vrot.lane.b32.xlu0 %v2595, 94
  %v2688 = vpop.permute.xlu0 %2687
  %2689 = vrot.lane.b32.xlu0 %v2596, 94
  %v2690 = vpop.permute.xlu0 %2689
  %2691 = vrot.lane.b32.xlu0 %v2597, 94
  %v2692 = vpop.permute.xlu0 %2691
  %2693 = vrot.lane.b32.xlu0 %v2598, 94
  %v2694 = vpop.permute.xlu0 %2693
  %2695 = vrot.lane.b32.xlu0 %v2599, 94
  %v2696 = vpop.permute.xlu0 %2695
  %2697 = vrot.lane.b32.xlu0 %v2600, 94
  %v2698 = vpop.permute.xlu0 %2697
  %v2699 = vsel %vm918, %v2682, %v2684
  %v2700 = vsel %vm918, %v2684, %v2686
  %v2701 = vsel %vm918, %v2686, %v2688
  %v2702 = vsel %vm918, %v2688, %v2690
  %v2703 = vsel %vm918, %v2690, %v2692
  %v2704 = vsel %vm918, %v2692, %v2694
  %v2705 = vsel %vm918, %v2694, %v2696
  %v2706 = vsel %vm918, %v2696, %v2698
  %2716 = vrot.lane.b32.xlu0 %v2592, 93
  %v2717 = vpop.permute.xlu0 %2716
  %2718 = vrot.lane.b32.xlu0 %v2593, 93
  %v2719 = vpop.permute.xlu0 %2718
  %2720 = vrot.lane.b32.xlu0 %v2594, 93
  %v2721 = vpop.permute.xlu0 %2720
  %2722 = vrot.lane.b32.xlu0 %v2595, 93
  %v2723 = vpop.permute.xlu0 %2722
  %2724 = vrot.lane.b32.xlu0 %v2596, 93
  %v2725 = vpop.permute.xlu0 %2724
  %2726 = vrot.lane.b32.xlu0 %v2597, 93
  %v2727 = vpop.permute.xlu0 %2726
  %2728 = vrot.lane.b32.xlu0 %v2598, 93
  %v2729 = vpop.permute.xlu0 %2728
  %2730 = vrot.lane.b32.xlu0 %v2599, 93
  %v2731 = vpop.permute.xlu0 %2730
  %2732 = vrot.lane.b32.xlu0 %v2600, 93
  %v2733 = vpop.permute.xlu0 %2732
  %v2734 = vsel %vm954, %v2717, %v2719
  %v2735 = vsel %vm954, %v2719, %v2721
  %v2736 = vsel %vm954, %v2721, %v2723
  %v2737 = vsel %vm954, %v2723, %v2725
  %v2738 = vsel %vm954, %v2725, %v2727
  %v2739 = vsel %vm954, %v2727, %v2729
  %v2740 = vsel %vm954, %v2729, %v2731
  %v2741 = vsel %vm954, %v2731, %v2733
  %2751 = vrot.lane.b32.xlu0 %v2592, 92
  %v2752 = vpop.permute.xlu0 %2751
  %2753 = vrot.lane.b32.xlu0 %v2593, 92
  %v2754 = vpop.permute.xlu0 %2753
  %2755 = vrot.lane.b32.xlu0 %v2594, 92
  %v2756 = vpop.permute.xlu0 %2755
  %2757 = vrot.lane.b32.xlu0 %v2595, 92
  %v2758 = vpop.permute.xlu0 %2757
  %2759 = vrot.lane.b32.xlu0 %v2596, 92
  %v2760 = vpop.permute.xlu0 %2759
  %2761 = vrot.lane.b32.xlu0 %v2597, 92
  %v2762 = vpop.permute.xlu0 %2761
  %2763 = vrot.lane.b32.xlu0 %v2598, 92
  %v2764 = vpop.permute.xlu0 %2763
  %2765 = vrot.lane.b32.xlu0 %v2599, 92
  %v2766 = vpop.permute.xlu0 %2765
  %2767 = vrot.lane.b32.xlu0 %v2600, 92
  %v2768 = vpop.permute.xlu0 %2767
  %v2769 = vsel %vm990, %v2752, %v2754
  %v2770 = vsel %vm990, %v2754, %v2756
  %v2771 = vsel %vm990, %v2756, %v2758
  %v2772 = vsel %vm990, %v2758, %v2760
  %v2773 = vsel %vm990, %v2760, %v2762
  %v2774 = vsel %vm990, %v2762, %v2764
  %v2775 = vsel %vm990, %v2764, %v2766
  %v2776 = vsel %vm990, %v2766, %v2768
  %2787 = vrot.lane.b32.xlu0 %v2592, 60
  %v2788 = vpop.permute.xlu0 %2787
  %2789 = vrot.lane.b32.xlu0 %v2593, 60
  %v2790 = vpop.permute.xlu0 %2789
  %2791 = vrot.lane.b32.xlu0 %v2594, 60
  %v2792 = vpop.permute.xlu0 %2791
  %2793 = vrot.lane.b32.xlu0 %v2595, 60
  %v2794 = vpop.permute.xlu0 %2793
  %2795 = vrot.lane.b32.xlu0 %v2596, 60
  %v2796 = vpop.permute.xlu0 %2795
  %2797 = vrot.lane.b32.xlu0 %v2597, 60
  %v2798 = vpop.permute.xlu0 %2797
  %2799 = vrot.lane.b32.xlu0 %v2598, 60
  %v2800 = vpop.permute.xlu0 %2799
  %2801 = vrot.lane.b32.xlu0 %v2599, 60
  %v2802 = vpop.permute.xlu0 %2801
  %2803 = vrot.lane.b32.xlu0 %v2600, 60
  %v2804 = vpop.permute.xlu0 %2803
  %2805 = vrot.lane.b32.xlu0 %v2601, 60
  %v2806 = vpop.permute.xlu0 %2805
  %v2807 = vsel %vm1029, %v2788, %v2790
  %v2808 = vsel %vm1029, %v2790, %v2792
  %v2809 = vsel %vm1029, %v2792, %v2794
  %v2810 = vsel %vm1029, %v2794, %v2796
  %v2811 = vsel %vm1029, %v2796, %v2798
  %v2812 = vsel %vm1029, %v2798, %v2800
  %v2813 = vsel %vm1029, %v2800, %v2802
  %v2814 = vsel %vm1029, %v2802, %v2804
  %v2815 = vsel %vm1029, %v2804, %v2806
  %2825 = vrot.lane.b32.xlu0 %v2592, 59
  %v2826 = vpop.permute.xlu0 %2825
  %2827 = vrot.lane.b32.xlu0 %v2593, 59
  %v2828 = vpop.permute.xlu0 %2827
  %2829 = vrot.lane.b32.xlu0 %v2594, 59
  %v2830 = vpop.permute.xlu0 %2829
  %2831 = vrot.lane.b32.xlu0 %v2595, 59
  %v2832 = vpop.permute.xlu0 %2831
  %2833 = vrot.lane.b32.xlu0 %v2596, 59
  %v2834 = vpop.permute.xlu0 %2833
  %2835 = vrot.lane.b32.xlu0 %v2597, 59
  %v2836 = vpop.permute.xlu0 %2835
  %2837 = vrot.lane.b32.xlu0 %v2598, 59
  %v2838 = vpop.permute.xlu0 %2837
  %2839 = vrot.lane.b32.xlu0 %v2599, 59
  %v2840 = vpop.permute.xlu0 %2839
  %2841 = vrot.lane.b32.xlu0 %v2600, 59
  %v2842 = vpop.permute.xlu0 %2841
  %2843 = vrot.lane.b32.xlu0 %v2601, 59
  %v2844 = vpop.permute.xlu0 %2843
  %v2845 = vsel %vm1068, %v2826, %v2828
  %v2846 = vsel %vm1068, %v2828, %v2830
  %v2847 = vsel %vm1068, %v2830, %v2832
  %v2848 = vsel %vm1068, %v2832, %v2834
  %v2849 = vsel %vm1068, %v2834, %v2836
  %v2850 = vsel %vm1068, %v2836, %v2838
  %v2851 = vsel %vm1068, %v2838, %v2840
  %v2852 = vsel %vm1068, %v2840, %v2842
  %v2853 = vsel %vm1068, %v2842, %v2844
  %2863 = vrot.lane.b32.xlu0 %v2592, 58
  %v2864 = vpop.permute.xlu0 %2863
  %2865 = vrot.lane.b32.xlu0 %v2593, 58
  %v2866 = vpop.permute.xlu0 %2865
  %2867 = vrot.lane.b32.xlu0 %v2594, 58
  %v2868 = vpop.permute.xlu0 %2867
  %2869 = vrot.lane.b32.xlu0 %v2595, 58
  %v2870 = vpop.permute.xlu0 %2869
  %2871 = vrot.lane.b32.xlu0 %v2596, 58
  %v2872 = vpop.permute.xlu0 %2871
  %2873 = vrot.lane.b32.xlu0 %v2597, 58
  %v2874 = vpop.permute.xlu0 %2873
  %2875 = vrot.lane.b32.xlu0 %v2598, 58
  %v2876 = vpop.permute.xlu0 %2875
  %2877 = vrot.lane.b32.xlu0 %v2599, 58
  %v2878 = vpop.permute.xlu0 %2877
  %2879 = vrot.lane.b32.xlu0 %v2600, 58
  %v2880 = vpop.permute.xlu0 %2879
  %2881 = vrot.lane.b32.xlu0 %v2601, 58
  %v2882 = vpop.permute.xlu0 %2881
  %v2883 = vsel %vm1107, %v2864, %v2866
  %v2884 = vsel %vm1107, %v2866, %v2868
  %v2885 = vsel %vm1107, %v2868, %v2870
  %v2886 = vsel %vm1107, %v2870, %v2872
  %v2887 = vsel %vm1107, %v2872, %v2874
  %v2888 = vsel %vm1107, %v2874, %v2876
  %v2889 = vsel %vm1107, %v2876, %v2878
  %v2890 = vsel %vm1107, %v2878, %v2880
  %v2891 = vsel %vm1107, %v2880, %v2882
  %2901 = vmatpush.msra.mxu0 0.0
  %2902 = vmatpush.msra.mxu0 0.0
  %2903 = vmatpush.msra.mxu0 0.0
  %2904 = vmatpush.msra.mxu0 0.0
  %2905 = vmatpush.msra.mxu0 0.0
  %2906 = vmatpush.msra.mxu0 0.0
  %2907 = vmatpush.msra.mxu0 0.0
  %2908 = vmatpush.msra.mxu0 %v2883
  %2909 = vmatpush.msra.mxu0 %v2845
  %2910 = vmatpush.msra.mxu0 %v2807
  %2911 = vmatpush.msra.mxu0 %v2769
  %2912 = vmatpush.msra.mxu0 %v2734
  %2913 = vmatpush.msra.mxu0 %v2699
  %2914 = vmatpush.msra.mxu0 %v2664
  %2915 = vmatpush.msra.mxu0 %v2629
  %2916 = vmatpush.msra.mxu0 %v2592
  %2917 = vmatmul.f32.gmra.mxu0 %v1133
  %v2918 = vpop.f32.mrf.mxu0
  %v2919 = vadd.f32 %v1129, %v2918
  %2920 = vdwg.mxu0
  %2921 = vmatpush.msra.mxu0 0.0
  %2922 = vmatpush.msra.mxu0 0.0
  %2923 = vmatpush.msra.mxu0 0.0
  %2924 = vmatpush.msra.mxu0 0.0
  %2925 = vmatpush.msra.mxu0 0.0
  %2926 = vmatpush.msra.mxu0 0.0
  %2927 = vmatpush.msra.mxu0 0.0
  %2928 = vmatpush.msra.mxu0 %v2884
  %2929 = vmatpush.msra.mxu0 %v2846
  %2930 = vmatpush.msra.mxu0 %v2808
  %2931 = vmatpush.msra.mxu0 %v2770
  %2932 = vmatpush.msra.mxu0 %v2735
  %2933 = vmatpush.msra.mxu0 %v2700
  %2934 = vmatpush.msra.mxu0 %v2665
  %2935 = vmatpush.msra.mxu0 %v2630
  %2936 = vmatpush.msra.mxu0 %v2593
  %2937 = vmatmul.f32.gmra.mxu0 %v1133
  %v2938 = vpop.f32.mrf.mxu0
  %v2939 = vadd.f32 %v1129, %v2938
  %2940 = vdwg.mxu0
  %2941 = vmatpush.msra.mxu0 0.0
  %2942 = vmatpush.msra.mxu0 0.0
  %2943 = vmatpush.msra.mxu0 0.0
  %2944 = vmatpush.msra.mxu0 0.0
  %2945 = vmatpush.msra.mxu0 0.0
  %2946 = vmatpush.msra.mxu0 0.0
  %2947 = vmatpush.msra.mxu0 0.0
  %2948 = vmatpush.msra.mxu0 %v2885
  %2949 = vmatpush.msra.mxu0 %v2847
  %2950 = vmatpush.msra.mxu0 %v2809
  %2951 = vmatpush.msra.mxu0 %v2771
  %2952 = vmatpush.msra.mxu0 %v2736
  %2953 = vmatpush.msra.mxu0 %v2701
  %2954 = vmatpush.msra.mxu0 %v2666
  %2955 = vmatpush.msra.mxu0 %v2631
  %2956 = vmatpush.msra.mxu0 %v2594
  %2957 = vmatmul.f32.gmra.mxu0 %v1133
  %v2958 = vpop.f32.mrf.mxu0
  %v2959 = vadd.f32 %v1129, %v2958
  %2960 = vdwg.mxu0
  %2961 = vmatpush.msra.mxu0 0.0
  %2962 = vmatpush.msra.mxu0 0.0
  %2963 = vmatpush.msra.mxu0 0.0
  %2964 = vmatpush.msra.mxu0 0.0
  %2965 = vmatpush.msra.mxu0 0.0
  %2966 = vmatpush.msra.mxu0 0.0
  %2967 = vmatpush.msra.mxu0 0.0
  %2968 = vmatpush.msra.mxu0 %v2886
  %2969 = vmatpush.msra.mxu0 %v2848
  %2970 = vmatpush.msra.mxu0 %v2810
  %2971 = vmatpush.msra.mxu0 %v2772
  %2972 = vmatpush.msra.mxu0 %v2737
  %2973 = vmatpush.msra.mxu0 %v2702
  %2974 = vmatpush.msra.mxu0 %v2667
  %2975 = vmatpush.msra.mxu0 %v2632
  %2976 = vmatpush.msra.mxu0 %v2595
  %2977 = vmatmul.f32.gmra.mxu0 %v1133
  %v2978 = vpop.f32.mrf.mxu0
  %v2979 = vadd.f32 %v1129, %v2978
  %2980 = vdwg.mxu0
  %2981 = vmatpush.msra.mxu0 0.0
  %2982 = vmatpush.msra.mxu0 0.0
  %2983 = vmatpush.msra.mxu0 0.0
  %2984 = vmatpush.msra.mxu0 0.0
  %2985 = vmatpush.msra.mxu0 0.0
  %2986 = vmatpush.msra.mxu0 0.0
  %2987 = vmatpush.msra.mxu0 0.0
  %2988 = vmatpush.msra.mxu0 %v2887
  %2989 = vmatpush.msra.mxu0 %v2849
  %2990 = vmatpush.msra.mxu0 %v2811
  %2991 = vmatpush.msra.mxu0 %v2773
  %2992 = vmatpush.msra.mxu0 %v2738
  %2993 = vmatpush.msra.mxu0 %v2703
  %2994 = vmatpush.msra.mxu0 %v2668
  %2995 = vmatpush.msra.mxu0 %v2633
  %2996 = vmatpush.msra.mxu0 %v2596
  %2997 = vmatmul.f32.gmra.mxu0 %v1133
  %v2998 = vpop.f32.mrf.mxu0
  %v2999 = vadd.f32 %v1129, %v2998
  %3000 = vdwg.mxu0
  %3001 = vmatpush.msra.mxu0 0.0
  %3002 = vmatpush.msra.mxu0 0.0
  %3003 = vmatpush.msra.mxu0 0.0
  %3004 = vmatpush.msra.mxu0 0.0
  %3005 = vmatpush.msra.mxu0 0.0
  %3006 = vmatpush.msra.mxu0 0.0
  %3007 = vmatpush.msra.mxu0 0.0
  %3008 = vmatpush.msra.mxu0 %v2888
  %3009 = vmatpush.msra.mxu0 %v2850
  %3010 = vmatpush.msra.mxu0 %v2812
  %3011 = vmatpush.msra.mxu0 %v2774
  %3012 = vmatpush.msra.mxu0 %v2739
  %3013 = vmatpush.msra.mxu0 %v2704
  %3014 = vmatpush.msra.mxu0 %v2669
  %3015 = vmatpush.msra.mxu0 %v2634
  %3016 = vmatpush.msra.mxu0 %v2597
  %3017 = vmatmul.f32.gmra.mxu0 %v1133
  %v3018 = vpop.f32.mrf.mxu0
  %v3019 = vadd.f32 %v1129, %v3018
  %3020 = vdwg.mxu0
  %3021 = vmatpush.msra.mxu0 0.0
  %3022 = vmatpush.msra.mxu0 0.0
  %3023 = vmatpush.msra.mxu0 0.0
  %3024 = vmatpush.msra.mxu0 0.0
  %3025 = vmatpush.msra.mxu0 0.0
  %3026 = vmatpush.msra.mxu0 0.0
  %3027 = vmatpush.msra.mxu0 0.0
  %3028 = vmatpush.msra.mxu0 %v2889
  %3029 = vmatpush.msra.mxu0 %v2851
  %3030 = vmatpush.msra.mxu0 %v2813
  %3031 = vmatpush.msra.mxu0 %v2775
  %3032 = vmatpush.msra.mxu0 %v2740
  %3033 = vmatpush.msra.mxu0 %v2705
  %3034 = vmatpush.msra.mxu0 %v2670
  %3035 = vmatpush.msra.mxu0 %v2635
  %3036 = vmatpush.msra.mxu0 %v2598
  %3037 = vmatmul.f32.gmra.mxu0 %v1133
  %v3038 = vpop.f32.mrf.mxu0
  %v3039 = vadd.f32 %v1129, %v3038
  %3040 = vdwg.mxu0
  %3041 = vmatpush.msra.mxu0 0.0
  %3042 = vmatpush.msra.mxu0 0.0
  %3043 = vmatpush.msra.mxu0 0.0
  %3044 = vmatpush.msra.mxu0 0.0
  %3045 = vmatpush.msra.mxu0 0.0
  %3046 = vmatpush.msra.mxu0 0.0
  %3047 = vmatpush.msra.mxu0 0.0
  %3048 = vmatpush.msra.mxu0 %v2890
  %3049 = vmatpush.msra.mxu0 %v2852
  %3050 = vmatpush.msra.mxu0 %v2814
  %3051 = vmatpush.msra.mxu0 %v2776
  %3052 = vmatpush.msra.mxu0 %v2741
  %3053 = vmatpush.msra.mxu0 %v2706
  %3054 = vmatpush.msra.mxu0 %v2671
  %3055 = vmatpush.msra.mxu0 %v2636
  %3056 = vmatpush.msra.mxu0 %v2599
  %3057 = vmatmul.f32.gmra.mxu0 %v1133
  %v3058 = vpop.f32.mrf.mxu0
  %v3059 = vadd.f32 %v1129, %v3058
  %3060 = vdwg.mxu0
  %3061 = vmatpush.msra.mxu0 0.0
  %3062 = vmatpush.msra.mxu0 0.0
  %3063 = vmatpush.msra.mxu0 0.0
  %3064 = vmatpush.msra.mxu0 0.0
  %3065 = vmatpush.msra.mxu0 0.0
  %3066 = vmatpush.msra.mxu0 0.0
  %3067 = vmatpush.msra.mxu0 0.0
  %3068 = vmatpush.msra.mxu0 %v2891
  %3069 = vmatpush.msra.mxu0 %v2853
  %3070 = vmatpush.msra.mxu0 %v2815
  %3071 = vmatpush.msra.mxu0 %v2768
  %3072 = vmatpush.msra.mxu0 %v2733
  %3073 = vmatpush.msra.mxu0 %v2698
  %3074 = vmatpush.msra.mxu0 %v2663
  %3075 = vmatpush.msra.mxu0 %v2628
  %3076 = vmatpush.msra.mxu0 %v2600
  %3077 = vmatmul.f32.gmra.mxu0 %v1133
  %v3078 = vpop.f32.mrf.mxu0
  %v3079 = vadd.f32 %v1129, %v3078
  %3080 = vdwg.mxu0
  %v3081 = vmax.f32 %v2919, 0.0
  %v3082 = vmax.f32 %v2939, 0.0
  %v3083 = vmax.f32 %v2959, 0.0
  %v3084 = vmax.f32 %v2979, 0.0
  %v3085 = vmax.f32 %v2999, 0.0
  %v3086 = vmax.f32 %v3019, 0.0
  %v3087 = vmax.f32 %v3039, 0.0
  %v3088 = vmax.f32 %v3059, 0.0
  %v3089 = vmax.f32 %v3079, 0.0
  %v3090 = vmul.f32 %v3081, %v1326
  %v3091 = vmul.f32 %v3082, %v1327
  %v3092 = vmul.f32 %v3083, %v1328
  %v3093 = vmul.f32 %v3084, %v1329
  %v3094 = vmul.f32 %v3085, %v1330
  %v3095 = vmul.f32 %v3086, %v1331
  %v3096 = vmul.f32 %v3087, %v1332
  %v3097 = vmul.f32 %v3088, %v1333
  %v3098 = vmul.f32 %v3089, %v1334
  %v3108 = vrot.slane %v3091, 4
  %v3109 = vrot.slane %v3093, 4
  %v3110 = vrot.slane %v3095, 4
  %v3111 = vrot.slane %v3097, 4
  %v3112 = vsel %vm33, %v3090, %v3108
  %v3113 = vsel %vm33, %v3092, %v3109
  %v3114 = vsel %vm33, %v3094, %v3110
  %v3115 = vsel %vm33, %v3096, %v3111
  %3116 = vrot.lane.b32.xlu0 %v3112, 35
  %v3117 = vpop.permute.xlu0 %3116
  %3118 = vrot.lane.b32.xlu0 %v3113, 35
  %v3119 = vpop.permute.xlu0 %3118
  %3120 = vrot.lane.b32.xlu0 %v3114, 35
  %v3121 = vpop.permute.xlu0 %3120
  %3122 = vrot.lane.b32.xlu0 %v3115, 35
  %v3123 = vpop.permute.xlu0 %3122
  %3124 = vrot.lane.b32.xlu0 %v3098, 35
  %v3125 = vpop.permute.xlu0 %3124
  %v3126 = vrot.slane %v3117, 4
  %v3127 = vrot.slane %v3119, 4
  %v3128 = vrot.slane %v3121, 4
  %v3129 = vrot.slane %v3123, 4
  %v3130 = vsel %vm1384, %v3126, %v3117
  %v3131 = vsel %vm33, %v3126, %v3127
  %v3132 = vsel %vm1384, %v3131, %v3119
  %v3133 = vsel %vm33, %v3127, %v3128
  %v3134 = vsel %vm1384, %v3133, %v3121
  %v3135 = vsel %vm33, %v3128, %v3129
  %v3136 = vsel %vm1384, %v3135, %v3123
  %v3137 = vsel %vm1384, %v3129, %v3125
  %3143 = vst.msk [vmem:[#allocation2] sm:$0xff] %vm1400, %v3130
  %3144 = vst [vmem:[#allocation2 + $0x8] sm:$0xff] %v3132
  %3145 = vst [vmem:[#allocation2 + $0x10] sm:$0xff] %v3134
  %3146 = vst [vmem:[#allocation2 + $0x18] sm:$0xff] %v3136
  %3147 = vst.msk [vmem:[#allocation2 + $0x20] sm:$0xf] %vm1405, %v3137
  %v3148 = vld [vmem:[#allocation2] sm:$0xff]
  %v3149 = vld [vmem:[#allocation2 + $0x8] sm:$0xff]
  %v3150 = vld [vmem:[#allocation2 + $0x10] sm:$0xff]
  %v3151 = vld [vmem:[#allocation2 + $0x18] sm:$0xff]
  %v3152 = vld [vmem:[#allocation2 + $0x20] sm:$0xff]
  %3158 = vst [vmem:[#allocation1] ss:$2 sm:$0xff] %v3148
  %s3159 = scalar_lea.vmem [#allocation1], 16
  %3160 = vst [vmem:[%s3159] ss:$2 sm:$0xff] %v3149
  %s3161 = scalar_lea.vmem [#allocation1], 32
  %3162 = vst [vmem:[%s3161] ss:$2 sm:$0xff] %v3150
  %s3163 = scalar_lea.vmem [#allocation1], 48
  %3164 = vst [vmem:[%s3163] ss:$2 sm:$0xff] %v3151
  %v3165 = vld.sshfl [vmem:[#allocation1] sm:$0xff pattern:$0x75316420]
  %v3166 = vld.sshfl [vmem:[#allocation1 + $0x8] sm:$0xff pattern:$0x75316420]
  %v3167 = vld.sshfl [vmem:[#allocation1 + $0x10] sm:$0xff pattern:$0x75316420]
  %v3168 = vld.sshfl [vmem:[#allocation1 + $0x18] sm:$0xff pattern:$0x75316420]
  %v3169 = vld.sshfl [vmem:[#allocation1 + $0x20] sm:$0xff pattern:$0x75316420]
  %v3170 = vld.sshfl [vmem:[#allocation1 + $0x28] sm:$0xff pattern:$0x75316420]
  %v3171 = vld.sshfl [vmem:[#allocation1 + $0x30] sm:$0xff pattern:$0x75316420]
  %v3172 = vld.sshfl [vmem:[#allocation1 + $0x38] sm:$0xff pattern:$0x75316420]
  %3173 = vst [vmem:[#allocation1] ss:$2 sm:$0xff] %v3152
  %v3174 = vld.sshfl [vmem:[#allocation1] sm:$0xff pattern:$0x75316420]
  %s3184 = scalar_lea.vmem [#allocation1], 1
  %3185 = vst [vmem:[%s3184] ss:$2 sm:$0xff] %v3148
  %s3186 = scalar_lea.vmem [#allocation1], 17
  %3187 = vst [vmem:[%s3186] ss:$2 sm:$0xff] %v3149
  %s3188 = scalar_lea.vmem [#allocation1], 33
  %3189 = vst [vmem:[%s3188] ss:$2 sm:$0xff] %v3150
  %s3190 = scalar_lea.vmem [#allocation1], 49
  %3191 = vst [vmem:[%s3190] ss:$2 sm:$0xff] %v3151
  %v3192 = vld.sshfl [vmem:[#allocation1] sm:$0xff pattern:$0x75316420]
  %v3193 = vld.sshfl [vmem:[#allocation1 + $0x8] sm:$0xff pattern:$0x75316420]
  %v3194 = vld.sshfl [vmem:[#allocation1 + $0x10] sm:$0xff pattern:$0x75316420]
  %v3195 = vld.sshfl [vmem:[#allocation1 + $0x18] sm:$0xff pattern:$0x75316420]
  %v3196 = vld.sshfl [vmem:[#allocation1 + $0x20] sm:$0xff pattern:$0x75316420]
  %v3197 = vld.sshfl [vmem:[#allocation1 + $0x28] sm:$0xff pattern:$0x75316420]
  %v3198 = vld.sshfl [vmem:[#allocation1 + $0x30] sm:$0xff pattern:$0x75316420]
  %v3199 = vld.sshfl [vmem:[#allocation1 + $0x38] sm:$0xff pattern:$0x75316420]
  %3200 = vst [vmem:[%s3184] ss:$2 sm:$0xff] %v3152
  %v3201 = vld.sshfl [vmem:[#allocation1] sm:$0xff pattern:$0x75316420]
  %3202 = vrot.lane.b32.xlu0 %v3192, 127
  %v3203 = vpop.permute.xlu0 %3202
  %3204 = vrot.lane.b32.xlu0 %v3193, 127
  %v3205 = vpop.permute.xlu0 %3204
  %3206 = vrot.lane.b32.xlu0 %v3194, 127
  %v3207 = vpop.permute.xlu0 %3206
  %3208 = vrot.lane.b32.xlu0 %v3195, 127
  %v3209 = vpop.permute.xlu0 %3208
  %3210 = vrot.lane.b32.xlu0 %v3196, 127
  %v3211 = vpop.permute.xlu0 %3210
  %3212 = vrot.lane.b32.xlu0 %v3197, 127
  %v3213 = vpop.permute.xlu0 %3212
  %3214 = vrot.lane.b32.xlu0 %v3198, 127
  %v3215 = vpop.permute.xlu0 %3214
  %3216 = vrot.lane.b32.xlu0 %v3199, 127
  %v3217 = vpop.permute.xlu0 %3216
  %3218 = vrot.lane.b32.xlu0 %v3201, 127
  %v3219 = vpop.permute.xlu0 %3218
  %v3220 = vsel %vm846, %v3203, %v3205
  %v3221 = vsel %vm846, %v3205, %v3207
  %v3222 = vsel %vm846, %v3207, %v3209
  %v3223 = vsel %vm846, %v3209, %v3211
  %v3224 = vsel %vm846, %v3211, %v3213
  %v3225 = vsel %vm846, %v3213, %v3215
  %v3226 = vsel %vm846, %v3215, %v3217
  %v3227 = vsel %vm846, %v3217, %v3219
  %3237 = vst [vmem:[#allocation1] ss:$2 sm:$0xff] %v3148
  %s3238 = scalar_lea.vmem [#allocation1], 16
  %3239 = vst [vmem:[%s3238] ss:$2 sm:$0xff] %v3149
  %s3240 = scalar_lea.vmem [#allocation1], 32
  %3241 = vst [vmem:[%s3240] ss:$2 sm:$0xff] %v3150
  %s3242 = scalar_lea.vmem [#allocation1], 48
  %3243 = vst [vmem:[%s3242] ss:$2 sm:$0xff] %v3151
  %v3244 = vld.sshfl [vmem:[#allocation1] sm:$0xff pattern:$0x75316420]
  %v3245 = vld.sshfl [vmem:[#allocation1 + $0x8] sm:$0xff pattern:$0x75316420]
  %v3246 = vld.sshfl [vmem:[#allocation1 + $0x10] sm:$0xff pattern:$0x75316420]
  %v3247 = vld.sshfl [vmem:[#allocation1 + $0x18] sm:$0xff pattern:$0x75316420]
  %v3248 = vld.sshfl [vmem:[#allocation1 + $0x20] sm:$0xff pattern:$0x75316420]
  %v3249 = vld.sshfl [vmem:[#allocation1 + $0x28] sm:$0xff pattern:$0x75316420]
  %v3250 = vld.sshfl [vmem:[#allocation1 + $0x30] sm:$0xff pattern:$0x75316420]
  %v3251 = vld.sshfl [vmem:[#allocation1 + $0x38] sm:$0xff pattern:$0x75316420]
  %3252 = vst [vmem:[#allocation1] ss:$2 sm:$0xff] %v3152
  %v3253 = vld.sshfl [vmem:[#allocation1] sm:$0xff pattern:$0x75316420]
  %3254 = vrot.lane.b32.xlu0 %v3244, 126
  %v3255 = vpop.permute.xlu0 %3254
  %3256 = vrot.lane.b32.xlu0 %v3245, 126
  %v3257 = vpop.permute.xlu0 %3256
  %3258 = vrot.lane.b32.xlu0 %v3246, 126
  %v3259 = vpop.permute.xlu0 %3258
  %3260 = vrot.lane.b32.xlu0 %v3247, 126
  %v3261 = vpop.permute.xlu0 %3260
  %3262 = vrot.lane.b32.xlu0 %v3248, 126
  %v3263 = vpop.permute.xlu0 %3262
  %3264 = vrot.lane.b32.xlu0 %v3249, 126
  %v3265 = vpop.permute.xlu0 %3264
  %3266 = vrot.lane.b32.xlu0 %v3250, 126
  %v3267 = vpop.permute.xlu0 %3266
  %3268 = vrot.lane.b32.xlu0 %v3251, 126
  %v3269 = vpop.permute.xlu0 %3268
  %3270 = vrot.lane.b32.xlu0 %v3253, 126
  %v3271 = vpop.permute.xlu0 %3270
  %v3272 = vsel %vm882, %v3255, %v3257
  %v3273 = vsel %vm882, %v3257, %v3259
  %v3274 = vsel %vm882, %v3259, %v3261
  %v3275 = vsel %vm882, %v3261, %v3263
  %v3276 = vsel %vm882, %v3263, %v3265
  %v3277 = vsel %vm882, %v3265, %v3267
  %v3278 = vsel %vm882, %v3267, %v3269
  %v3279 = vsel %vm882, %v3269, %v3271
  %s3289 = scalar_lea.vmem [#allocation1], 1
  %3290 = vst [vmem:[%s3289] ss:$2 sm:$0xff] %v3148
  %s3291 = scalar_lea.vmem [#allocation1], 17
  %3292 = vst [vmem:[%s3291] ss:$2 sm:$0xff] %v3149
  %s3293 = scalar_lea.vmem [#allocation1], 33
  %3294 = vst [vmem:[%s3293] ss:$2 sm:$0xff] %v3150
  %s3295 = scalar_lea.vmem [#allocation1], 49
  %3296 = vst [vmem:[%s3295] ss:$2 sm:$0xff] %v3151
  %v3297 = vld.sshfl [vmem:[#allocation1] sm:$0xff pattern:$0x75316420]
  %v3298 = vld.sshfl [vmem:[#allocation1 + $0x8] sm:$0xff pattern:$0x75316420]
  %v3299 = vld.sshfl [vmem:[#allocation1 + $0x10] sm:$0xff pattern:$0x75316420]
  %v3300 = vld.sshfl [vmem:[#allocation1 + $0x18] sm:$0xff pattern:$0x75316420]
  %v3301 = vld.sshfl [vmem:[#allocation1 + $0x20] sm:$0xff pattern:$0x75316420]
  %v3302 = vld.sshfl [vmem:[#allocation1 + $0x28] sm:$0xff pattern:$0x75316420]
  %v3303 = vld.sshfl [vmem:[#allocation1 + $0x30] sm:$0xff pattern:$0x75316420]
  %v3304 = vld.sshfl [vmem:[#allocation1 + $0x38] sm:$0xff pattern:$0x75316420]
  %3305 = vst [vmem:[%s3289] ss:$2 sm:$0xff] %v3152
  %v3306 = vld.sshfl [vmem:[#allocation1] sm:$0xff pattern:$0x75316420]
  %3307 = vrot.lane.b32.xlu0 %v3297, 94
  %v3308 = vpop.permute.xlu0 %3307
  %3309 = vrot.lane.b32.xlu0 %v3298, 94
  %v3310 = vpop.permute.xlu0 %3309
  %3311 = vrot.lane.b32.xlu0 %v3299, 94
  %v3312 = vpop.permute.xlu0 %3311
  %3313 = vrot.lane.b32.xlu0 %v3300, 94
  %v3314 = vpop.permute.xlu0 %3313
  %3315 = vrot.lane.b32.xlu0 %v3301, 94
  %v3316 = vpop.permute.xlu0 %3315
  %3317 = vrot.lane.b32.xlu0 %v3302, 94
  %v3318 = vpop.permute.xlu0 %3317
  %3319 = vrot.lane.b32.xlu0 %v3303, 94
  %v3320 = vpop.permute.xlu0 %3319
  %3321 = vrot.lane.b32.xlu0 %v3304, 94
  %v3322 = vpop.permute.xlu0 %3321
  %3323 = vrot.lane.b32.xlu0 %v3306, 94
  %v3324 = vpop.permute.xlu0 %3323
  %v3325 = vsel %vm918, %v3308, %v3310
  %v3326 = vsel %vm918, %v3310, %v3312
  %v3327 = vsel %vm918, %v3312, %v3314
  %v3328 = vsel %vm918, %v3314, %v3316
  %v3329 = vsel %vm918, %v3316, %v3318
  %v3330 = vsel %vm918, %v3318, %v3320
  %v3331 = vsel %vm918, %v3320, %v3322
  %v3332 = vsel %vm918, %v3322, %v3324
  %3342 = vst [vmem:[#allocation1] ss:$2 sm:$0xff] %v3148
  %s3343 = scalar_lea.vmem [#allocation1], 16
  %3344 = vst [vmem:[%s3343] ss:$2 sm:$0xff] %v3149
  %s3345 = scalar_lea.vmem [#allocation1], 32
  %3346 = vst [vmem:[%s3345] ss:$2 sm:$0xff] %v3150
  %s3347 = scalar_lea.vmem [#allocation1], 48
  %3348 = vst [vmem:[%s3347] ss:$2 sm:$0xff] %v3151
  %v3349 = vld.sshfl [vmem:[#allocation1] sm:$0xff pattern:$0x75316420]
  %v3350 = vld.sshfl [vmem:[#allocation1 + $0x8] sm:$0xff pattern:$0x75316420]
  %v3351 = vld.sshfl [vmem:[#allocation1 + $0x10] sm:$0xff pattern:$0x75316420]
  %v3352 = vld.sshfl [vmem:[#allocation1 + $0x18] sm:$0xff pattern:$0x75316420]
  %v3353 = vld.sshfl [vmem:[#allocation1 + $0x20] sm:$0xff pattern:$0x75316420]
  %v3354 = vld.sshfl [vmem:[#allocation1 + $0x28] sm:$0xff pattern:$0x75316420]
  %v3355 = vld.sshfl [vmem:[#allocation1 + $0x30] sm:$0xff pattern:$0x75316420]
  %v3356 = vld.sshfl [vmem:[#allocation1 + $0x38] sm:$0xff pattern:$0x75316420]
  %3357 = vst [vmem:[#allocation1] ss:$2 sm:$0xff] %v3152
  %v3358 = vld.sshfl [vmem:[#allocation1] sm:$0xff pattern:$0x75316420]
  %3359 = vrot.lane.b32.xlu0 %v3349, 93
  %v3360 = vpop.permute.xlu0 %3359
  %3361 = vrot.lane.b32.xlu0 %v3350, 93
  %v3362 = vpop.permute.xlu0 %3361
  %3363 = vrot.lane.b32.xlu0 %v3351, 93
  %v3364 = vpop.permute.xlu0 %3363
  %3365 = vrot.lane.b32.xlu0 %v3352, 93
  %v3366 = vpop.permute.xlu0 %3365
  %3367 = vrot.lane.b32.xlu0 %v3353, 93
  %v3368 = vpop.permute.xlu0 %3367
  %3369 = vrot.lane.b32.xlu0 %v3354, 93
  %v3370 = vpop.permute.xlu0 %3369
  %3371 = vrot.lane.b32.xlu0 %v3355, 93
  %v3372 = vpop.permute.xlu0 %3371
  %3373 = vrot.lane.b32.xlu0 %v3356, 93
  %v3374 = vpop.permute.xlu0 %3373
  %3375 = vrot.lane.b32.xlu0 %v3358, 93
  %v3376 = vpop.permute.xlu0 %3375
  %v3377 = vsel %vm954, %v3360, %v3362
  %v3378 = vsel %vm954, %v3362, %v3364
  %v3379 = vsel %vm954, %v3364, %v3366
  %v3380 = vsel %vm954, %v3366, %v3368
  %v3381 = vsel %vm954, %v3368, %v3370
  %v3382 = vsel %vm954, %v3370, %v3372
  %v3383 = vsel %vm954, %v3372, %v3374
  %v3384 = vsel %vm954, %v3374, %v3376
  %s3394 = scalar_lea.vmem [#allocation1], 1
  %3395 = vst [vmem:[%s3394] ss:$2 sm:$0xff] %v3148
  %s3396 = scalar_lea.vmem [#allocation1], 17
  %3397 = vst [vmem:[%s3396] ss:$2 sm:$0xff] %v3149
  %s3398 = scalar_lea.vmem [#allocation1], 33
  %3399 = vst [vmem:[%s3398] ss:$2 sm:$0xff] %v3150
  %s3400 = scalar_lea.vmem [#allocation1], 49
  %3401 = vst [vmem:[%s3400] ss:$2 sm:$0xff] %v3151
  %v3402 = vld.sshfl [vmem:[#allocation1] sm:$0xff pattern:$0x75316420]
  %v3403 = vld.sshfl [vmem:[#allocation1 + $0x8] sm:$0xff pattern:$0x75316420]
  %v3404 = vld.sshfl [vmem:[#allocation1 + $0x10] sm:$0xff pattern:$0x75316420]
  %v3405 = vld.sshfl [vmem:[#allocation1 + $0x18] sm:$0xff pattern:$0x75316420]
  %v3406 = vld.sshfl [vmem:[#allocation1 + $0x20] sm:$0xff pattern:$0x75316420]
  %v3407 = vld.sshfl [vmem:[#allocation1 + $0x28] sm:$0xff pattern:$0x75316420]
  %v3408 = vld.sshfl [vmem:[#allocation1 + $0x30] sm:$0xff pattern:$0x75316420]
  %v3409 = vld.sshfl [vmem:[#allocation1 + $0x38] sm:$0xff pattern:$0x75316420]
  %3410 = vst [vmem:[%s3394] ss:$2 sm:$0xff] %v3152
  %v3411 = vld.sshfl [vmem:[#allocation1] sm:$0xff pattern:$0x75316420]
  %3412 = vrot.lane.b32.xlu0 %v3402, 92
  %v3413 = vpop.permute.xlu0 %3412
  %3414 = vrot.lane.b32.xlu0 %v3403, 92
  %v3415 = vpop.permute.xlu0 %3414
  %3416 = vrot.lane.b32.xlu0 %v3404, 92
  %v3417 = vpop.permute.xlu0 %3416
  %3418 = vrot.lane.b32.xlu0 %v3405, 92
  %v3419 = vpop.permute.xlu0 %3418
  %3420 = vrot.lane.b32.xlu0 %v3406, 92
  %v3421 = vpop.permute.xlu0 %3420
  %3422 = vrot.lane.b32.xlu0 %v3407, 92
  %v3423 = vpop.permute.xlu0 %3422
  %3424 = vrot.lane.b32.xlu0 %v3408, 92
  %v3425 = vpop.permute.xlu0 %3424
  %3426 = vrot.lane.b32.xlu0 %v3409, 92
  %v3427 = vpop.permute.xlu0 %3426
  %3428 = vrot.lane.b32.xlu0 %v3411, 92
  %v3429 = vpop.permute.xlu0 %3428
  %v3430 = vsel %vm990, %v3413, %v3415
  %v3431 = vsel %vm990, %v3415, %v3417
  %v3432 = vsel %vm990, %v3417, %v3419
  %v3433 = vsel %vm990, %v3419, %v3421
  %v3434 = vsel %vm990, %v3421, %v3423
  %v3435 = vsel %vm990, %v3423, %v3425
  %v3436 = vsel %vm990, %v3425, %v3427
  %v3437 = vsel %vm990, %v3427, %v3429
  %3447 = vst [vmem:[#allocation1] ss:$2 sm:$0xff] %v3148
  %s3448 = scalar_lea.vmem [#allocation1], 16
  %3449 = vst [vmem:[%s3448] ss:$2 sm:$0xff] %v3149
  %s3450 = scalar_lea.vmem [#allocation1], 32
  %3451 = vst [vmem:[%s3450] ss:$2 sm:$0xff] %v3150
  %s3452 = scalar_lea.vmem [#allocation1], 48
  %3453 = vst [vmem:[%s3452] ss:$2 sm:$0xff] %v3151
  %v3454 = vld.sshfl [vmem:[#allocation1] sm:$0xff pattern:$0x75316420]
  %v3455 = vld.sshfl [vmem:[#allocation1 + $0x8] sm:$0xff pattern:$0x75316420]
  %v3456 = vld.sshfl [vmem:[#allocation1 + $0x10] sm:$0xff pattern:$0x75316420]
  %v3457 = vld.sshfl [vmem:[#allocation1 + $0x18] sm:$0xff pattern:$0x75316420]
  %v3458 = vld.sshfl [vmem:[#allocation1 + $0x20] sm:$0xff pattern:$0x75316420]
  %v3459 = vld.sshfl [vmem:[#allocation1 + $0x28] sm:$0xff pattern:$0x75316420]
  %v3460 = vld.sshfl [vmem:[#allocation1 + $0x30] sm:$0xff pattern:$0x75316420]
  %v3461 = vld.sshfl [vmem:[#allocation1 + $0x38] sm:$0xff pattern:$0x75316420]
  %3462 = vst [vmem:[#allocation1] ss:$2 sm:$0xff] %v3152
  %v3463 = vld.sshfl [vmem:[#allocation1] sm:$0xff pattern:$0x75316420]
  %v3464 = vld.sshfl [vmem:[#allocation1 + $0x8] sm:$0xff pattern:$0x75316420]
  %3465 = vrot.lane.b32.xlu0 %v3454, 60
  %v3466 = vpop.permute.xlu0 %3465
  %3467 = vrot.lane.b32.xlu0 %v3455, 60
  %v3468 = vpop.permute.xlu0 %3467
  %3469 = vrot.lane.b32.xlu0 %v3456, 60
  %v3470 = vpop.permute.xlu0 %3469
  %3471 = vrot.lane.b32.xlu0 %v3457, 60
  %v3472 = vpop.permute.xlu0 %3471
  %3473 = vrot.lane.b32.xlu0 %v3458, 60
  %v3474 = vpop.permute.xlu0 %3473
  %3475 = vrot.lane.b32.xlu0 %v3459, 60
  %v3476 = vpop.permute.xlu0 %3475
  %3477 = vrot.lane.b32.xlu0 %v3460, 60
  %v3478 = vpop.permute.xlu0 %3477
  %3479 = vrot.lane.b32.xlu0 %v3461, 60
  %v3480 = vpop.permute.xlu0 %3479
  %3481 = vrot.lane.b32.xlu0 %v3463, 60
  %v3482 = vpop.permute.xlu0 %3481
  %3483 = vrot.lane.b32.xlu0 %v3464, 60
  %v3484 = vpop.permute.xlu0 %3483
  %v3485 = vsel %vm1029, %v3466, %v3468
  %v3486 = vsel %vm1029, %v3468, %v3470
  %v3487 = vsel %vm1029, %v3470, %v3472
  %v3488 = vsel %vm1029, %v3472, %v3474
  %v3489 = vsel %vm1029, %v3474, %v3476
  %v3490 = vsel %vm1029, %v3476, %v3478
  %v3491 = vsel %vm1029, %v3478, %v3480
  %v3492 = vsel %vm1029, %v3480, %v3482
  %v3493 = vsel %vm1029, %v3482, %v3484
  %s3503 = scalar_lea.vmem [#allocation1], 1
  %3504 = vst [vmem:[%s3503] ss:$2 sm:$0xff] %v3148
  %s3505 = scalar_lea.vmem [#allocation1], 17
  %3506 = vst [vmem:[%s3505] ss:$2 sm:$0xff] %v3149
  %s3507 = scalar_lea.vmem [#allocation1], 33
  %3508 = vst [vmem:[%s3507] ss:$2 sm:$0xff] %v3150
  %s3509 = scalar_lea.vmem [#allocation1], 49
  %3510 = vst [vmem:[%s3509] ss:$2 sm:$0xff] %v3151
  %v3511 = vld.sshfl [vmem:[#allocation1] sm:$0xff pattern:$0x75316420]
  %v3512 = vld.sshfl [vmem:[#allocation1 + $0x8] sm:$0xff pattern:$0x75316420]
  %v3513 = vld.sshfl [vmem:[#allocation1 + $0x10] sm:$0xff pattern:$0x75316420]
  %v3514 = vld.sshfl [vmem:[#allocation1 + $0x18] sm:$0xff pattern:$0x75316420]
  %v3515 = vld.sshfl [vmem:[#allocation1 + $0x20] sm:$0xff pattern:$0x75316420]
  %v3516 = vld.sshfl [vmem:[#allocation1 + $0x28] sm:$0xff pattern:$0x75316420]
  %v3517 = vld.sshfl [vmem:[#allocation1 + $0x30] sm:$0xff pattern:$0x75316420]
  %v3518 = vld.sshfl [vmem:[#allocation1 + $0x38] sm:$0xff pattern:$0x75316420]
  %3519 = vst [vmem:[%s3503] ss:$2 sm:$0xff] %v3152
  %v3520 = vld.sshfl [vmem:[#allocation1] sm:$0xff pattern:$0x75316420]
  %v3521 = vld.sshfl [vmem:[#allocation1 + $0x8] sm:$0xff pattern:$0x75316420]
  %3522 = vrot.lane.b32.xlu0 %v3511, 59
  %v3523 = vpop.permute.xlu0 %3522
  %3524 = vrot.lane.b32.xlu0 %v3512, 59
  %v3525 = vpop.permute.xlu0 %3524
  %3526 = vrot.lane.b32.xlu0 %v3513, 59
  %v3527 = vpop.permute.xlu0 %3526
  %3528 = vrot.lane.b32.xlu0 %v3514, 59
  %v3529 = vpop.permute.xlu0 %3528
  %3530 = vrot.lane.b32.xlu0 %v3515, 59
  %v3531 = vpop.permute.xlu0 %3530
  %3532 = vrot.lane.b32.xlu0 %v3516, 59
  %v3533 = vpop.permute.xlu0 %3532
  %3534 = vrot.lane.b32.xlu0 %v3517, 59
  %v3535 = vpop.permute.xlu0 %3534
  %3536 = vrot.lane.b32.xlu0 %v3518, 59
  %v3537 = vpop.permute.xlu0 %3536
  %3538 = vrot.lane.b32.xlu0 %v3520, 59
  %v3539 = vpop.permute.xlu0 %3538
  %3540 = vrot.lane.b32.xlu0 %v3521, 59
  %v3541 = vpop.permute.xlu0 %3540
  %v3542 = vsel %vm1068, %v3523, %v3525
  %v3543 = vsel %vm1068, %v3525, %v3527
  %v3544 = vsel %vm1068, %v3527, %v3529
  %v3545 = vsel %vm1068, %v3529, %v3531
  %v3546 = vsel %vm1068, %v3531, %v3533
  %v3547 = vsel %vm1068, %v3533, %v3535
  %v3548 = vsel %vm1068, %v3535, %v3537
  %v3549 = vsel %vm1068, %v3537, %v3539
  %v3550 = vsel %vm1068, %v3539, %v3541
  %3560 = vst [vmem:[#allocation1] ss:$2 sm:$0xff] %v3148
  %s3561 = scalar_lea.vmem [#allocation1], 16
  %3562 = vst [vmem:[%s3561] ss:$2 sm:$0xff] %v3149
  %s3563 = scalar_lea.vmem [#allocation1], 32
  %3564 = vst [vmem:[%s3563] ss:$2 sm:$0xff] %v3150
  %s3565 = scalar_lea.vmem [#allocation1], 48
  %3566 = vst [vmem:[%s3565] ss:$2 sm:$0xff] %v3151
  %v3567 = vld.sshfl [vmem:[#allocation1] sm:$0xff pattern:$0x75316420]
  %v3568 = vld.sshfl [vmem:[#allocation1 + $0x8] sm:$0xff pattern:$0x75316420]
  %v3569 = vld.sshfl [vmem:[#allocation1 + $0x10] sm:$0xff pattern:$0x75316420]
  %v3570 = vld.sshfl [vmem:[#allocation1 + $0x18] sm:$0xff pattern:$0x75316420]
  %v3571 = vld.sshfl [vmem:[#allocation1 + $0x20] sm:$0xff pattern:$0x75316420]
  %v3572 = vld.sshfl [vmem:[#allocation1 + $0x28] sm:$0xff pattern:$0x75316420]
  %v3573 = vld.sshfl [vmem:[#allocation1 + $0x30] sm:$0xff pattern:$0x75316420]
  %v3574 = vld.sshfl [vmem:[#allocation1 + $0x38] sm:$0xff pattern:$0x75316420]
  %3575 = vst [vmem:[#allocation1] ss:$2 sm:$0xff] %v3152
  %v3576 = vld.sshfl [vmem:[#allocation1] sm:$0xff pattern:$0x75316420]
  %v3577 = vld.sshfl [vmem:[#allocation1 + $0x8] sm:$0xff pattern:$0x75316420]
  %3578 = vrot.lane.b32.xlu0 %v3567, 58
  %v3579 = vpop.permute.xlu0 %3578
  %3580 = vrot.lane.b32.xlu0 %v3568, 58
  %v3581 = vpop.permute.xlu0 %3580
  %3582 = vrot.lane.b32.xlu0 %v3569, 58
  %v3583 = vpop.permute.xlu0 %3582
  %3584 = vrot.lane.b32.xlu0 %v3570, 58
  %v3585 = vpop.permute.xlu0 %3584
  %3586 = vrot.lane.b32.xlu0 %v3571, 58
  %v3587 = vpop.permute.xlu0 %3586
  %3588 = vrot.lane.b32.xlu0 %v3572, 58
  %v3589 = vpop.permute.xlu0 %3588
  %3590 = vrot.lane.b32.xlu0 %v3573, 58
  %v3591 = vpop.permute.xlu0 %3590
  %3592 = vrot.lane.b32.xlu0 %v3574, 58
  %v3593 = vpop.permute.xlu0 %3592
  %3594 = vrot.lane.b32.xlu0 %v3576, 58
  %v3595 = vpop.permute.xlu0 %3594
  %3596 = vrot.lane.b32.xlu0 %v3577, 58
  %v3597 = vpop.permute.xlu0 %3596
  %v3598 = vsel %vm1107, %v3579, %v3581
  %v3599 = vsel %vm1107, %v3581, %v3583
  %v3600 = vsel %vm1107, %v3583, %v3585
  %v3601 = vsel %vm1107, %v3585, %v3587
  %v3602 = vsel %vm1107, %v3587, %v3589
  %v3603 = vsel %vm1107, %v3589, %v3591
  %v3604 = vsel %vm1107, %v3591, %v3593
  %v3605 = vsel %vm1107, %v3593, %v3595
  %v3606 = vsel %vm1107, %v3595, %v3597
  %v3607 = vsel %vm33, %v3165, %v3220
  %v3608 = vsel %vm33, %v3166, %v3221
  %v3609 = vsel %vm33, %v3167, %v3222
  %v3610 = vsel %vm33, %v3168, %v3223
  %v3611 = vsel %vm33, %v3169, %v3224
  %v3612 = vsel %vm33, %v3170, %v3225
  %v3613 = vsel %vm33, %v3171, %v3226
  %v3614 = vsel %vm33, %v3172, %v3227
  %v3615 = vsel %vm33, %v3174, %v3219
  %v3616 = vsel %vm33, %v3272, %v3325
  %v3617 = vsel %vm33, %v3273, %v3326
  %v3618 = vsel %vm33, %v3274, %v3327
  %v3619 = vsel %vm33, %v3275, %v3328
  %v3620 = vsel %vm33, %v3276, %v3329
  %v3621 = vsel %vm33, %v3277, %v3330
  %v3622 = vsel %vm33, %v3278, %v3331
  %v3623 = vsel %vm33, %v3279, %v3332
  %v3624 = vsel %vm33, %v3271, %v3324
  %v3625 = vsel %vm33, %v3377, %v3430
  %v3626 = vsel %vm33, %v3378, %v3431
  %v3627 = vsel %vm33, %v3379, %v3432
  %v3628 = vsel %vm33, %v3380, %v3433
  %v3629 = vsel %vm33, %v3381, %v3434
  %v3630 = vsel %vm33, %v3382, %v3435
  %v3631 = vsel %vm33, %v3383, %v3436
  %v3632 = vsel %vm33, %v3384, %v3437
  %v3633 = vsel %vm33, %v3376, %v3429
  %v3634 = vsel %vm33, %v3485, %v3542
  %v3635 = vsel %vm33, %v3486, %v3543
  %v3636 = vsel %vm33, %v3487, %v3544
  %v3637 = vsel %vm33, %v3488, %v3545
  %v3638 = vsel %vm33, %v3489, %v3546
  %v3639 = vsel %vm33, %v3490, %v3547
  %v3640 = vsel %vm33, %v3491, %v3548
  %v3641 = vsel %vm33, %v3492, %v3549
  %v3642 = vsel %vm33, %v3493, %v3550
  %v3643 = vsel %vm33, %v3598, 0
  %v3645 = vsel %vm33, %v3599, 0
  %v3647 = vsel %vm33, %v3600, 0
  %v3649 = vsel %vm33, %v3601, 0
  %v3651 = vsel %vm33, %v3602, 0
  %v3653 = vsel %vm33, %v3603, 0
  %v3655 = vsel %vm33, %v3604, 0
  %v3657 = vsel %vm33, %v3605, 0
  %v3659 = vsel %vm33, %v3606, 0
  %3661 = vmatpush.msra.mxu0 0.0
  %3662 = vmatpush.msra.mxu0 0.0
  %3663 = vmatpush.msra.mxu0 0.0
  %3664 = vmatpush.msra.mxu0 0.0
  %3665 = vmatpush.msra.mxu0 0.0
  %3666 = vmatpush.msra.mxu0 0.0
  %3667 = vmatpush.msra.mxu0 0.0
  %3668 = vmatpush.msra.mxu0 0.0
  %3669 = vmatpush.msra.mxu0 0.0
  %3670 = vmatpush.msra.mxu0 0.0
  %3671 = vmatpush.msra.mxu0 0.0
  %3672 = vmatpush.msra.mxu0 %v3643
  %3673 = vmatpush.msra.mxu0 %v3634
  %3674 = vmatpush.msra.mxu0 %v3625
  %3675 = vmatpush.msra.mxu0 %v3616
  %3676 = vmatpush.msra.mxu0 %v3607
  %3677 = vmatmul.f32.gmra.mxu0 %v1909
  %v3678 = vpop.f32.mrf.mxu0
  %v3679 = vadd.f32 %v1905, %v3678
  %3680 = vdwg.mxu0
  %3681 = vmatpush.msra.mxu0 0.0
  %3682 = vmatpush.msra.mxu0 0.0
  %3683 = vmatpush.msra.mxu0 0.0
  %3684 = vmatpush.msra.mxu0 0.0
  %3685 = vmatpush.msra.mxu0 0.0
  %3686 = vmatpush.msra.mxu0 0.0
  %3687 = vmatpush.msra.mxu0 0.0
  %3688 = vmatpush.msra.mxu0 0.0
  %3689 = vmatpush.msra.mxu0 0.0
  %3690 = vmatpush.msra.mxu0 0.0
  %3691 = vmatpush.msra.mxu0 0.0
  %3692 = vmatpush.msra.mxu0 %v3645
  %3693 = vmatpush.msra.mxu0 %v3635
  %3694 = vmatpush.msra.mxu0 %v3626
  %3695 = vmatpush.msra.mxu0 %v3617
  %3696 = vmatpush.msra.mxu0 %v3608
  %3697 = vmatmul.f32.gmra.mxu0 %v1909
  %v3698 = vpop.f32.mrf.mxu0
  %v3699 = vadd.f32 %v1905, %v3698
  %3700 = vdwg.mxu0
  %3701 = vmatpush.msra.mxu0 0.0
  %3702 = vmatpush.msra.mxu0 0.0
  %3703 = vmatpush.msra.mxu0 0.0
  %3704 = vmatpush.msra.mxu0 0.0
  %3705 = vmatpush.msra.mxu0 0.0
  %3706 = vmatpush.msra.mxu0 0.0
  %3707 = vmatpush.msra.mxu0 0.0
  %3708 = vmatpush.msra.mxu0 0.0
  %3709 = vmatpush.msra.mxu0 0.0
  %3710 = vmatpush.msra.mxu0 0.0
  %3711 = vmatpush.msra.mxu0 0.0
  %3712 = vmatpush.msra.mxu0 %v3647
  %3713 = vmatpush.msra.mxu0 %v3636
  %3714 = vmatpush.msra.mxu0 %v3627
  %3715 = vmatpush.msra.mxu0 %v3618
  %3716 = vmatpush.msra.mxu0 %v3609
  %3717 = vmatmul.f32.gmra.mxu0 %v1909
  %v3718 = vpop.f32.mrf.mxu0
  %v3719 = vadd.f32 %v1905, %v3718
  %3720 = vdwg.mxu0
  %3721 = vmatpush.msra.mxu0 0.0
  %3722 = vmatpush.msra.mxu0 0.0
  %3723 = vmatpush.msra.mxu0 0.0
  %3724 = vmatpush.msra.mxu0 0.0
  %3725 = vmatpush.msra.mxu0 0.0
  %3726 = vmatpush.msra.mxu0 0.0
  %3727 = vmatpush.msra.mxu0 0.0
  %3728 = vmatpush.msra.mxu0 0.0
  %3729 = vmatpush.msra.mxu0 0.0
  %3730 = vmatpush.msra.mxu0 0.0
  %3731 = vmatpush.msra.mxu0 0.0
  %3732 = vmatpush.msra.mxu0 %v3649
  %3733 = vmatpush.msra.mxu0 %v3637
  %3734 = vmatpush.msra.mxu0 %v3628
  %3735 = vmatpush.msra.mxu0 %v3619
  %3736 = vmatpush.msra.mxu0 %v3610
  %3737 = vmatmul.f32.gmra.mxu0 %v1909
  %v3738 = vpop.f32.mrf.mxu0
  %v3739 = vadd.f32 %v1905, %v3738
  %3740 = vdwg.mxu0
  %3741 = vmatpush.msra.mxu0 0.0
  %3742 = vmatpush.msra.mxu0 0.0
  %3743 = vmatpush.msra.mxu0 0.0
  %3744 = vmatpush.msra.mxu0 0.0
  %3745 = vmatpush.msra.mxu0 0.0
  %3746 = vmatpush.msra.mxu0 0.0
  %3747 = vmatpush.msra.mxu0 0.0
  %3748 = vmatpush.msra.mxu0 0.0
  %3749 = vmatpush.msra.mxu0 0.0
  %3750 = vmatpush.msra.mxu0 0.0
  %3751 = vmatpush.msra.mxu0 0.0
  %3752 = vmatpush.msra.mxu0 %v3651
  %3753 = vmatpush.msra.mxu0 %v3638
  %3754 = vmatpush.msra.mxu0 %v3629
  %3755 = vmatpush.msra.mxu0 %v3620
  %3756 = vmatpush.msra.mxu0 %v3611
  %3757 = vmatmul.f32.gmra.mxu0 %v1909
  %v3758 = vpop.f32.mrf.mxu0
  %v3759 = vadd.f32 %v1905, %v3758
  %3760 = vdwg.mxu0
  %3761 = vmatpush.msra.mxu0 0.0
  %3762 = vmatpush.msra.mxu0 0.0
  %3763 = vmatpush.msra.mxu0 0.0
  %3764 = vmatpush.msra.mxu0 0.0
  %3765 = vmatpush.msra.mxu0 0.0
  %3766 = vmatpush.msra.mxu0 0.0
  %3767 = vmatpush.msra.mxu0 0.0
  %3768 = vmatpush.msra.mxu0 0.0
  %3769 = vmatpush.msra.mxu0 0.0
  %3770 = vmatpush.msra.mxu0 0.0
  %3771 = vmatpush.msra.mxu0 0.0
  %3772 = vmatpush.msra.mxu0 %v3653
  %3773 = vmatpush.msra.mxu0 %v3639
  %3774 = vmatpush.msra.mxu0 %v3630
  %3775 = vmatpush.msra.mxu0 %v3621
  %3776 = vmatpush.msra.mxu0 %v3612
  %3777 = vmatmul.f32.gmra.mxu0 %v1909
  %v3778 = vpop.f32.mrf.mxu0
  %v3779 = vadd.f32 %v1905, %v3778
  %3780 = vdwg.mxu0
  %3781 = vmatpush.msra.mxu0 0.0
  %3782 = vmatpush.msra.mxu0 0.0
  %3783 = vmatpush.msra.mxu0 0.0
  %3784 = vmatpush.msra.mxu0 0.0
  %3785 = vmatpush.msra.mxu0 0.0
  %3786 = vmatpush.msra.mxu0 0.0
  %3787 = vmatpush.msra.mxu0 0.0
  %3788 = vmatpush.msra.mxu0 0.0
  %3789 = vmatpush.msra.mxu0 0.0
  %3790 = vmatpush.msra.mxu0 0.0
  %3791 = vmatpush.msra.mxu0 0.0
  %3792 = vmatpush.msra.mxu0 %v3655
  %3793 = vmatpush.msra.mxu0 %v3640
  %3794 = vmatpush.msra.mxu0 %v3631
  %3795 = vmatpush.msra.mxu0 %v3622
  %3796 = vmatpush.msra.mxu0 %v3613
  %3797 = vmatmul.f32.gmra.mxu0 %v1909
  %v3798 = vpop.f32.mrf.mxu0
  %v3799 = vadd.f32 %v1905, %v3798
  %3800 = vdwg.mxu0
  %3801 = vmatpush.msra.mxu0 0.0
  %3802 = vmatpush.msra.mxu0 0.0
  %3803 = vmatpush.msra.mxu0 0.0
  %3804 = vmatpush.msra.mxu0 0.0
  %3805 = vmatpush.msra.mxu0 0.0
  %3806 = vmatpush.msra.mxu0 0.0
  %3807 = vmatpush.msra.mxu0 0.0
  %3808 = vmatpush.msra.mxu0 0.0
  %3809 = vmatpush.msra.mxu0 0.0
  %3810 = vmatpush.msra.mxu0 0.0
  %3811 = vmatpush.msra.mxu0 0.0
  %3812 = vmatpush.msra.mxu0 %v3657
  %3813 = vmatpush.msra.mxu0 %v3641
  %3814 = vmatpush.msra.mxu0 %v3632
  %3815 = vmatpush.msra.mxu0 %v3623
  %3816 = vmatpush.msra.mxu0 %v3614
  %3817 = vmatmul.f32.gmra.mxu0 %v1909
  %v3818 = vpop.f32.mrf.mxu0
  %v3819 = vadd.f32 %v1905, %v3818
  %3820 = vdwg.mxu0
  %3821 = vmatpush.msra.mxu0 0.0
  %3822 = vmatpush.msra.mxu0 0.0
  %3823 = vmatpush.msra.mxu0 0.0
  %3824 = vmatpush.msra.mxu0 0.0
  %3825 = vmatpush.msra.mxu0 0.0
  %3826 = vmatpush.msra.mxu0 0.0
  %3827 = vmatpush.msra.mxu0 0.0
  %3828 = vmatpush.msra.mxu0 0.0
  %3829 = vmatpush.msra.mxu0 0.0
  %3830 = vmatpush.msra.mxu0 0.0
  %3831 = vmatpush.msra.mxu0 0.0
  %3832 = vmatpush.msra.mxu0 %v3659
  %3833 = vmatpush.msra.mxu0 %v3642
  %3834 = vmatpush.msra.mxu0 %v3633
  %3835 = vmatpush.msra.mxu0 %v3624
  %3836 = vmatpush.msra.mxu0 %v3615
  %3837 = vmatmul.f32.gmra.mxu0 %v1909
  %v3838 = vpop.f32.mrf.mxu0
  %v3839 = vadd.f32 %v1905, %v3838
  %3840 = vdwg.mxu0
  %v3841 = vmax.f32 %v3679, 0.0
  %v3842 = vmax.f32 %v3699, 0.0
  %v3843 = vmax.f32 %v3719, 0.0
  %v3844 = vmax.f32 %v3739, 0.0
  %v3845 = vmax.f32 %v3759, 0.0
  %v3846 = vmax.f32 %v3779, 0.0
  %v3847 = vmax.f32 %v3799, 0.0
  %v3848 = vmax.f32 %v3819, 0.0
  %v3849 = vmax.f32 %v3839, 0.0
  %v3858 = vrot.slane %v3842, 4
  %v3859 = vrot.slane %v3844, 4
  %v3860 = vrot.slane %v3846, 4
  %v3861 = vrot.slane %v3848, 4
  %v3862 = vsel %vm33, %v3841, %v3858
  %v3863 = vsel %vm33, %v3843, %v3859
  %v3864 = vsel %vm33, %v3845, %v3860
  %v3865 = vsel %vm33, %v3847, %v3861
  %s3870 = scalar_lea.vmem %s8, 36
  %3871 = vst [vmem:[%s3870] sm:$0xff] %v3862
  %3872 = vst [vmem:[%s3870 + $0x8] sm:$0xff] %v3863
  %3873 = vst [vmem:[%s3870 + $0x10] sm:$0xff] %v3864
  %3874 = vst [vmem:[%s3870 + $0x18] sm:$0xff] %v3865
  %3875 = vst.msk [vmem:[%s3870 + $0x20] sm:$0xf] %vm2142, %v3849
  // Predicated region
  $region34: #{decoder_block_forward.1} parent=0 // pred_check
    _
  $region35: #{decoder_block_forward.1} parent=0 // pred_check_branch
    %3877 = sbr.rel (0) target = $region37
  $region36: #{decoder_block_forward.1} parent=0 // pred_region
    _
  $region37: #{decoder_block_forward.1} parent=0 // pred_fallthru
    _
  // Predicated region
  $region38: #{decoder_block_forward.1} parent=0 // pred_check
    _
  $region39: #{decoder_block_forward.1} parent=0 // pred_check_branch
    %3879 = sbr.rel (0) target = $region41
  $region40: #{decoder_block_forward.1} parent=0 // pred_region
    _
  $region41: #{decoder_block_forward.1} parent=0 // pred_fallthru
    _

</llo_original>
